<compile_context>
chip_gen: v7x
topology: tpu7x:2x2x1
jax: 0.10.0
libtpu: 0.0.40
codegen_flags: <defaults>
</compile_context>

<pallas_src>
import functools

import jax
import jax.numpy as jnp
import numpy as np
from jax.experimental import pallas as pl
from jax.experimental.pallas import tpu as pltpu


# ----------------------------------------------------------------------------- kernel
def _decoder_kernel(qenc_ref, amat_ref, a0_ref,
                    wa_ref, wh_ref, wq_ref, bias_ref,
                    wbilT_ref, bbil_ref,
                    out_ref,
                    *, n_actions, op_seq_len):
    B, A_pad, F = amat_ref.shape
    Hc = wh_ref.shape[0]
    E = a0_ref.shape[1]

    amat = amat_ref[...]                                        # (B, A_pad, F)
    amat_emb = amat[:, :, :E]                                   # (B, A_pad, E)

    # ---- loop-invariant hoists ------------------------------------------------
    # qenc contribution to the LSTM gate pre-activation (+ combined bias), once.
    qk = jnp.dot(qenc_ref[...], wq_ref[...],
                 preferred_element_type=jnp.float32) + bias_ref[...]   # (B, 4*Hc)
    # Bilinear weight applied to every action vector, once, stored pre-transposed
    # so the per-step score matmul is fully canonical (K=Hc on sublanes, output
    # lane-dense over A_pad). The one-time transpose is off the serial chain.
    P = jnp.dot(amat.reshape(B * A_pad, F), wbilT_ref[...],
                preferred_element_type=jnp.float32).reshape(B, A_pad, Hc)
    Pt = jnp.swapaxes(P, 1, 2)                                  # (B, Hc, A_pad)

    wa = wa_ref[...]                                            # (E,  4*Hc)
    wh = wh_ref[...]                                            # (Hc, 4*Hc)

    lane = jax.lax.broadcasted_iota(jnp.int32, (B, A_pad), 1)
    valid = lane < n_actions
    neg_big = jnp.float32(-1e30)

    # ---- step 0: start_seq one-hot on action 0 ---------------------------------
    start_row = (lane == 0).astype(jnp.float32)                 # (B, A_pad)
    score_rows = []

    # ---- register-resident LSTM state / previous action ------------------------
    h = jnp.zeros((B, Hc), jnp.float32)
    c = jnp.zeros((B, Hc), jnp.float32)
    prev_a = a0_ref[...]                                        # embedding row 0

    for _ in range(1, op_seq_len):                              # fully unrolled
        # gate pre-activations: two tiny MXU dots, no per-step lane concat.
        gates = (jnp.dot(prev_a, wa, preferred_element_type=jnp.float32)
                 + jnp.dot(h, wh, preferred_element_type=jnp.float32)
                 + qk)                                          # (B, 4*Hc)
        # columns are pre-permuted to [i, f, o, g]: one sigmoid, one tanh.
        act = jax.nn.sigmoid(gates[:, :3 * Hc])
        ig = act[:, 0 * Hc:1 * Hc]
        fg = act[:, 1 * Hc:2 * Hc]
        og = act[:, 2 * Hc:3 * Hc]
        gg = jnp.tanh(gates[:, 3 * Hc:])
        c = fg * c + ig * gg
        h = og * jnp.tanh(c)

        # bilinear scores via the pre-transposed projection (lane-dense output)
        scores = jnp.einsum('bqh,bha->bqa', h[:, None, :], Pt,
                            preferred_element_type=jnp.float32).reshape(B, A_pad)
        score_rows.append(scores)

        # greedy argmax (first-occurrence) over the real actions; gather the
        # chosen embedding part with an MXU einsum (onehot @ amat_emb).
        masked = jnp.where(valid, scores, neg_big)
        maxv = jnp.max(masked, axis=-1, keepdims=True)
        first_idx = jnp.min(jnp.where(masked >= maxv, lane, A_pad),
                            axis=-1, keepdims=True)             # (B, 1)
        onehot = (lane == first_idx).astype(jnp.float32)        # (B, A_pad)
        prev_a = jnp.einsum('bqa,bae->bqe', onehot[:, None, :], amat_emb,
                            preferred_element_type=jnp.float32).reshape(B, E)

    # scalar bilinear bias added once to the whole score slab (argmax already
    # done on un-shifted scores — shift-invariant); single lane-dense store.
    bbil = bbil_ref[0]
    if score_rows:
        score_slab = jnp.concatenate(score_rows, axis=0) + bbil     # ((T-1)*B, A_pad)
        out_ref[...] = jnp.concatenate([start_row, score_slab], axis=0)
    else:
        out_ref[...] = start_row


# ----------------------------------------------------------------------------- wrapper
def decoder_forward_pallas(qenc, amat, a0, wa, wh, wq, bias, wbil_t, bbil,
                           op_seq_len):
    B, H = qenc.shape
    _, A, F = amat.shape
    A_pad = ((A + 127) // 128) * 128
    amat_pad = jnp.pad(amat, ((0, 0), (0, A_pad - A), (0, 0)))

    vmem = pl.BlockSpec(memory_space=pltpu.MemorySpace.VMEM)
    smem = pl.BlockSpec(memory_space=pltpu.MemorySpace.SMEM)
    kernel = functools.partial(_decoder_kernel,
                               n_actions=A, op_seq_len=op_seq_len)

    # TODO(synk): on v7x (2 TensorCores) a grid=(B,) with
    # dimension_semantics=("parallel",) would place one batch element per core;
    # intentionally not applied here since on v5e/v6e it is pure serial overhead.
    out = pl.pallas_call(
        kernel,
        out_shape=jax.ShapeDtypeStruct((op_seq_len * B, A_pad), jnp.float32),
        in_specs=[vmem] * 8 + [smem],
        out_specs=vmem,
    )(qenc, amat_pad, a0, wa, wh, wq, bias, wbil_t, bbil)

    # (T*B, A_pad) -> (B, T, A), PyTorch convention
    out = out.reshape(op_seq_len, B, A_pad)
    return jnp.transpose(out, (1, 0, 2))[:, :, :A]


# ----------------------------------------------------------------------------- glue
def init_params(key, n_states, E, H, Hc, F):
    ks = jax.random.split(key, 7)
    s = 0.1
    return dict(
        emb=jax.random.normal(ks[0], (n_states, E), jnp.float32) * s,
        w_ih=jax.random.normal(ks[1], (4 * Hc, F), jnp.float32) * s,
        w_hh=jax.random.normal(ks[2], (4 * Hc, Hc), jnp.float32) * s,
        b_ih=jax.random.normal(ks[3], (4 * Hc,), jnp.float32) * s,
        b_hh=jax.random.normal(ks[4], (4 * Hc,), jnp.float32) * s,
        w_bil=jax.random.normal(ks[5], (1, Hc, F), jnp.float32) * s,
        b_bil=jax.random.normal(ks[6], (1,), jnp.float32) * s,
    )


def generate_action_matrix(emb, qenc, cols_out, q_out, idxs):
    """JAX port of Decoder.generate_action_matrix (pure glue)."""
    B, H = qenc.shape
    E = emb.shape[-1]

    def pad_vec(idx):
        e = emb[idx]                                           # (n, E)
        v = jnp.concatenate([e, jnp.zeros((e.shape[0], H), jnp.float32)], axis=1)
        return jnp.broadcast_to(v[None], (B, e.shape[0], E + H))

    def col_vec(idx, feat):
        e = jnp.broadcast_to(emb[idx][None], (B, feat.shape[1], E))
        return jnp.concatenate([e, feat], axis=2)

    start_v = pad_vec(idxs['start'])
    agg_v = pad_vec(idxs['agg'])
    selcol_v = col_vec(idxs['selcol'], cols_out)
    condcol_v = col_vec(idxs['condcol'], cols_out)
    condop_v = pad_vec(idxs['condop'])
    condval_v = col_vec(idxs['condval'], q_out)
    end_v = pad_vec(idxs['end'])
    return jnp.concatenate(
        [start_v, agg_v, selcol_v, condcol_v, condop_v, condval_v, end_v], axis=1)


def reference_forward(params, qenc, amat, op_seq_len):
    """Pure-JAX reference of the greedy decode loop (eval mode, no teacher forcing)."""
    B = qenc.shape[0]
    Hc = params['w_hh'].shape[-1]
    E = params['emb'].shape[-1]
    A = amat.shape[1]
    dot = lambda a, b: jnp.dot(a, b, precision='highest')

    h = jnp.zeros((B, Hc), jnp.float32)
    c = jnp.zeros((B, Hc), jnp.float32)
    prev_a = jnp.broadcast_to(params['emb'][0][None], (B, E))
    bias = params['b_ih'] + params['b_hh']
    w_bil = params['w_bil'][0]
    b_bil = params['b_bil'][0]

    outs = [jnp.zeros((B, 1, A), jnp.float32).at[:, :, 0].set(1.0)]
    for _ in range(1, op_seq_len):
        x = jnp.concatenate([prev_a, qenc], axis=1)
        gates = dot(x, params['w_ih'].T) + dot(h, params['w_hh'].T) + bias
        i = jax.nn.sigmoid(gates[:, :Hc])
        f = jax.nn.sigmoid(gates[:, Hc:2 * Hc])
        g = jnp.tanh(gates[:, 2 * Hc:3 * Hc])
        o = jax.nn.sigmoid(gates[:, 3 * Hc:])
        c = f * c + i * g
        h = o * jnp.tanh(c)
        tmp = dot(h, w_bil)
        scores = jnp.einsum('bf,baf->ba', tmp, amat) + b_bil
        outs.append(scores[:, None, :])
        idx = jnp.argmax(scores, axis=1)
        prev_a = amat[jnp.arange(B), idx, :E]
    return jnp.concatenate(outs, axis=1)


# ----------------------------------------------------------------------------- main
if __name__ == "__main__":
    # Module configuration (small but consistent with Decoder.__init__)
    agg_ops = ["", "MAX", "MIN", "COUNT", "SUM"]                 # 5
    cond_ops = ["=", ">", "<", "OP"]                             # 4
    states = ["s0", "s1", "s2", "s3", "s4", "s5", "s6"]          # 7
    n_states = len(states) + len(cond_ops) + len(agg_ops) - 2    # 14
    repr_dim = 32            # H
    emb_dim = 16             # action_embedding_dim
    n_lstm_cells = 32        # Hc
    op_seq_len = 6
    B, seq_len, col_len = 2, 8, 4
    feature_dim = repr_dim + emb_dim
    # TODO(synk): multi-layer / bidirectional LSTM and the teacher-forcing branch
    # (random.random() < ratio) are not exercised; n_layers=1, bidirectional=False,
    # teacher_forcing_ratio=0 (greedy) is implemented. Real batching (B >= 8, ideally
    # 128+) is the biggest remaining throughput lever but B=2 matches the spec.

    n_agg, n_cond = len(agg_ops), len(cond_ops)
    idxs = dict(
        start=jnp.arange(0, 1),
        agg=jnp.arange(1, n_agg + 1),
        selcol=jnp.arange(n_agg + 1, n_agg + 2),
        condcol=jnp.arange(n_agg + 2, n_agg + 3),
        condop=jnp.arange(n_agg + 3, n_agg + 3 + n_cond),
        condval=jnp.arange(n_agg + 3 + n_cond, n_agg + 3 + n_cond + 1),
        end=jnp.arange(n_agg + 3 + n_cond + 1, n_agg + 3 + n_cond + 2),
    )

    key = jax.random.PRNGKey(0)
    kp, kq, kqo, kco = jax.random.split(key, 4)
    params = init_params(kp, n_states, emb_dim, repr_dim, n_lstm_cells, feature_dim)

    questions_encoded = jax.random.normal(kq, (B, repr_dim), jnp.float32)
    questions_output = jax.random.normal(kqo, (B, seq_len, repr_dim), jnp.float32)
    columns_output = jax.random.normal(kco, (B, col_len, repr_dim), jnp.float32)

    action_matrix = generate_action_matrix(
        params['emb'], questions_encoded, columns_output, questions_output, idxs)

    # Kernel-ready parameter tensors.
    Hc = n_lstm_cells
    # gate-column permutation to [i, f, o, g] (PyTorch order is [i, f, g, o])
    order = jnp.concatenate([jnp.arange(0, Hc), jnp.arange(Hc, 2 * Hc),
                             jnp.arange(3 * Hc, 4 * Hc), jnp.arange(2 * Hc, 3 * Hc)])
    a0 = jnp.broadcast_to(params['emb'][0][None], (B, emb_dim))
    wa = params['w_ih'][:, :emb_dim].T[:, order]                 # (E,  4*Hc)
    wh = params['w_hh'].T[:, order]                              # (Hc, 4*Hc)
    wq = params['w_ih'][:, emb_dim:].T[:, order]                 # (H,  4*Hc)
    bias = (params['b_ih'] + params['b_hh'])[order][None, :]     # (1,  4*Hc)
    wbil_t = params['w_bil'][0].T                                # (F, Hc)
    bbil = params['b_bil'].astype(jnp.float32)                   # (1,)  -> SMEM scalar

    out = decoder_forward_pallas(questions_encoded, action_matrix, a0,
                                 wa, wh, wq, bias, wbil_t, bbil,
                                 op_seq_len)
    out = jax.block_until_ready(out)

    n_actions = 1 + n_agg + 2 * col_len + n_cond + seq_len + 1
    assert out.shape == (B, op_seq_len, n_actions), out.shape

    ref = reference_forward(params, questions_encoded, action_matrix, op_seq_len)
    np.testing.assert_allclose(np.asarray(out), np.asarray(ref), rtol=2e-2, atol=2e-2)

    print("KERNEL_OK")
</pallas_src>

<mosaic_0001>
module attributes {stable_mosaic.version = 11 : i64} {
  func.func @_decoder_kernel(%arg0: memref<2x32xf32, #tpu.memory_space<vmem>>, %arg1: memref<2x128x48xf32, #tpu.memory_space<vmem>>, %arg2: memref<2x16xf32, #tpu.memory_space<vmem>>, %arg3: memref<16x128xf32, #tpu.memory_space<vmem>>, %arg4: memref<32x128xf32, #tpu.memory_space<vmem>>, %arg5: memref<32x128xf32, #tpu.memory_space<vmem>>, %arg6: memref<1x128xf32, #tpu.memory_space<vmem>>, %arg7: memref<48x32xf32, #tpu.memory_space<vmem>>, %arg8: memref<1xf32, #tpu.memory_space<smem>>, %arg9: memref<12x128xf32, #tpu.memory_space<vmem>>) attributes {dimension_semantics = [], scalar_prefetch = 0 : i64, scratch_operands = 0 : i64, tpu.core_type = #tpu.core_type<tc>} {
    %c0 = arith.constant 0 : index
    %c0_0 = arith.constant 0 : index
    %c0_1 = arith.constant 0 : index
    %0 = vector.load %arg1[%c0, %c0_0, %c0_1] : memref<2x128x48xf32, #tpu.memory_space<vmem>>, vector<2x128x48xf32>
    %1 = vector.extract_strided_slice %0 {offsets = [0, 0, 0], sizes = [2, 128, 16], strides = [1, 1, 1]} : vector<2x128x48xf32> to vector<2x128x16xf32>
    %c0_2 = arith.constant 0 : index
    %c0_3 = arith.constant 0 : index
    %2 = vector.load %arg0[%c0_2, %c0_3] : memref<2x32xf32, #tpu.memory_space<vmem>>, vector<2x32xf32>
    %c0_4 = arith.constant 0 : index
    %c0_5 = arith.constant 0 : index
    %3 = vector.load %arg5[%c0_4, %c0_5] : memref<32x128xf32, #tpu.memory_space<vmem>>, vector<32x128xf32>
    %cst = arith.constant dense<0.000000e+00> : vector<2x128xf32>
    %4 = tpu.matmul %2, %3, %cst {dimension_numbers = #tpu.dot_dimension_numbers<[1], [0], [0], [1], [0, 0, 1, 1], [], []>} : vector<2x32xf32>, vector<32x128xf32>, vector<2x128xf32> -> vector<2x128xf32>
    %c0_6 = arith.constant 0 : index
    %c0_7 = arith.constant 0 : index
    %5 = vector.load %arg6[%c0_6, %c0_7] : memref<1x128xf32, #tpu.memory_space<vmem>>, vector<1x128xf32>
    %6 = vector.broadcast %5 : vector<1x128xf32> to vector<2x128xf32>
    %7 = arith.addf %4, %6 : vector<2x128xf32>
    %8 = vector.shape_cast %0 : vector<2x128x48xf32> to vector<256x48xf32>
    %c0_8 = arith.constant 0 : index
    %c0_9 = arith.constant 0 : index
    %9 = vector.load %arg7[%c0_8, %c0_9] : memref<48x32xf32, #tpu.memory_space<vmem>>, vector<48x32xf32>
    %cst_10 = arith.constant dense<0.000000e+00> : vector<256x32xf32>
    %10 = tpu.matmul %8, %9, %cst_10 {dimension_numbers = #tpu.dot_dimension_numbers<[1], [0], [0], [1], [0, 0, 1, 1], [], []>} : vector<256x48xf32>, vector<48x32xf32>, vector<256x32xf32> -> vector<256x32xf32>
    %11 = vector.shape_cast %10 : vector<256x32xf32> to vector<2x128x32xf32>
    %12 = tpu.transpose %11, [0, 2, 1] : vector<2x128x32xf32> -> vector<2x32x128xf32>
    %c0_11 = arith.constant 0 : index
    %c0_12 = arith.constant 0 : index
    %13 = vector.load %arg3[%c0_11, %c0_12] : memref<16x128xf32, #tpu.memory_space<vmem>>, vector<16x128xf32>
    %c0_13 = arith.constant 0 : index
    %c0_14 = arith.constant 0 : index
    %14 = vector.load %arg4[%c0_13, %c0_14] : memref<32x128xf32, #tpu.memory_space<vmem>>, vector<32x128xf32>
    %15 = tpu.iota {dimensions = array<i32: 1>} : vector<2x128xi32>
    %c27_i32 = arith.constant 27 : i32
    %16 = vector.broadcast %c27_i32 : i32 to vector<2x128xi32>
    %17 = arith.cmpi slt, %15, %16 : vector<2x128xi32>
    %c0_i32 = arith.constant 0 : i32
    %18 = vector.broadcast %c0_i32 : i32 to vector<2x128xi32>
    %19 = arith.cmpi eq, %15, %18 : vector<2x128xi32>
    %20 = arith.extui %19 : vector<2x128xi1> to vector<2x128xi32>
    %21 = arith.sitofp %20 : vector<2x128xi32> to vector<2x128xf32>
    %cst_15 = arith.constant 0.000000e+00 : f32
    %22 = vector.broadcast %cst_15 : f32 to vector<2x32xf32>
    %cst_16 = arith.constant 0.000000e+00 : f32
    %23 = vector.broadcast %cst_16 : f32 to vector<2x32xf32>
    %c0_17 = arith.constant 0 : index
    %c0_18 = arith.constant 0 : index
    %24 = vector.load %arg2[%c0_17, %c0_18] : memref<2x16xf32, #tpu.memory_space<vmem>>, vector<2x16xf32>
    %cst_19 = arith.constant dense<0.000000e+00> : vector<2x128xf32>
    %25 = tpu.matmul %24, %13, %cst_19 {dimension_numbers = #tpu.dot_dimension_numbers<[1], [0], [0], [1], [0, 0, 1, 1], [], []>} : vector<2x16xf32>, vector<16x128xf32>, vector<2x128xf32> -> vector<2x128xf32>
    %cst_20 = arith.constant dense<0.000000e+00> : vector<2x128xf32>
    %26 = tpu.matmul %22, %14, %cst_20 {dimension_numbers = #tpu.dot_dimension_numbers<[1], [0], [0], [1], [0, 0, 1, 1], [], []>} : vector<2x32xf32>, vector<32x128xf32>, vector<2x128xf32> -> vector<2x128xf32>
    %27 = arith.addf %25, %26 : vector<2x128xf32>
    %28 = arith.addf %27, %7 : vector<2x128xf32>
    %29 = vector.extract_strided_slice %28 {offsets = [0, 0], sizes = [2, 96], strides = [1, 1]} : vector<2x128xf32> to vector<2x96xf32>
    %30 = arith.negf %29 : vector<2x96xf32>
    %31 = math.exp %30 : vector<2x96xf32>
    %cst_21 = arith.constant 1.000000e+00 : f32
    %32 = vector.broadcast %cst_21 : f32 to vector<2x96xf32>
    %33 = arith.addf %32, %31 : vector<2x96xf32>
    %34 = arith.divf %32, %33 : vector<2x96xf32>
    %35 = vector.extract_strided_slice %34 {offsets = [0, 0], sizes = [2, 32], strides = [1, 1]} : vector<2x96xf32> to vector<2x32xf32>
    %36 = vector.extract_strided_slice %34 {offsets = [0, 32], sizes = [2, 32], strides = [1, 1]} : vector<2x96xf32> to vector<2x32xf32>
    %37 = vector.extract_strided_slice %34 {offsets = [0, 64], sizes = [2, 32], strides = [1, 1]} : vector<2x96xf32> to vector<2x32xf32>
    %38 = vector.extract_strided_slice %28 {offsets = [0, 96], sizes = [2, 32], strides = [1, 1]} : vector<2x128xf32> to vector<2x32xf32>
    %39 = math.tanh %38 : vector<2x32xf32>
    %40 = arith.mulf %36, %23 : vector<2x32xf32>
    %41 = arith.mulf %35, %39 : vector<2x32xf32>
    %42 = arith.addf %40, %41 : vector<2x32xf32>
    %43 = math.tanh %42 : vector<2x32xf32>
    %44 = arith.mulf %37, %43 : vector<2x32xf32>
    %45 = vector.shape_cast %44 : vector<2x32xf32> to vector<2x1x32xf32>
    "tpu.trace_start"() <{level = 10 : i32, message = "bqh,bha->bqa"}> : () -> ()
    %cst_22 = arith.constant dense<0.000000e+00> : vector<2x1x128xf32>
    %46 = tpu.matmul %45, %12, %cst_22 {dimension_numbers = #tpu.dot_dimension_numbers<[2], [1], [1], [2], [0, 0, 0, 1, 1, 2], [0], [0]>} : vector<2x1x32xf32>, vector<2x32x128xf32>, vector<2x1x128xf32> -> vector<2x1x128xf32>
    "tpu.trace_stop"() : () -> ()
    %47 = vector.shape_cast %46 : vector<2x1x128xf32> to vector<2x128xf32>
    %cst_23 = arith.constant -1.000000e+30 : f32
    %48 = vector.broadcast %cst_23 : f32 to vector<2x128xf32>
    %49 = arith.select %17, %47, %48 : vector<2x128xi1>, vector<2x128xf32>
    %cst_24 = arith.constant dense<0xFF800000> : vector<2xf32>
    %50 = vector.multi_reduction <maximumf>, %49, %cst_24 [1] : vector<2x128xf32> to vector<2xf32>
    %51 = vector.shape_cast %50 : vector<2xf32> to vector<2x1xf32>
    %52 = vector.broadcast %51 : vector<2x1xf32> to vector<2x128xf32>
    %53 = arith.cmpf oge, %49, %52 : vector<2x128xf32>
    %c128_i32 = arith.constant 128 : i32
    %54 = vector.broadcast %c128_i32 : i32 to vector<2x128xi32>
    %55 = arith.select %53, %15, %54 : vector<2x128xi1>, vector<2x128xi32>
    %cst_25 = arith.constant dense<2147483647> : vector<2xi32>
    %56 = vector.multi_reduction <minsi>, %55, %cst_25 [1] : vector<2x128xi32> to vector<2xi32>
    %57 = vector.shape_cast %56 : vector<2xi32> to vector<2x1xi32>
    %58 = vector.broadcast %57 : vector<2x1xi32> to vector<2x128xi32>
    %59 = arith.cmpi eq, %15, %58 : vector<2x128xi32>
    %60 = arith.extui %59 : vector<2x128xi1> to vector<2x128xi32>
    %61 = arith.sitofp %60 : vector<2x128xi32> to vector<2x128xf32>
    %62 = vector.shape_cast %61 : vector<2x128xf32> to vector<2x1x128xf32>
    "tpu.trace_start"() <{level = 10 : i32, message = "bqa,bae->bqe"}> : () -> ()
    %cst_26 = arith.constant dense<0.000000e+00> : vector<2x1x16xf32>
    %63 = tpu.matmul %62, %1, %cst_26 {dimension_numbers = #tpu.dot_dimension_numbers<[2], [1], [1], [2], [0, 0, 0, 1, 1, 2], [0], [0]>} : vector<2x1x128xf32>, vector<2x128x16xf32>, vector<2x1x16xf32> -> vector<2x1x16xf32>
    "tpu.trace_stop"() : () -> ()
    %64 = vector.shape_cast %63 : vector<2x1x16xf32> to vector<2x16xf32>
    %cst_27 = arith.constant dense<0.000000e+00> : vector<2x128xf32>
    %65 = tpu.matmul %64, %13, %cst_27 {dimension_numbers = #tpu.dot_dimension_numbers<[1], [0], [0], [1], [0, 0, 1, 1], [], []>} : vector<2x16xf32>, vector<16x128xf32>, vector<2x128xf32> -> vector<2x128xf32>
    %cst_28 = arith.constant dense<0.000000e+00> : vector<2x128xf32>
    %66 = tpu.matmul %44, %14, %cst_28 {dimension_numbers = #tpu.dot_dimension_numbers<[1], [0], [0], [1], [0, 0, 1, 1], [], []>} : vector<2x32xf32>, vector<32x128xf32>, vector<2x128xf32> -> vector<2x128xf32>
    %67 = arith.addf %65, %66 : vector<2x128xf32>
    %68 = arith.addf %67, %7 : vector<2x128xf32>
    %69 = vector.extract_strided_slice %68 {offsets = [0, 0], sizes = [2, 96], strides = [1, 1]} : vector<2x128xf32> to vector<2x96xf32>
    %70 = arith.negf %69 : vector<2x96xf32>
    %71 = math.exp %70 : vector<2x96xf32>
    %cst_29 = arith.constant 1.000000e+00 : f32
    %72 = vector.broadcast %cst_29 : f32 to vector<2x96xf32>
    %73 = arith.addf %72, %71 : vector<2x96xf32>
    %74 = arith.divf %72, %73 : vector<2x96xf32>
    %75 = vector.extract_strided_slice %74 {offsets = [0, 0], sizes = [2, 32], strides = [1, 1]} : vector<2x96xf32> to vector<2x32xf32>
    %76 = vector.extract_strided_slice %74 {offsets = [0, 32], sizes = [2, 32], strides = [1, 1]} : vector<2x96xf32> to vector<2x32xf32>
    %77 = vector.extract_strided_slice %74 {offsets = [0, 64], sizes = [2, 32], strides = [1, 1]} : vector<2x96xf32> to vector<2x32xf32>
    %78 = vector.extract_strided_slice %68 {offsets = [0, 96], sizes = [2, 32], strides = [1, 1]} : vector<2x128xf32> to vector<2x32xf32>
    %79 = math.tanh %78 : vector<2x32xf32>
    %80 = arith.mulf %76, %42 : vector<2x32xf32>
    %81 = arith.mulf %75, %79 : vector<2x32xf32>
    %82 = arith.addf %80, %81 : vector<2x32xf32>
    %83 = math.tanh %82 : vector<2x32xf32>
    %84 = arith.mulf %77, %83 : vector<2x32xf32>
    %85 = vector.shape_cast %84 : vector<2x32xf32> to vector<2x1x32xf32>
    "tpu.trace_start"() <{level = 10 : i32, message = "bqh,bha->bqa"}> : () -> ()
    %cst_30 = arith.constant dense<0.000000e+00> : vector<2x1x128xf32>
    %86 = tpu.matmul %85, %12, %cst_30 {dimension_numbers = #tpu.dot_dimension_numbers<[2], [1], [1], [2], [0, 0, 0, 1, 1, 2], [0], [0]>} : vector<2x1x32xf32>, vector<2x32x128xf32>, vector<2x1x128xf32> -> vector<2x1x128xf32>
    "tpu.trace_stop"() : () -> ()
    %87 = vector.shape_cast %86 : vector<2x1x128xf32> to vector<2x128xf32>
    %cst_31 = arith.constant -1.000000e+30 : f32
    %88 = vector.broadcast %cst_31 : f32 to vector<2x128xf32>
    %89 = arith.select %17, %87, %88 : vector<2x128xi1>, vector<2x128xf32>
    %cst_32 = arith.constant dense<0xFF800000> : vector<2xf32>
    %90 = vector.multi_reduction <maximumf>, %89, %cst_32 [1] : vector<2x128xf32> to vector<2xf32>
    %91 = vector.shape_cast %90 : vector<2xf32> to vector<2x1xf32>
    %92 = vector.broadcast %91 : vector<2x1xf32> to vector<2x128xf32>
    %93 = arith.cmpf oge, %89, %92 : vector<2x128xf32>
    %c128_i32_33 = arith.constant 128 : i32
    %94 = vector.broadcast %c128_i32_33 : i32 to vector<2x128xi32>
    %95 = arith.select %93, %15, %94 : vector<2x128xi1>, vector<2x128xi32>
    %cst_34 = arith.constant dense<2147483647> : vector<2xi32>
    %96 = vector.multi_reduction <minsi>, %95, %cst_34 [1] : vector<2x128xi32> to vector<2xi32>
    %97 = vector.shape_cast %96 : vector<2xi32> to vector<2x1xi32>
    %98 = vector.broadcast %97 : vector<2x1xi32> to vector<2x128xi32>
    %99 = arith.cmpi eq, %15, %98 : vector<2x128xi32>
    %100 = arith.extui %99 : vector<2x128xi1> to vector<2x128xi32>
    %101 = arith.sitofp %100 : vector<2x128xi32> to vector<2x128xf32>
    %102 = vector.shape_cast %101 : vector<2x128xf32> to vector<2x1x128xf32>
    "tpu.trace_start"() <{level = 10 : i32, message = "bqa,bae->bqe"}> : () -> ()
    %cst_35 = arith.constant dense<0.000000e+00> : vector<2x1x16xf32>
    %103 = tpu.matmul %102, %1, %cst_35 {dimension_numbers = #tpu.dot_dimension_numbers<[2], [1], [1], [2], [0, 0, 0, 1, 1, 2], [0], [0]>} : vector<2x1x128xf32>, vector<2x128x16xf32>, vector<2x1x16xf32> -> vector<2x1x16xf32>
    "tpu.trace_stop"() : () -> ()
    %104 = vector.shape_cast %103 : vector<2x1x16xf32> to vector<2x16xf32>
    %cst_36 = arith.constant dense<0.000000e+00> : vector<2x128xf32>
    %105 = tpu.matmul %104, %13, %cst_36 {dimension_numbers = #tpu.dot_dimension_numbers<[1], [0], [0], [1], [0, 0, 1, 1], [], []>} : vector<2x16xf32>, vector<16x128xf32>, vector<2x128xf32> -> vector<2x128xf32>
    %cst_37 = arith.constant dense<0.000000e+00> : vector<2x128xf32>
    %106 = tpu.matmul %84, %14, %cst_37 {dimension_numbers = #tpu.dot_dimension_numbers<[1], [0], [0], [1], [0, 0, 1, 1], [], []>} : vector<2x32xf32>, vector<32x128xf32>, vector<2x128xf32> -> vector<2x128xf32>
    %107 = arith.addf %105, %106 : vector<2x128xf32>
    %108 = arith.addf %107, %7 : vector<2x128xf32>
    %109 = vector.extract_strided_slice %108 {offsets = [0, 0], sizes = [2, 96], strides = [1, 1]} : vector<2x128xf32> to vector<2x96xf32>
    %110 = arith.negf %109 : vector<2x96xf32>
    %111 = math.exp %110 : vector<2x96xf32>
    %cst_38 = arith.constant 1.000000e+00 : f32
    %112 = vector.broadcast %cst_38 : f32 to vector<2x96xf32>
    %113 = arith.addf %112, %111 : vector<2x96xf32>
    %114 = arith.divf %112, %113 : vector<2x96xf32>
    %115 = vector.extract_strided_slice %114 {offsets = [0, 0], sizes = [2, 32], strides = [1, 1]} : vector<2x96xf32> to vector<2x32xf32>
    %116 = vector.extract_strided_slice %114 {offsets = [0, 32], sizes = [2, 32], strides = [1, 1]} : vector<2x96xf32> to vector<2x32xf32>
    %117 = vector.extract_strided_slice %114 {offsets = [0, 64], sizes = [2, 32], strides = [1, 1]} : vector<2x96xf32> to vector<2x32xf32>
    %118 = vector.extract_strided_slice %108 {offsets = [0, 96], sizes = [2, 32], strides = [1, 1]} : vector<2x128xf32> to vector<2x32xf32>
    %119 = math.tanh %118 : vector<2x32xf32>
    %120 = arith.mulf %116, %82 : vector<2x32xf32>
    %121 = arith.mulf %115, %119 : vector<2x32xf32>
    %122 = arith.addf %120, %121 : vector<2x32xf32>
    %123 = math.tanh %122 : vector<2x32xf32>
    %124 = arith.mulf %117, %123 : vector<2x32xf32>
    %125 = vector.shape_cast %124 : vector<2x32xf32> to vector<2x1x32xf32>
    "tpu.trace_start"() <{level = 10 : i32, message = "bqh,bha->bqa"}> : () -> ()
    %cst_39 = arith.constant dense<0.000000e+00> : vector<2x1x128xf32>
    %126 = tpu.matmul %125, %12, %cst_39 {dimension_numbers = #tpu.dot_dimension_numbers<[2], [1], [1], [2], [0, 0, 0, 1, 1, 2], [0], [0]>} : vector<2x1x32xf32>, vector<2x32x128xf32>, vector<2x1x128xf32> -> vector<2x1x128xf32>
    "tpu.trace_stop"() : () -> ()
    %127 = vector.shape_cast %126 : vector<2x1x128xf32> to vector<2x128xf32>
    %cst_40 = arith.constant -1.000000e+30 : f32
    %128 = vector.broadcast %cst_40 : f32 to vector<2x128xf32>
    %129 = arith.select %17, %127, %128 : vector<2x128xi1>, vector<2x128xf32>
    %cst_41 = arith.constant dense<0xFF800000> : vector<2xf32>
    %130 = vector.multi_reduction <maximumf>, %129, %cst_41 [1] : vector<2x128xf32> to vector<2xf32>
    %131 = vector.shape_cast %130 : vector<2xf32> to vector<2x1xf32>
    %132 = vector.broadcast %131 : vector<2x1xf32> to vector<2x128xf32>
    %133 = arith.cmpf oge, %129, %132 : vector<2x128xf32>
    %c128_i32_42 = arith.constant 128 : i32
    %134 = vector.broadcast %c128_i32_42 : i32 to vector<2x128xi32>
    %135 = arith.select %133, %15, %134 : vector<2x128xi1>, vector<2x128xi32>
    %cst_43 = arith.constant dense<2147483647> : vector<2xi32>
    %136 = vector.multi_reduction <minsi>, %135, %cst_43 [1] : vector<2x128xi32> to vector<2xi32>
    %137 = vector.shape_cast %136 : vector<2xi32> to vector<2x1xi32>
    %138 = vector.broadcast %137 : vector<2x1xi32> to vector<2x128xi32>
    %139 = arith.cmpi eq, %15, %138 : vector<2x128xi32>
    %140 = arith.extui %139 : vector<2x128xi1> to vector<2x128xi32>
    %141 = arith.sitofp %140 : vector<2x128xi32> to vector<2x128xf32>
    %142 = vector.shape_cast %141 : vector<2x128xf32> to vector<2x1x128xf32>
    "tpu.trace_start"() <{level = 10 : i32, message = "bqa,bae->bqe"}> : () -> ()
    %cst_44 = arith.constant dense<0.000000e+00> : vector<2x1x16xf32>
    %143 = tpu.matmul %142, %1, %cst_44 {dimension_numbers = #tpu.dot_dimension_numbers<[2], [1], [1], [2], [0, 0, 0, 1, 1, 2], [0], [0]>} : vector<2x1x128xf32>, vector<2x128x16xf32>, vector<2x1x16xf32> -> vector<2x1x16xf32>
    "tpu.trace_stop"() : () -> ()
    %144 = vector.shape_cast %143 : vector<2x1x16xf32> to vector<2x16xf32>
    %cst_45 = arith.constant dense<0.000000e+00> : vector<2x128xf32>
    %145 = tpu.matmul %144, %13, %cst_45 {dimension_numbers = #tpu.dot_dimension_numbers<[1], [0], [0], [1], [0, 0, 1, 1], [], []>} : vector<2x16xf32>, vector<16x128xf32>, vector<2x128xf32> -> vector<2x128xf32>
    %cst_46 = arith.constant dense<0.000000e+00> : vector<2x128xf32>
    %146 = tpu.matmul %124, %14, %cst_46 {dimension_numbers = #tpu.dot_dimension_numbers<[1], [0], [0], [1], [0, 0, 1, 1], [], []>} : vector<2x32xf32>, vector<32x128xf32>, vector<2x128xf32> -> vector<2x128xf32>
    %147 = arith.addf %145, %146 : vector<2x128xf32>
    %148 = arith.addf %147, %7 : vector<2x128xf32>
    %149 = vector.extract_strided_slice %148 {offsets = [0, 0], sizes = [2, 96], strides = [1, 1]} : vector<2x128xf32> to vector<2x96xf32>
    %150 = arith.negf %149 : vector<2x96xf32>
    %151 = math.exp %150 : vector<2x96xf32>
    %cst_47 = arith.constant 1.000000e+00 : f32
    %152 = vector.broadcast %cst_47 : f32 to vector<2x96xf32>
    %153 = arith.addf %152, %151 : vector<2x96xf32>
    %154 = arith.divf %152, %153 : vector<2x96xf32>
    %155 = vector.extract_strided_slice %154 {offsets = [0, 0], sizes = [2, 32], strides = [1, 1]} : vector<2x96xf32> to vector<2x32xf32>
    %156 = vector.extract_strided_slice %154 {offsets = [0, 32], sizes = [2, 32], strides = [1, 1]} : vector<2x96xf32> to vector<2x32xf32>
    %157 = vector.extract_strided_slice %154 {offsets = [0, 64], sizes = [2, 32], strides = [1, 1]} : vector<2x96xf32> to vector<2x32xf32>
    %158 = vector.extract_strided_slice %148 {offsets = [0, 96], sizes = [2, 32], strides = [1, 1]} : vector<2x128xf32> to vector<2x32xf32>
    %159 = math.tanh %158 : vector<2x32xf32>
    %160 = arith.mulf %156, %122 : vector<2x32xf32>
    %161 = arith.mulf %155, %159 : vector<2x32xf32>
    %162 = arith.addf %160, %161 : vector<2x32xf32>
    %163 = math.tanh %162 : vector<2x32xf32>
    %164 = arith.mulf %157, %163 : vector<2x32xf32>
    %165 = vector.shape_cast %164 : vector<2x32xf32> to vector<2x1x32xf32>
    "tpu.trace_start"() <{level = 10 : i32, message = "bqh,bha->bqa"}> : () -> ()
    %cst_48 = arith.constant dense<0.000000e+00> : vector<2x1x128xf32>
    %166 = tpu.matmul %165, %12, %cst_48 {dimension_numbers = #tpu.dot_dimension_numbers<[2], [1], [1], [2], [0, 0, 0, 1, 1, 2], [0], [0]>} : vector<2x1x32xf32>, vector<2x32x128xf32>, vector<2x1x128xf32> -> vector<2x1x128xf32>
    "tpu.trace_stop"() : () -> ()
    %167 = vector.shape_cast %166 : vector<2x1x128xf32> to vector<2x128xf32>
    %cst_49 = arith.constant -1.000000e+30 : f32
    %168 = vector.broadcast %cst_49 : f32 to vector<2x128xf32>
    %169 = arith.select %17, %167, %168 : vector<2x128xi1>, vector<2x128xf32>
    %cst_50 = arith.constant dense<0xFF800000> : vector<2xf32>
    %170 = vector.multi_reduction <maximumf>, %169, %cst_50 [1] : vector<2x128xf32> to vector<2xf32>
    %171 = vector.shape_cast %170 : vector<2xf32> to vector<2x1xf32>
    %172 = vector.broadcast %171 : vector<2x1xf32> to vector<2x128xf32>
    %173 = arith.cmpf oge, %169, %172 : vector<2x128xf32>
    %c128_i32_51 = arith.constant 128 : i32
    %174 = vector.broadcast %c128_i32_51 : i32 to vector<2x128xi32>
    %175 = arith.select %173, %15, %174 : vector<2x128xi1>, vector<2x128xi32>
    %cst_52 = arith.constant dense<2147483647> : vector<2xi32>
    %176 = vector.multi_reduction <minsi>, %175, %cst_52 [1] : vector<2x128xi32> to vector<2xi32>
    %177 = vector.shape_cast %176 : vector<2xi32> to vector<2x1xi32>
    %178 = vector.broadcast %177 : vector<2x1xi32> to vector<2x128xi32>
    %179 = arith.cmpi eq, %15, %178 : vector<2x128xi32>
    %180 = arith.extui %179 : vector<2x128xi1> to vector<2x128xi32>
    %181 = arith.sitofp %180 : vector<2x128xi32> to vector<2x128xf32>
    %182 = vector.shape_cast %181 : vector<2x128xf32> to vector<2x1x128xf32>
    "tpu.trace_start"() <{level = 10 : i32, message = "bqa,bae->bqe"}> : () -> ()
    %cst_53 = arith.constant dense<0.000000e+00> : vector<2x1x16xf32>
    %183 = tpu.matmul %182, %1, %cst_53 {dimension_numbers = #tpu.dot_dimension_numbers<[2], [1], [1], [2], [0, 0, 0, 1, 1, 2], [0], [0]>} : vector<2x1x128xf32>, vector<2x128x16xf32>, vector<2x1x16xf32> -> vector<2x1x16xf32>
    "tpu.trace_stop"() : () -> ()
    %184 = vector.shape_cast %183 : vector<2x1x16xf32> to vector<2x16xf32>
    %cst_54 = arith.constant dense<0.000000e+00> : vector<2x128xf32>
    %185 = tpu.matmul %184, %13, %cst_54 {dimension_numbers = #tpu.dot_dimension_numbers<[1], [0], [0], [1], [0, 0, 1, 1], [], []>} : vector<2x16xf32>, vector<16x128xf32>, vector<2x128xf32> -> vector<2x128xf32>
    %cst_55 = arith.constant dense<0.000000e+00> : vector<2x128xf32>
    %186 = tpu.matmul %164, %14, %cst_55 {dimension_numbers = #tpu.dot_dimension_numbers<[1], [0], [0], [1], [0, 0, 1, 1], [], []>} : vector<2x32xf32>, vector<32x128xf32>, vector<2x128xf32> -> vector<2x128xf32>
    %187 = arith.addf %185, %186 : vector<2x128xf32>
    %188 = arith.addf %187, %7 : vector<2x128xf32>
    %189 = vector.extract_strided_slice %188 {offsets = [0, 0], sizes = [2, 96], strides = [1, 1]} : vector<2x128xf32> to vector<2x96xf32>
    %190 = arith.negf %189 : vector<2x96xf32>
    %191 = math.exp %190 : vector<2x96xf32>
    %cst_56 = arith.constant 1.000000e+00 : f32
    %192 = vector.broadcast %cst_56 : f32 to vector<2x96xf32>
    %193 = arith.addf %192, %191 : vector<2x96xf32>
    %194 = arith.divf %192, %193 : vector<2x96xf32>
    %195 = vector.extract_strided_slice %194 {offsets = [0, 0], sizes = [2, 32], strides = [1, 1]} : vector<2x96xf32> to vector<2x32xf32>
    %196 = vector.extract_strided_slice %194 {offsets = [0, 32], sizes = [2, 32], strides = [1, 1]} : vector<2x96xf32> to vector<2x32xf32>
    %197 = vector.extract_strided_slice %194 {offsets = [0, 64], sizes = [2, 32], strides = [1, 1]} : vector<2x96xf32> to vector<2x32xf32>
    %198 = vector.extract_strided_slice %188 {offsets = [0, 96], sizes = [2, 32], strides = [1, 1]} : vector<2x128xf32> to vector<2x32xf32>
    %199 = math.tanh %198 : vector<2x32xf32>
    %200 = arith.mulf %196, %162 : vector<2x32xf32>
    %201 = arith.mulf %195, %199 : vector<2x32xf32>
    %202 = arith.addf %200, %201 : vector<2x32xf32>
    %203 = math.tanh %202 : vector<2x32xf32>
    %204 = arith.mulf %197, %203 : vector<2x32xf32>
    %205 = vector.shape_cast %204 : vector<2x32xf32> to vector<2x1x32xf32>
    "tpu.trace_start"() <{level = 10 : i32, message = "bqh,bha->bqa"}> : () -> ()
    %cst_57 = arith.constant dense<0.000000e+00> : vector<2x1x128xf32>
    %206 = tpu.matmul %205, %12, %cst_57 {dimension_numbers = #tpu.dot_dimension_numbers<[2], [1], [1], [2], [0, 0, 0, 1, 1, 2], [0], [0]>} : vector<2x1x32xf32>, vector<2x32x128xf32>, vector<2x1x128xf32> -> vector<2x1x128xf32>
    "tpu.trace_stop"() : () -> ()
    %207 = vector.shape_cast %206 : vector<2x1x128xf32> to vector<2x128xf32>
    %c0_58 = arith.constant 0 : index
    %208 = memref.load %arg8[%c0_58] : memref<1xf32, #tpu.memory_space<smem>>
    %209 = tpu.concatenate %47, %87, %127, %167, %207 in 0 : vector<2x128xf32>, vector<2x128xf32>, vector<2x128xf32>, vector<2x128xf32>, vector<2x128xf32> -> vector<10x128xf32>
    %210 = vector.broadcast %208 : f32 to vector<10x128xf32>
    %211 = arith.addf %209, %210 : vector<10x128xf32>
    %212 = tpu.concatenate %21, %211 in 0 : vector<2x128xf32>, vector<10x128xf32> -> vector<12x128xf32>
    %c0_59 = arith.constant 0 : index
    %c0_60 = arith.constant 0 : index
    %213 = vector.load %arg9[%c0_59, %c0_60] : memref<12x128xf32, #tpu.memory_space<vmem>>, vector<12x128xf32>
    tpu.vector_store %arg9[%c0_59, %c0_60], %212 {strides = array<i32>} : memref<12x128xf32, #tpu.memory_space<vmem>>, vector<12x128xf32>,
    return
  }
}

</mosaic_0001>

<llo_original>
// kernel: tpu_custom_call.1
$region0: #{tpu_custom_call.1}
  #allocation0 [shape = 'u32[]', space=smem, size = 0x4, offset = 0x4, fixed_abs, tag = 'smem constant byte address 0x4 - core index']
  #allocation1 [shape = 'u32[144,128]{1,0:T(1,128)}', space=vmem, size = 0x12000, scoped, tag = 'internal scratch']
  #allocation2 [shape = 'f32[1]{0:T(128)S(6)}', space=smem, size = 0x200, scoped, tag = 'scoped memory for tpu_custom_call.1']
  %s0 = inlined_call_operand.vmem [shape: f32[2,32], index: 0, kind: input, shape index: {}]
  %s1 = inlined_call_operand.vmem [shape: f32[2,128,48], index: 1, kind: input, shape index: {}]
  %s2 = inlined_call_operand.vmem [shape: f32[2,16], index: 2, kind: input, shape index: {}]
  %s3 = inlined_call_operand.vmem [shape: f32[16,128], index: 3, kind: input, shape index: {}]
  %s4 = inlined_call_operand.vmem [shape: f32[32,128], index: 4, kind: input, shape index: {}]
  %s5 = inlined_call_operand.vmem [shape: f32[32,128], index: 5, kind: input, shape index: {}]
  %s6 = inlined_call_operand.vmem [shape: f32[1,128], index: 6, kind: input, shape index: {}]
  %s7 = inlined_call_operand.vmem [shape: f32[48,32], index: 7, kind: input, shape index: {}]
  %s8 = inlined_call_operand.<no memory space> [shape: f32[1], index: 8, kind: input, shape index: {}]
  %s9 = inlined_call_operand.hbm [shape: f32[12,128], index: 9, kind: output, shape index: {}]
  %s10 = sld [smem:[#allocation0]]
  $region46: #{tpu_custom_call.1} parent=0
    _
  %s12 = ssub.s32 1, %s10
  %s13 = scalar_select 0, %s12, %s10
  %14 = sst [smem:[#allocation2]] %s8
  $region1: #{tpu_custom_call.1} parent=0
    #allocation3 [shape = 'u8[8192]{0}', space=vmem, size = 0x2000, scoped, tag = 'output window, operand 0, single buffered']
    #allocation4 [shape = 's32[1]{0}', space=sflag, size = 0x4, scoped, tag = 'scoped memory for tpu_custom_call.1']
    %15 = vsyncpa [#allocation4], 0
    // Predicated region
    $region2: #{tpu_custom_call.1} parent=1 // pred_check
      _
    $region3: #{tpu_custom_call.1} parent=1 // pred_check_branch
      %17 = sbr.rel (0) target = $region5
    $region4: #{tpu_custom_call.1} parent=1 // pred_region
      _
    $region5: #{tpu_custom_call.1} parent=1 // pred_fallthru
      _
    // Predicated region
    $region6: #{tpu_custom_call.1} parent=1 // pred_check
      _
    $region7: #{tpu_custom_call.1} parent=1 // pred_check_branch
      %19 = sbr.rel (0) target = $region9
    $region8: #{tpu_custom_call.1} parent=1 // pred_region
      _
    $region9: #{tpu_custom_call.1} parent=1 // pred_fallthru
      _
    // Predicated region
    $region10: #{tpu_custom_call.1} parent=1 // pred_check
      _
    $region11: #{tpu_custom_call.1} parent=1 // pred_check_branch
      %21 = sbr.rel (0) target = $region13
    $region12: #{tpu_custom_call.1} parent=1 // pred_region
      _
    $region13: #{tpu_custom_call.1} parent=1 // pred_fallthru
      _
    // Predicated region
    $region14: #{tpu_custom_call.1} parent=1 // pred_check
      _
    $region15: #{tpu_custom_call.1} parent=1 // pred_check_branch
      %23 = sbr.rel (0) target = $region17
    $region16: #{tpu_custom_call.1} parent=1 // pred_region
      _
    $region17: #{tpu_custom_call.1} parent=1 // pred_fallthru
      _
    // Predicated region
    $region18: #{tpu_custom_call.1} parent=1 // pred_check
      _
    $region19: #{tpu_custom_call.1} parent=1 // pred_check_branch
      %25 = sbr.rel (0) target = $region21
    $region20: #{tpu_custom_call.1} parent=1 // pred_region
      _
    $region21: #{tpu_custom_call.1} parent=1 // pred_fallthru
      _
    // Predicated region
    $region22: #{tpu_custom_call.1} parent=1 // pred_check
      _
    $region23: #{tpu_custom_call.1} parent=1 // pred_check_branch
      %27 = sbr.rel (0) target = $region25
    $region24: #{tpu_custom_call.1} parent=1 // pred_region
      _
    $region25: #{tpu_custom_call.1} parent=1 // pred_fallthru
      _
    // Predicated region
    $region26: #{tpu_custom_call.1} parent=1 // pred_check
      _
    $region27: #{tpu_custom_call.1} parent=1 // pred_check_branch
      %29 = sbr.rel (0) target = $region29
    $region28: #{tpu_custom_call.1} parent=1 // pred_region
      _
    $region29: #{tpu_custom_call.1} parent=1 // pred_fallthru
      _
    // Predicated region
    $region30: #{tpu_custom_call.1} parent=1 // pred_check
      _
    $region31: #{tpu_custom_call.1} parent=1 // pred_check_branch
      %31 = sbr.rel (0) target = $region33
    $region32: #{tpu_custom_call.1} parent=1 // pred_region
      _
    $region33: #{tpu_custom_call.1} parent=1 // pred_fallthru
      _
    // Predicated region
    $region34: #{tpu_custom_call.1} parent=1 // pred_check
      _
    $region35: #{tpu_custom_call.1} parent=1 // pred_check_branch
      %33 = sbr.rel (0) target = $region37
    $region36: #{tpu_custom_call.1} parent=1 // pred_region
      _
    $region37: #{tpu_custom_call.1} parent=1 // pred_fallthru
      _
    %v34 = vld [vmem:[%s1] sm:$0xff]
    %v35 = vld [vmem:[%s1 + $0x8] sm:$0xff]
    %v36 = vld [vmem:[%s1 + $0x10] sm:$0xff]
    %v37 = vld [vmem:[%s1 + $0x18] sm:$0xff]
    %v38 = vld [vmem:[%s1 + $0x20] sm:$0xff]
    %v39 = vld [vmem:[%s1 + $0x28] sm:$0xff]
    %v40 = vld [vmem:[%s1 + $0x30] sm:$0xff]
    %v41 = vld [vmem:[%s1 + $0x38] sm:$0xff]
    %v42 = vld [vmem:[%s1 + $0x40] sm:$0xff]
    %v43 = vld [vmem:[%s1 + $0x48] sm:$0xff]
    %v44 = vld [vmem:[%s1 + $0x50] sm:$0xff]
    %v45 = vld [vmem:[%s1 + $0x58] sm:$0xff]
    %v46 = vld [vmem:[%s1 + $0x60] sm:$0xff]
    %v47 = vld [vmem:[%s1 + $0x68] sm:$0xff]
    %v48 = vld [vmem:[%s1 + $0x70] sm:$0xff]
    %v49 = vld [vmem:[%s1 + $0x78] sm:$0xff]
    %v50 = vld [vmem:[%s1 + $0x80] sm:$0xff]
    %v51 = vld [vmem:[%s1 + $0x88] sm:$0xff]
    %v52 = vld [vmem:[%s1 + $0x90] sm:$0xff]
    %v53 = vld [vmem:[%s1 + $0x98] sm:$0xff]
    %v54 = vld [vmem:[%s1 + $0xa0] sm:$0xff]
    %v55 = vld [vmem:[%s1 + $0xa8] sm:$0xff]
    %v56 = vld [vmem:[%s1 + $0xb0] sm:$0xff]
    %v57 = vld [vmem:[%s1 + $0xb8] sm:$0xff]
    %v58 = vld [vmem:[%s1 + $0xc0] sm:$0xff]
    %v59 = vld [vmem:[%s1 + $0xc8] sm:$0xff]
    %v60 = vld [vmem:[%s1 + $0xd0] sm:$0xff]
    %v61 = vld [vmem:[%s1 + $0xd8] sm:$0xff]
    %v62 = vld [vmem:[%s1 + $0xe0] sm:$0xff]
    %v63 = vld [vmem:[%s1 + $0xe8] sm:$0xff]
    %v64 = vld [vmem:[%s1 + $0xf0] sm:$0xff]
    %v65 = vld [vmem:[%s1 + $0xf8] sm:$0xff]
    %v66 = vld [vmem:[%s0] sm:$0x3]
    %v67 = vld [vmem:[%s5] sm:$0xff]
    %v68 = vld [vmem:[%s5 + $0x8] sm:$0xff]
    %v69 = vld [vmem:[%s5 + $0x10] sm:$0xff]
    %v70 = vld [vmem:[%s5 + $0x18] sm:$0xff]
    %v71 = vld [vmem:[%s6] sm:$0x1]
    %v73 = vlaneseq
    %v74 = vshrl.u32 %v73, 7
    %v75 = vsub.s32 0, %v74
    %v76 = vrot.slane %v71, %v75
    %vm78 = vcmask 261120
    %v80 = vsel %vm78, %v66, 0
    %82 = vmatprep.subr.mxu0 0.0
    %83 = vmatpush1.msra.mxu0 %v67
    %84 = vmatprep.subr.mxu0 0.0
    %85 = vmatpush1.msra.mxu0 %v68
    %86 = vmatprep.subr.mxu0 0.0
    %87 = vmatpush1.msra.mxu0 %v69
    %88 = vmatprep.subr.mxu0 0.0
    %89 = vmatpush1.msra.mxu0 %v70
    %90 = vmatprep.subr.mxu0 0.0
    %91 = vmatpush1.msra.mxu0 0.0
    %92 = vmatprep.subr.mxu0 0.0
    %93 = vmatpush1.msra.mxu0 0.0
    %94 = vmatprep.subr.mxu0 0.0
    %95 = vmatpush1.msra.mxu0 0.0
    %96 = vmatprep.subr.mxu0 0.0
    %97 = vmatpush1.msra.mxu0 0.0
    %98 = vmatprep.subr.mxu0 0.0
    %99 = vmatpush1.msra.mxu0 0.0
    %100 = vmatprep.subr.mxu0 0.0
    %101 = vmatpush1.msra.mxu0 0.0
    %102 = vmatprep.subr.mxu0 0.0
    %103 = vmatpush1.msra.mxu0 0.0
    %104 = vmatprep.subr.mxu0 0.0
    %105 = vmatpush1.msra.mxu0 0.0
    %106 = vmatprep.subr.mxu0 0.0
    %107 = vmatpush1.msra.mxu0 0.0
    %108 = vmatprep.subr.mxu0 0.0
    %109 = vmatpush1.msra.mxu0 0.0
    %110 = vmatprep.subr.mxu0 0.0
    %111 = vmatpush1.msra.mxu0 0.0
    %112 = vmatprep.subr.mxu0 0.0
    %113 = vmatpush1.msra.mxu0 0.0
    %114 = vmatprep.subr.mxu0 0.0
    %115 = vmatpush1.msra.mxu0 0.0
    %116 = vmatprep.subr.mxu0 0.0
    %117 = vmatpush1.msra.mxu0 0.0
    %118 = vmatprep.subr.mxu0 0.0
    %119 = vmatpush1.msra.mxu0 0.0
    %120 = vmatprep.subr.mxu0 0.0
    %121 = vmatpush1.msra.mxu0 0.0
    %122 = vmatprep.subr.mxu0 0.0
    %123 = vmatpush1.msra.mxu0 0.0
    %124 = vmatprep.subr.mxu0 0.0
    %125 = vmatpush1.msra.mxu0 0.0
    %126 = vmatprep.subr.mxu0 0.0
    %127 = vmatpush1.msra.mxu0 0.0
    %128 = vmatprep.subr.mxu0 0.0
    %129 = vmatpush1.msra.mxu0 0.0
    %130 = vmatprep.subr.mxu0 0.0
    %131 = vmatpush1.msra.mxu0 0.0
    %132 = vmatprep.subr.mxu0 0.0
    %133 = vmatpush1.msra.mxu0 0.0
    %134 = vmatprep.subr.mxu0 0.0
    %135 = vmatpush1.msra.mxu0 0.0
    %136 = vmatprep.subr.mxu0 0.0
    %137 = vmatpush1.msra.mxu0 0.0
    %138 = vmatprep.subr.mxu0 0.0
    %139 = vmatpush1.msra.mxu0 0.0
    %140 = vmatprep.subr.mxu0 0.0
    %141 = vmatpush1.msra.mxu0 0.0
    %142 = vmatprep.subr.mxu0 0.0
    %143 = vmatpush1.msra.mxu0 0.0
    %144 = vmatprep.subr.mxu0 0.0
    %145 = vmatpush1.msra.mxu0 0.0
    %146 = vmatprep.mubr.f32.mxu0 0.0
    %147 = vmatmul.mubr.f32.gmra.mrb[0].mxu0 %v80
    %v148 = vpop.f32.mrb[0].mxu0
    %v149 = vadd.f32 %v76, %v148
    %v150 = vpop.f32.mrb[0].mxu0
    %151 = vdwg.mxu0
    %v152 = vld [vmem:[%s7] sm:$0xff]
    %v153 = vld [vmem:[%s7 + $0x8] sm:$0xff]
    %v154 = vld [vmem:[%s7 + $0x10] sm:$0xff]
    %v155 = vld [vmem:[%s7 + $0x18] sm:$0xff]
    %v156 = vld [vmem:[%s7 + $0x20] sm:$0xff]
    %v157 = vld [vmem:[%s7 + $0x28] sm:$0xff]
    %vm158 = vcmask 392192
    %v160 = vsel %vm158, %v34, 0
    %v163 = vsel %vm158, %v35, 0
    %v166 = vsel %vm158, %v36, 0
    %v169 = vsel %vm158, %v37, 0
    %v172 = vsel %vm158, %v38, 0
    %v175 = vsel %vm158, %v39, 0
    %v178 = vsel %vm158, %v40, 0
    %v181 = vsel %vm158, %v41, 0
    %v184 = vsel %vm158, %v42, 0
    %v187 = vsel %vm158, %v43, 0
    %v190 = vsel %vm158, %v44, 0
    %v193 = vsel %vm158, %v45, 0
    %v196 = vsel %vm158, %v46, 0
    %v199 = vsel %vm158, %v47, 0
    %v202 = vsel %vm158, %v48, 0
    %v205 = vsel %vm158, %v49, 0
    %v208 = vsel %vm158, %v50, 0
    %v211 = vsel %vm158, %v51, 0
    %v214 = vsel %vm158, %v52, 0
    %v217 = vsel %vm158, %v53, 0
    %v220 = vsel %vm158, %v54, 0
    %v223 = vsel %vm158, %v55, 0
    %v226 = vsel %vm158, %v56, 0
    %v229 = vsel %vm158, %v57, 0
    %v232 = vsel %vm158, %v58, 0
    %v235 = vsel %vm158, %v59, 0
    %v238 = vsel %vm158, %v60, 0
    %v241 = vsel %vm158, %v61, 0
    %v244 = vsel %vm158, %v62, 0
    %v247 = vsel %vm158, %v63, 0
    %v250 = vsel %vm158, %v64, 0
    %v253 = vsel %vm158, %v65, 0
    %255 = vmatprep.subr.mxu0 0.0
    %256 = vmatpush1.msra.mxu0 %v152
    %257 = vmatprep.subr.mxu0 0.0
    %258 = vmatpush1.msra.mxu0 %v153
    %259 = vmatprep.subr.mxu0 0.0
    %260 = vmatpush1.msra.mxu0 %v154
    %261 = vmatprep.subr.mxu0 0.0
    %262 = vmatpush1.msra.mxu0 %v155
    %263 = vmatprep.subr.mxu0 0.0
    %264 = vmatpush1.msra.mxu0 %v156
    %265 = vmatprep.subr.mxu0 0.0
    %266 = vmatpush1.msra.mxu0 %v157
    %267 = vmatprep.subr.mxu0 0.0
    %268 = vmatpush1.msra.mxu0 0.0
    %269 = vmatprep.subr.mxu0 0.0
    %270 = vmatpush1.msra.mxu0 0.0
    %271 = vmatprep.subr.mxu0 0.0
    %272 = vmatpush1.msra.mxu0 0.0
    %273 = vmatprep.subr.mxu0 0.0
    %274 = vmatpush1.msra.mxu0 0.0
    %275 = vmatprep.subr.mxu0 0.0
    %276 = vmatpush1.msra.mxu0 0.0
    %277 = vmatprep.subr.mxu0 0.0
    %278 = vmatpush1.msra.mxu0 0.0
    %279 = vmatprep.subr.mxu0 0.0
    %280 = vmatpush1.msra.mxu0 0.0
    %281 = vmatprep.subr.mxu0 0.0
    %282 = vmatpush1.msra.mxu0 0.0
    %283 = vmatprep.subr.mxu0 0.0
    %284 = vmatpush1.msra.mxu0 0.0
    %285 = vmatprep.subr.mxu0 0.0
    %286 = vmatpush1.msra.mxu0 0.0
    %287 = vmatprep.subr.mxu0 0.0
    %288 = vmatpush1.msra.mxu0 0.0
    %289 = vmatprep.subr.mxu0 0.0
    %290 = vmatpush1.msra.mxu0 0.0
    %291 = vmatprep.subr.mxu0 0.0
    %292 = vmatpush1.msra.mxu0 0.0
    %293 = vmatprep.subr.mxu0 0.0
    %294 = vmatpush1.msra.mxu0 0.0
    %295 = vmatprep.subr.mxu0 0.0
    %296 = vmatpush1.msra.mxu0 0.0
    %297 = vmatprep.subr.mxu0 0.0
    %298 = vmatpush1.msra.mxu0 0.0
    %299 = vmatprep.subr.mxu0 0.0
    %300 = vmatpush1.msra.mxu0 0.0
    %301 = vmatprep.subr.mxu0 0.0
    %302 = vmatpush1.msra.mxu0 0.0
    %303 = vmatprep.subr.mxu0 0.0
    %304 = vmatpush1.msra.mxu0 0.0
    %305 = vmatprep.subr.mxu0 0.0
    %306 = vmatpush1.msra.mxu0 0.0
    %307 = vmatprep.subr.mxu0 0.0
    %308 = vmatpush1.msra.mxu0 0.0
    %309 = vmatprep.subr.mxu0 0.0
    %310 = vmatpush1.msra.mxu0 0.0
    %311 = vmatprep.subr.mxu0 0.0
    %312 = vmatpush1.msra.mxu0 0.0
    %313 = vmatprep.subr.mxu0 0.0
    %314 = vmatpush1.msra.mxu0 0.0
    %315 = vmatprep.subr.mxu0 0.0
    %316 = vmatpush1.msra.mxu0 0.0
    %317 = vmatprep.subr.mxu0 0.0
    %318 = vmatpush1.msra.mxu0 0.0
    %319 = vmatprep.mubr.f32.mxu0 0.0
    %320 = vmatmul.mubr.f32.gmra.mrb[0].mxu0 %v160
    %v321 = vpop.f32.mrb[0].mxu0
    %v322 = vadd.f32 0.0, %v321
    %v323 = vpop.f32.mrb[0].mxu0
    %324 = vmatprep.mubr.f32.mxu0 0.0
    %325 = vmatmul.mubr.f32.gmra.mrb[0].mxu0 %v163
    %v326 = vpop.f32.mrb[0].mxu0
    %v327 = vadd.f32 0.0, %v326
    %v328 = vpop.f32.mrb[0].mxu0
    %329 = vmatprep.mubr.f32.mxu0 0.0
    %330 = vmatmul.mubr.f32.gmra.mrb[0].mxu0 %v166
    %v331 = vpop.f32.mrb[0].mxu0
    %v332 = vadd.f32 0.0, %v331
    %v333 = vpop.f32.mrb[0].mxu0
    %334 = vmatprep.mubr.f32.mxu0 0.0
    %335 = vmatmul.mubr.f32.gmra.mrb[0].mxu0 %v169
    %v336 = vpop.f32.mrb[0].mxu0
    %v337 = vadd.f32 0.0, %v336
    %v338 = vpop.f32.mrb[0].mxu0
    %339 = vmatprep.mubr.f32.mxu0 0.0
    %340 = vmatmul.mubr.f32.gmra.mrb[0].mxu0 %v172
    %v341 = vpop.f32.mrb[0].mxu0
    %v342 = vadd.f32 0.0, %v341
    %v343 = vpop.f32.mrb[0].mxu0
    %344 = vmatprep.mubr.f32.mxu0 0.0
    %345 = vmatmul.mubr.f32.gmra.mrb[0].mxu0 %v175
    %v346 = vpop.f32.mrb[0].mxu0
    %v347 = vadd.f32 0.0, %v346
    %v348 = vpop.f32.mrb[0].mxu0
    %349 = vmatprep.mubr.f32.mxu0 0.0
    %350 = vmatmul.mubr.f32.gmra.mrb[0].mxu0 %v178
    %v351 = vpop.f32.mrb[0].mxu0
    %v352 = vadd.f32 0.0, %v351
    %v353 = vpop.f32.mrb[0].mxu0
    %354 = vmatprep.mubr.f32.mxu0 0.0
    %355 = vmatmul.mubr.f32.gmra.mrb[0].mxu0 %v181
    %v356 = vpop.f32.mrb[0].mxu0
    %v357 = vadd.f32 0.0, %v356
    %v358 = vpop.f32.mrb[0].mxu0
    %359 = vmatprep.mubr.f32.mxu0 0.0
    %360 = vmatmul.mubr.f32.gmra.mrb[0].mxu0 %v184
    %v361 = vpop.f32.mrb[0].mxu0
    %v362 = vadd.f32 0.0, %v361
    %v363 = vpop.f32.mrb[0].mxu0
    %364 = vmatprep.mubr.f32.mxu0 0.0
    %365 = vmatmul.mubr.f32.gmra.mrb[0].mxu0 %v187
    %v366 = vpop.f32.mrb[0].mxu0
    %v367 = vadd.f32 0.0, %v366
    %v368 = vpop.f32.mrb[0].mxu0
    %369 = vmatprep.mubr.f32.mxu0 0.0
    %370 = vmatmul.mubr.f32.gmra.mrb[0].mxu0 %v190
    %v371 = vpop.f32.mrb[0].mxu0
    %v372 = vadd.f32 0.0, %v371
    %v373 = vpop.f32.mrb[0].mxu0
    %374 = vmatprep.mubr.f32.mxu0 0.0
    %375 = vmatmul.mubr.f32.gmra.mrb[0].mxu0 %v193
    %v376 = vpop.f32.mrb[0].mxu0
    %v377 = vadd.f32 0.0, %v376
    %v378 = vpop.f32.mrb[0].mxu0
    %379 = vmatprep.mubr.f32.mxu0 0.0
    %380 = vmatmul.mubr.f32.gmra.mrb[0].mxu0 %v196
    %v381 = vpop.f32.mrb[0].mxu0
    %v382 = vadd.f32 0.0, %v381
    %v383 = vpop.f32.mrb[0].mxu0
    %384 = vmatprep.mubr.f32.mxu0 0.0
    %385 = vmatmul.mubr.f32.gmra.mrb[0].mxu0 %v199
    %v386 = vpop.f32.mrb[0].mxu0
    %v387 = vadd.f32 0.0, %v386
    %v388 = vpop.f32.mrb[0].mxu0
    %389 = vmatprep.mubr.f32.mxu0 0.0
    %390 = vmatmul.mubr.f32.gmra.mrb[0].mxu0 %v202
    %v391 = vpop.f32.mrb[0].mxu0
    %v392 = vadd.f32 0.0, %v391
    %v393 = vpop.f32.mrb[0].mxu0
    %394 = vmatprep.mubr.f32.mxu0 0.0
    %395 = vmatmul.mubr.f32.gmra.mrb[0].mxu0 %v205
    %v396 = vpop.f32.mrb[0].mxu0
    %v397 = vadd.f32 0.0, %v396
    %v398 = vpop.f32.mrb[0].mxu0
    %399 = vmatprep.mubr.f32.mxu0 0.0
    %400 = vmatmul.mubr.f32.gmra.mrb[0].mxu0 %v208
    %v401 = vpop.f32.mrb[0].mxu0
    %v402 = vadd.f32 0.0, %v401
    %v403 = vpop.f32.mrb[0].mxu0
    %404 = vmatprep.mubr.f32.mxu0 0.0
    %405 = vmatmul.mubr.f32.gmra.mrb[0].mxu0 %v211
    %v406 = vpop.f32.mrb[0].mxu0
    %v407 = vadd.f32 0.0, %v406
    %v408 = vpop.f32.mrb[0].mxu0
    %409 = vmatprep.mubr.f32.mxu0 0.0
    %410 = vmatmul.mubr.f32.gmra.mrb[0].mxu0 %v214
    %v411 = vpop.f32.mrb[0].mxu0
    %v412 = vadd.f32 0.0, %v411
    %v413 = vpop.f32.mrb[0].mxu0
    %414 = vmatprep.mubr.f32.mxu0 0.0
    %415 = vmatmul.mubr.f32.gmra.mrb[0].mxu0 %v217
    %v416 = vpop.f32.mrb[0].mxu0
    %v417 = vadd.f32 0.0, %v416
    %v418 = vpop.f32.mrb[0].mxu0
    %419 = vmatprep.mubr.f32.mxu0 0.0
    %420 = vmatmul.mubr.f32.gmra.mrb[0].mxu0 %v220
    %v421 = vpop.f32.mrb[0].mxu0
    %v422 = vadd.f32 0.0, %v421
    %v423 = vpop.f32.mrb[0].mxu0
    %424 = vmatprep.mubr.f32.mxu0 0.0
    %425 = vmatmul.mubr.f32.gmra.mrb[0].mxu0 %v223
    %v426 = vpop.f32.mrb[0].mxu0
    %v427 = vadd.f32 0.0, %v426
    %v428 = vpop.f32.mrb[0].mxu0
    %429 = vmatprep.mubr.f32.mxu0 0.0
    %430 = vmatmul.mubr.f32.gmra.mrb[0].mxu0 %v226
    %v431 = vpop.f32.mrb[0].mxu0
    %v432 = vadd.f32 0.0, %v431
    %v433 = vpop.f32.mrb[0].mxu0
    %434 = vmatprep.mubr.f32.mxu0 0.0
    %435 = vmatmul.mubr.f32.gmra.mrb[0].mxu0 %v229
    %v436 = vpop.f32.mrb[0].mxu0
    %v437 = vadd.f32 0.0, %v436
    %v438 = vpop.f32.mrb[0].mxu0
    %439 = vmatprep.mubr.f32.mxu0 0.0
    %440 = vmatmul.mubr.f32.gmra.mrb[0].mxu0 %v232
    %v441 = vpop.f32.mrb[0].mxu0
    %v442 = vadd.f32 0.0, %v441
    %v443 = vpop.f32.mrb[0].mxu0
    %444 = vmatprep.mubr.f32.mxu0 0.0
    %445 = vmatmul.mubr.f32.gmra.mrb[0].mxu0 %v235
    %v446 = vpop.f32.mrb[0].mxu0
    %v447 = vadd.f32 0.0, %v446
    %v448 = vpop.f32.mrb[0].mxu0
    %449 = vmatprep.mubr.f32.mxu0 0.0
    %450 = vmatmul.mubr.f32.gmra.mrb[0].mxu0 %v238
    %v451 = vpop.f32.mrb[0].mxu0
    %v452 = vadd.f32 0.0, %v451
    %v453 = vpop.f32.mrb[0].mxu0
    %454 = vmatprep.mubr.f32.mxu0 0.0
    %455 = vmatmul.mubr.f32.gmra.mrb[0].mxu0 %v241
    %v456 = vpop.f32.mrb[0].mxu0
    %v457 = vadd.f32 0.0, %v456
    %v458 = vpop.f32.mrb[0].mxu0
    %459 = vmatprep.mubr.f32.mxu0 0.0
    %460 = vmatmul.mubr.f32.gmra.mrb[0].mxu0 %v244
    %v461 = vpop.f32.mrb[0].mxu0
    %v462 = vadd.f32 0.0, %v461
    %v463 = vpop.f32.mrb[0].mxu0
    %464 = vmatprep.mubr.f32.mxu0 0.0
    %465 = vmatmul.mubr.f32.gmra.mrb[0].mxu0 %v247
    %v466 = vpop.f32.mrb[0].mxu0
    %v467 = vadd.f32 0.0, %v466
    %v468 = vpop.f32.mrb[0].mxu0
    %469 = vmatprep.mubr.f32.mxu0 0.0
    %470 = vmatmul.mubr.f32.gmra.mrb[0].mxu0 %v250
    %v471 = vpop.f32.mrb[0].mxu0
    %v472 = vadd.f32 0.0, %v471
    %v473 = vpop.f32.mrb[0].mxu0
    %474 = vmatprep.mubr.f32.mxu0 0.0
    %475 = vmatmul.mubr.f32.gmra.mrb[0].mxu0 %v253
    %v476 = vpop.f32.mrb[0].mxu0
    %v477 = vadd.f32 0.0, %v476
    %v478 = vpop.f32.mrb[0].mxu0
    %479 = vdwg.mxu0
    %v480 = vld [vmem:[%s3] sm:$0xff]
    %v481 = vld [vmem:[%s3 + $0x8] sm:$0xff]
    %v482 = vld [vmem:[%s4] sm:$0xff]
    %v483 = vld [vmem:[%s4 + $0x8] sm:$0xff]
    %v484 = vld [vmem:[%s4 + $0x10] sm:$0xff]
    %v485 = vld [vmem:[%s4 + $0x18] sm:$0xff]
    %v486 = vlaneseq
    %v487 = vand.u32 %v486, 127
    %vm488 = vcmp.lt.s32.totalorder %v487, 27
    %vm489 = vcmp.eq.s32.totalorder %v487, 0
    %v490 = vsel %vm489, 1, 0
    %v491 = vcvt.s32.f32 %v490
    %v492 = vld [vmem:[%s2] sm:$0x3]
    %v494 = vsel %vm78, 0.0, 0
    %496 = vmatprep.subr.mxu0 0.0
    %497 = vmatpush1.msra.mxu0 %v482
    %498 = vmatprep.subr.mxu0 0.0
    %499 = vmatpush1.msra.mxu0 %v483
    %500 = vmatprep.subr.mxu0 0.0
    %501 = vmatpush1.msra.mxu0 %v484
    %502 = vmatprep.subr.mxu0 0.0
    %503 = vmatpush1.msra.mxu0 %v485
    %504 = vmatprep.subr.mxu0 0.0
    %505 = vmatpush1.msra.mxu0 0.0
    %506 = vmatprep.subr.mxu0 0.0
    %507 = vmatpush1.msra.mxu0 0.0
    %508 = vmatprep.subr.mxu0 0.0
    %509 = vmatpush1.msra.mxu0 0.0
    %510 = vmatprep.subr.mxu0 0.0
    %511 = vmatpush1.msra.mxu0 0.0
    %512 = vmatprep.subr.mxu0 0.0
    %513 = vmatpush1.msra.mxu0 0.0
    %514 = vmatprep.subr.mxu0 0.0
    %515 = vmatpush1.msra.mxu0 0.0
    %516 = vmatprep.subr.mxu0 0.0
    %517 = vmatpush1.msra.mxu0 0.0
    %518 = vmatprep.subr.mxu0 0.0
    %519 = vmatpush1.msra.mxu0 0.0
    %520 = vmatprep.subr.mxu0 0.0
    %521 = vmatpush1.msra.mxu0 0.0
    %522 = vmatprep.subr.mxu0 0.0
    %523 = vmatpush1.msra.mxu0 0.0
    %524 = vmatprep.subr.mxu0 0.0
    %525 = vmatpush1.msra.mxu0 0.0
    %526 = vmatprep.subr.mxu0 0.0
    %527 = vmatpush1.msra.mxu0 0.0
    %528 = vmatprep.subr.mxu0 0.0
    %529 = vmatpush1.msra.mxu0 0.0
    %530 = vmatprep.subr.mxu0 0.0
    %531 = vmatpush1.msra.mxu0 0.0
    %532 = vmatprep.subr.mxu0 0.0
    %533 = vmatpush1.msra.mxu0 0.0
    %534 = vmatprep.subr.mxu0 0.0
    %535 = vmatpush1.msra.mxu0 0.0
    %536 = vmatprep.subr.mxu0 0.0
    %537 = vmatpush1.msra.mxu0 0.0
    %538 = vmatprep.subr.mxu0 0.0
    %539 = vmatpush1.msra.mxu0 0.0
    %540 = vmatprep.subr.mxu0 0.0
    %541 = vmatpush1.msra.mxu0 0.0
    %542 = vmatprep.subr.mxu0 0.0
    %543 = vmatpush1.msra.mxu0 0.0
    %544 = vmatprep.subr.mxu0 0.0
    %545 = vmatpush1.msra.mxu0 0.0
    %546 = vmatprep.subr.mxu0 0.0
    %547 = vmatpush1.msra.mxu0 0.0
    %548 = vmatprep.subr.mxu0 0.0
    %549 = vmatpush1.msra.mxu0 0.0
    %550 = vmatprep.subr.mxu0 0.0
    %551 = vmatpush1.msra.mxu0 0.0
    %552 = vmatprep.subr.mxu0 0.0
    %553 = vmatpush1.msra.mxu0 0.0
    %554 = vmatprep.subr.mxu0 0.0
    %555 = vmatpush1.msra.mxu0 0.0
    %556 = vmatprep.subr.mxu0 0.0
    %557 = vmatpush1.msra.mxu0 0.0
    %558 = vmatprep.subr.mxu0 0.0
    %559 = vmatpush1.msra.mxu0 0.0
    %560 = vmatprep.mubr.f32.mxu0 0.0
    %561 = vmatmul.mubr.f32.gmra.mrb[0].mxu0 %v494
    %v562 = vpop.f32.mrb[0].mxu0
    %v563 = vadd.f32 0.0, %v562
    %v564 = vpop.f32.mrb[0].mxu0
    %565 = vdwg.mxu0
    %vm566 = vcmask 130048
    %v568 = vsel %vm566, %v492, 0
    %570 = vmatprep.subr.mxu0 0.0
    %571 = vmatpush1.msra.mxu0 %v480
    %572 = vmatprep.subr.mxu0 0.0
    %573 = vmatpush1.msra.mxu0 %v481
    %574 = vmatprep.subr.mxu0 0.0
    %575 = vmatpush1.msra.mxu0 0.0
    %576 = vmatprep.subr.mxu0 0.0
    %577 = vmatpush1.msra.mxu0 0.0
    %578 = vmatprep.subr.mxu0 0.0
    %579 = vmatpush1.msra.mxu0 0.0
    %580 = vmatprep.subr.mxu0 0.0
    %581 = vmatpush1.msra.mxu0 0.0
    %582 = vmatprep.subr.mxu0 0.0
    %583 = vmatpush1.msra.mxu0 0.0
    %584 = vmatprep.subr.mxu0 0.0
    %585 = vmatpush1.msra.mxu0 0.0
    %586 = vmatprep.subr.mxu0 0.0
    %587 = vmatpush1.msra.mxu0 0.0
    %588 = vmatprep.subr.mxu0 0.0
    %589 = vmatpush1.msra.mxu0 0.0
    %590 = vmatprep.subr.mxu0 0.0
    %591 = vmatpush1.msra.mxu0 0.0
    %592 = vmatprep.subr.mxu0 0.0
    %593 = vmatpush1.msra.mxu0 0.0
    %594 = vmatprep.subr.mxu0 0.0
    %595 = vmatpush1.msra.mxu0 0.0
    %596 = vmatprep.subr.mxu0 0.0
    %597 = vmatpush1.msra.mxu0 0.0
    %598 = vmatprep.subr.mxu0 0.0
    %599 = vmatpush1.msra.mxu0 0.0
    %600 = vmatprep.subr.mxu0 0.0
    %601 = vmatpush1.msra.mxu0 0.0
    %602 = vmatprep.subr.mxu0 0.0
    %603 = vmatpush1.msra.mxu0 0.0
    %604 = vmatprep.subr.mxu0 0.0
    %605 = vmatpush1.msra.mxu0 0.0
    %606 = vmatprep.subr.mxu0 0.0
    %607 = vmatpush1.msra.mxu0 0.0
    %608 = vmatprep.subr.mxu0 0.0
    %609 = vmatpush1.msra.mxu0 0.0
    %610 = vmatprep.subr.mxu0 0.0
    %611 = vmatpush1.msra.mxu0 0.0
    %612 = vmatprep.subr.mxu0 0.0
    %613 = vmatpush1.msra.mxu0 0.0
    %614 = vmatprep.subr.mxu0 0.0
    %615 = vmatpush1.msra.mxu0 0.0
    %616 = vmatprep.subr.mxu0 0.0
    %617 = vmatpush1.msra.mxu0 0.0
    %618 = vmatprep.subr.mxu0 0.0
    %619 = vmatpush1.msra.mxu0 0.0
    %620 = vmatprep.subr.mxu0 0.0
    %621 = vmatpush1.msra.mxu0 0.0
    %622 = vmatprep.subr.mxu0 0.0
    %623 = vmatpush1.msra.mxu0 0.0
    %624 = vmatprep.subr.mxu0 0.0
    %625 = vmatpush1.msra.mxu0 0.0
    %626 = vmatprep.subr.mxu0 0.0
    %627 = vmatpush1.msra.mxu0 0.0
    %628 = vmatprep.subr.mxu0 0.0
    %629 = vmatpush1.msra.mxu0 0.0
    %630 = vmatprep.subr.mxu0 0.0
    %631 = vmatpush1.msra.mxu0 0.0
    %632 = vmatprep.subr.mxu0 0.0
    %633 = vmatpush1.msra.mxu0 0.0
    %634 = vmatprep.mubr.f32.mxu0 0.0
    %635 = vmatmul.mubr.f32.gmra.mrb[0].mxu0 %v568
    %v636 = vpop.f32.mrb[0].mxu0
    %v637 = vadd.f32 %v563, %v636
    %v638 = vpop.f32.mrb[0].mxu0
    %639 = vdwg.mxu0
    %v640 = vadd.f32 %v637, %v149
    %v641 = vxor.u32 %v640, 2147483648
    %v642 = vmul.f32 %v641, 1.442695
    %v643 = vpow.pop %v642
    %v644 = vadd.f32 %v643, 1.0
    %v645 = vrcp.pop %v644
    %v646 = vmul.f32 1.0, %v645
    %v647 = vtanh.pop %v640
    %v648 = vmul.f32 %v646, 0.0
    %650 = vrot.lane.b32.xlu0 %v647, 32
    %v651 = vpop.permute.xlu0 %650
    %v653 = vmul.f32 %v646, %v651
    %655 = vrot.lane.b32.xlu0 %v653, 32
    %v656 = vpop.permute.xlu0 %655
    %v658 = vadd.f32 %v648, %v656
    %v659 = vtanh.pop %v658
    %661 = vrot.lane.b32.xlu0 %v659, 32
    %v662 = vpop.permute.xlu0 %661
    %v664 = vmul.f32 %v646, %v662
    %v667 = vunpack.c.l.s4 1966171168
    %v668 = vunpack.c.0.s8 %v667
    %v669 = vlaneseq
    %v670 = vshrl.u32 %v669, 7
    %v671 = vsub.s32 %v668, %v670
    %v672 = vrot.slane %v664, %v671
    %v673 = vcombine.high %v672, %v672
    %v675 = vunpack.c.l.s4 1966171168
    %v676 = vunpack.c.0.s8 %v675
    %v677 = vlaneseq
    %v678 = vshrl.u32 %v677, 7
    %v679 = vsub.s32 %v676, %v678
    %v680 = vrot.slane %v672, %v679
    %v682 = vunpack.c.l.s4 1966171168
    %v683 = vunpack.c.0.s8 %v682
    %v684 = vlaneseq
    %v685 = vshrl.u32 %v684, 7
    %v686 = vsub.s32 %v683, %v685
    %v687 = vrot.slane %v673, %v686
    %v688 = vlaneseq
    %v689 = vshrl.u32 %v688, 7
    %v690 = vsub.s32 0, %v689
    %v691 = vrot.slane %v680, %v690
    %692 = vrot.lane.b32.xlu0 %v691, 64
    %v693 = vpop.permute.xlu0 %692
    %v694 = vsel %vm78, %v693, 0
    %v697 = vsel %vm78, %v322, 0
    %v700 = vsel %vm78, %v327, 0
    %v703 = vsel %vm78, %v332, 0
    %v706 = vsel %vm78, %v337, 0
    %v709 = vsel %vm78, %v342, 0
    %v712 = vsel %vm78, %v347, 0
    %v715 = vsel %vm78, %v352, 0
    %v718 = vsel %vm78, %v357, 0
    %v721 = vsel %vm78, %v362, 0
    %v724 = vsel %vm78, %v367, 0
    %v727 = vsel %vm78, %v372, 0
    %v730 = vsel %vm78, %v377, 0
    %v733 = vsel %vm78, %v382, 0
    %v736 = vsel %vm78, %v387, 0
    %v739 = vsel %vm78, %v392, 0
    %v742 = vsel %vm78, %v397, 0
    %744 = vmatprep.subr.mxu0 0.0
    %745 = vmatpush1.xpose.msra.mxu0 %v697
    %746 = vmatprep.subr.mxu0 0.0
    %747 = vmatpush1.xpose.msra.mxu0 %v700
    %748 = vmatprep.subr.mxu0 0.0
    %749 = vmatpush1.xpose.msra.mxu0 %v703
    %750 = vmatprep.subr.mxu0 0.0
    %751 = vmatpush1.xpose.msra.mxu0 %v706
    %752 = vmatprep.subr.mxu0 0.0
    %753 = vmatpush1.xpose.msra.mxu0 %v709
    %754 = vmatprep.subr.mxu0 0.0
    %755 = vmatpush1.xpose.msra.mxu0 %v712
    %756 = vmatprep.subr.mxu0 0.0
    %757 = vmatpush1.xpose.msra.mxu0 %v715
    %758 = vmatprep.subr.mxu0 0.0
    %759 = vmatpush1.xpose.msra.mxu0 %v718
    %760 = vmatprep.subr.mxu0 0.0
    %761 = vmatpush1.xpose.msra.mxu0 %v721
    %762 = vmatprep.subr.mxu0 0.0
    %763 = vmatpush1.xpose.msra.mxu0 %v724
    %764 = vmatprep.subr.mxu0 0.0
    %765 = vmatpush1.xpose.msra.mxu0 %v727
    %766 = vmatprep.subr.mxu0 0.0
    %767 = vmatpush1.xpose.msra.mxu0 %v730
    %768 = vmatprep.subr.mxu0 0.0
    %769 = vmatpush1.xpose.msra.mxu0 %v733
    %770 = vmatprep.subr.mxu0 0.0
    %771 = vmatpush1.xpose.msra.mxu0 %v736
    %772 = vmatprep.subr.mxu0 0.0
    %773 = vmatpush1.xpose.msra.mxu0 %v739
    %774 = vmatprep.subr.mxu0 0.0
    %775 = vmatpush1.xpose.msra.mxu0 %v742
    %776 = vmatprep.subr.mxu0 0.0
    %777 = vmatpush1.xpose.msra.mxu0 0.0
    %778 = vmatprep.subr.mxu0 0.0
    %779 = vmatpush1.xpose.msra.mxu0 0.0
    %780 = vmatprep.subr.mxu0 0.0
    %781 = vmatpush1.xpose.msra.mxu0 0.0
    %782 = vmatprep.subr.mxu0 0.0
    %783 = vmatpush1.xpose.msra.mxu0 0.0
    %784 = vmatprep.subr.mxu0 0.0
    %785 = vmatpush1.xpose.msra.mxu0 0.0
    %786 = vmatprep.subr.mxu0 0.0
    %787 = vmatpush1.xpose.msra.mxu0 0.0
    %788 = vmatprep.subr.mxu0 0.0
    %789 = vmatpush1.xpose.msra.mxu0 0.0
    %790 = vmatprep.subr.mxu0 0.0
    %791 = vmatpush1.xpose.msra.mxu0 0.0
    %792 = vmatprep.subr.mxu0 0.0
    %793 = vmatpush1.xpose.msra.mxu0 0.0
    %794 = vmatprep.subr.mxu0 0.0
    %795 = vmatpush1.xpose.msra.mxu0 0.0
    %796 = vmatprep.subr.mxu0 0.0
    %797 = vmatpush1.xpose.msra.mxu0 0.0
    %798 = vmatprep.subr.mxu0 0.0
    %799 = vmatpush1.xpose.msra.mxu0 0.0
    %800 = vmatprep.subr.mxu0 0.0
    %801 = vmatpush1.xpose.msra.mxu0 0.0
    %802 = vmatprep.subr.mxu0 0.0
    %803 = vmatpush1.xpose.msra.mxu0 0.0
    %804 = vmatprep.subr.mxu0 0.0
    %805 = vmatpush1.xpose.msra.mxu0 0.0
    %806 = vmatprep.subr.mxu0 0.0
    %807 = vmatpush1.xpose.msra.mxu0 0.0
    %808 = vmatprep.mubr.f32.mxu0 0.0
    %809 = vmatmul.mubr.f32.gmra.mrb[0].mxu0 %v694
    %v810 = vpop.f32.mrb[0].mxu0
    %v811 = vadd.f32 0.0, %v810
    %v812 = vpop.f32.mrb[0].mxu0
    %813 = vdwg.mxu0
    %v814 = vlaneseq
    %v815 = vshrl.u32 %v814, 7
    %v816 = vsub.s32 0, %v815
    %v817 = vrot.slane %v687, %v816
    %818 = vrot.lane.b32.xlu0 %v817, 64
    %v819 = vpop.permute.xlu0 %818
    %v820 = vsel %vm78, %v819, 0
    %v823 = vsel %vm78, %v402, 0
    %v826 = vsel %vm78, %v407, 0
    %v829 = vsel %vm78, %v412, 0
    %v832 = vsel %vm78, %v417, 0
    %v835 = vsel %vm78, %v422, 0
    %v838 = vsel %vm78, %v427, 0
    %v841 = vsel %vm78, %v432, 0
    %v844 = vsel %vm78, %v437, 0
    %v847 = vsel %vm78, %v442, 0
    %v850 = vsel %vm78, %v447, 0
    %v853 = vsel %vm78, %v452, 0
    %v856 = vsel %vm78, %v457, 0
    %v859 = vsel %vm78, %v462, 0
    %v862 = vsel %vm78, %v467, 0
    %v865 = vsel %vm78, %v472, 0
    %v868 = vsel %vm78, %v477, 0
    %870 = vmatprep.subr.mxu0 0.0
    %871 = vmatpush1.xpose.msra.mxu0 %v823
    %872 = vmatprep.subr.mxu0 0.0
    %873 = vmatpush1.xpose.msra.mxu0 %v826
    %874 = vmatprep.subr.mxu0 0.0
    %875 = vmatpush1.xpose.msra.mxu0 %v829
    %876 = vmatprep.subr.mxu0 0.0
    %877 = vmatpush1.xpose.msra.mxu0 %v832
    %878 = vmatprep.subr.mxu0 0.0
    %879 = vmatpush1.xpose.msra.mxu0 %v835
    %880 = vmatprep.subr.mxu0 0.0
    %881 = vmatpush1.xpose.msra.mxu0 %v838
    %882 = vmatprep.subr.mxu0 0.0
    %883 = vmatpush1.xpose.msra.mxu0 %v841
    %884 = vmatprep.subr.mxu0 0.0
    %885 = vmatpush1.xpose.msra.mxu0 %v844
    %886 = vmatprep.subr.mxu0 0.0
    %887 = vmatpush1.xpose.msra.mxu0 %v847
    %888 = vmatprep.subr.mxu0 0.0
    %889 = vmatpush1.xpose.msra.mxu0 %v850
    %890 = vmatprep.subr.mxu0 0.0
    %891 = vmatpush1.xpose.msra.mxu0 %v853
    %892 = vmatprep.subr.mxu0 0.0
    %893 = vmatpush1.xpose.msra.mxu0 %v856
    %894 = vmatprep.subr.mxu0 0.0
    %895 = vmatpush1.xpose.msra.mxu0 %v859
    %896 = vmatprep.subr.mxu0 0.0
    %897 = vmatpush1.xpose.msra.mxu0 %v862
    %898 = vmatprep.subr.mxu0 0.0
    %899 = vmatpush1.xpose.msra.mxu0 %v865
    %900 = vmatprep.subr.mxu0 0.0
    %901 = vmatpush1.xpose.msra.mxu0 %v868
    %902 = vmatprep.subr.mxu0 0.0
    %903 = vmatpush1.xpose.msra.mxu0 0.0
    %904 = vmatprep.subr.mxu0 0.0
    %905 = vmatpush1.xpose.msra.mxu0 0.0
    %906 = vmatprep.subr.mxu0 0.0
    %907 = vmatpush1.xpose.msra.mxu0 0.0
    %908 = vmatprep.subr.mxu0 0.0
    %909 = vmatpush1.xpose.msra.mxu0 0.0
    %910 = vmatprep.subr.mxu0 0.0
    %911 = vmatpush1.xpose.msra.mxu0 0.0
    %912 = vmatprep.subr.mxu0 0.0
    %913 = vmatpush1.xpose.msra.mxu0 0.0
    %914 = vmatprep.subr.mxu0 0.0
    %915 = vmatpush1.xpose.msra.mxu0 0.0
    %916 = vmatprep.subr.mxu0 0.0
    %917 = vmatpush1.xpose.msra.mxu0 0.0
    %918 = vmatprep.subr.mxu0 0.0
    %919 = vmatpush1.xpose.msra.mxu0 0.0
    %920 = vmatprep.subr.mxu0 0.0
    %921 = vmatpush1.xpose.msra.mxu0 0.0
    %922 = vmatprep.subr.mxu0 0.0
    %923 = vmatpush1.xpose.msra.mxu0 0.0
    %924 = vmatprep.subr.mxu0 0.0
    %925 = vmatpush1.xpose.msra.mxu0 0.0
    %926 = vmatprep.subr.mxu0 0.0
    %927 = vmatpush1.xpose.msra.mxu0 0.0
    %928 = vmatprep.subr.mxu0 0.0
    %929 = vmatpush1.xpose.msra.mxu0 0.0
    %930 = vmatprep.subr.mxu0 0.0
    %931 = vmatpush1.xpose.msra.mxu0 0.0
    %932 = vmatprep.subr.mxu0 0.0
    %933 = vmatpush1.xpose.msra.mxu0 0.0
    %934 = vmatprep.mubr.f32.mxu0 0.0
    %935 = vmatmul.mubr.f32.gmra.mrb[0].mxu0 %v820
    %v936 = vpop.f32.mrb[0].mxu0
    %v937 = vadd.f32 0.0, %v936
    %v938 = vpop.f32.mrb[0].mxu0
    %939 = vdwg.mxu0
    %v942 = vrot.slane %v937, 7
    %vm943 = vcmask 1041409
    %v944 = vsel %vm943, %v942, %v811
    %v946 = vsel %vm488, %v944, -1e+30
    %vm947 = vcmask 1041408
    %v948 = vsel %vm947, %v946, -inf
    %949 = vmax.xlane.f32.xlu0 %v948
    %v950 = vpop.xlane.xlu0 %949
    %vm951 = vcmp.ge.f32.partialorder %v946, %v950
    %v952 = vsel %vm951, %v487, 128
    %v953 = vsel %vm947, %v952, 2147483647
    %v954 = vand.u32 %v953, 65535
    %v955 = vshra.s32 %v953, 16
    %v956 = vcvt.s32.f32 %v954
    %v957 = vcvt.s32.f32 %v955
    %958 = vmin.xlane.f32.xlu0 %v957
    %v959 = vpop.xlane.xlu0 %958
    %vm960 = vcmp.eq.f32.partialorder %v957, %v959
    %v961 = vsel %vm960, %v956, inf
    %962 = vmin.xlane.f32.xlu0 %v961
    %v963 = vpop.xlane.xlu0 %962
    %v964 = vcvt.f32.s32 %v963
    %v965 = vcvt.f32.s32 %v959
    %v966 = vshll.u32 %v965, 16
    %v967 = vadd.s32 %v966, %v964
    %vm968 = vcmp.eq.s32.totalorder %v487, %v967
    %v969 = vsel %vm968, 1, 0
    %v970 = vcvt.s32.f32 %v969
    %v973 = vunpack.c.l.s4 1966171168
    %v974 = vunpack.c.0.s8 %v973
    %v975 = vlaneseq
    %v976 = vshrl.u32 %v975, 7
    %v977 = vsub.s32 %v974, %v976
    %v978 = vrot.slane %v970, %v977
    %v979 = vcombine.high %v978, %v978
    %v981 = vunpack.c.l.s4 1966171168
    %v982 = vunpack.c.0.s8 %v981
    %v983 = vlaneseq
    %v984 = vshrl.u32 %v983, 7
    %v985 = vsub.s32 %v982, %v984
    %v986 = vrot.slane %v978, %v985
    %v988 = vunpack.c.l.s4 1966171168
    %v989 = vunpack.c.0.s8 %v988
    %v990 = vlaneseq
    %v991 = vshrl.u32 %v990, 7
    %v992 = vsub.s32 %v989, %v991
    %v993 = vrot.slane %v979, %v992
    %996 = vmatprep.subr.mxu0 0.0
    %997 = vmatpush1.msra.mxu0 %v34
    %998 = vmatprep.subr.mxu0 0.0
    %999 = vmatpush1.msra.mxu0 %v35
    %1000 = vmatprep.subr.mxu0 0.0
    %1001 = vmatpush1.msra.mxu0 %v36
    %1002 = vmatprep.subr.mxu0 0.0
    %1003 = vmatpush1.msra.mxu0 %v37
    %1004 = vmatprep.subr.mxu0 0.0
    %1005 = vmatpush1.msra.mxu0 %v38
    %1006 = vmatprep.subr.mxu0 0.0
    %1007 = vmatpush1.msra.mxu0 %v39
    %1008 = vmatprep.subr.mxu0 0.0
    %1009 = vmatpush1.msra.mxu0 %v40
    %1010 = vmatprep.subr.mxu0 0.0
    %1011 = vmatpush1.msra.mxu0 %v41
    %1012 = vmatprep.subr.mxu0 0.0
    %1013 = vmatpush1.msra.mxu0 %v42
    %1014 = vmatprep.subr.mxu0 0.0
    %1015 = vmatpush1.msra.mxu0 %v43
    %1016 = vmatprep.subr.mxu0 0.0
    %1017 = vmatpush1.msra.mxu0 %v44
    %1018 = vmatprep.subr.mxu0 0.0
    %1019 = vmatpush1.msra.mxu0 %v45
    %1020 = vmatprep.subr.mxu0 0.0
    %1021 = vmatpush1.msra.mxu0 %v46
    %1022 = vmatprep.subr.mxu0 0.0
    %1023 = vmatpush1.msra.mxu0 %v47
    %1024 = vmatprep.subr.mxu0 0.0
    %1025 = vmatpush1.msra.mxu0 %v48
    %1026 = vmatprep.subr.mxu0 0.0
    %1027 = vmatpush1.msra.mxu0 %v49
    %1028 = vmatprep.subr.mxu0 0.0
    %1029 = vmatpush1.msra.mxu0 0.0
    %1030 = vmatprep.subr.mxu0 0.0
    %1031 = vmatpush1.msra.mxu0 0.0
    %1032 = vmatprep.subr.mxu0 0.0
    %1033 = vmatpush1.msra.mxu0 0.0
    %1034 = vmatprep.subr.mxu0 0.0
    %1035 = vmatpush1.msra.mxu0 0.0
    %1036 = vmatprep.subr.mxu0 0.0
    %1037 = vmatpush1.msra.mxu0 0.0
    %1038 = vmatprep.subr.mxu0 0.0
    %1039 = vmatpush1.msra.mxu0 0.0
    %1040 = vmatprep.subr.mxu0 0.0
    %1041 = vmatpush1.msra.mxu0 0.0
    %1042 = vmatprep.subr.mxu0 0.0
    %1043 = vmatpush1.msra.mxu0 0.0
    %1044 = vmatprep.subr.mxu0 0.0
    %1045 = vmatpush1.msra.mxu0 0.0
    %1046 = vmatprep.subr.mxu0 0.0
    %1047 = vmatpush1.msra.mxu0 0.0
    %1048 = vmatprep.subr.mxu0 0.0
    %1049 = vmatpush1.msra.mxu0 0.0
    %1050 = vmatprep.subr.mxu0 0.0
    %1051 = vmatpush1.msra.mxu0 0.0
    %1052 = vmatprep.subr.mxu0 0.0
    %1053 = vmatpush1.msra.mxu0 0.0
    %1054 = vmatprep.subr.mxu0 0.0
    %1055 = vmatpush1.msra.mxu0 0.0
    %1056 = vmatprep.subr.mxu0 0.0
    %1057 = vmatpush1.msra.mxu0 0.0
    %1058 = vmatprep.subr.mxu0 0.0
    %1059 = vmatpush1.msra.mxu0 0.0
    %1060 = vmatprep.mubr.f32.mxu0 0.0
    %1061 = vmatmul.mubr.f32.gmra.mrb[0].mxu0 %v986
    %v1062 = vpop.f32.mrb[0].mxu0
    %v1063 = vadd.f32 0.0, %v1062
    %v1064 = vpop.f32.mrb[0].mxu0
    %1065 = vdwg.mxu0
    %1066 = vmatprep.subr.mxu0 0.0
    %1067 = vmatpush1.msra.mxu0 %v50
    %1068 = vmatprep.subr.mxu0 0.0
    %1069 = vmatpush1.msra.mxu0 %v51
    %1070 = vmatprep.subr.mxu0 0.0
    %1071 = vmatpush1.msra.mxu0 %v52
    %1072 = vmatprep.subr.mxu0 0.0
    %1073 = vmatpush1.msra.mxu0 %v53
    %1074 = vmatprep.subr.mxu0 0.0
    %1075 = vmatpush1.msra.mxu0 %v54
    %1076 = vmatprep.subr.mxu0 0.0
    %1077 = vmatpush1.msra.mxu0 %v55
    %1078 = vmatprep.subr.mxu0 0.0
    %1079 = vmatpush1.msra.mxu0 %v56
    %1080 = vmatprep.subr.mxu0 0.0
    %1081 = vmatpush1.msra.mxu0 %v57
    %1082 = vmatprep.subr.mxu0 0.0
    %1083 = vmatpush1.msra.mxu0 %v58
    %1084 = vmatprep.subr.mxu0 0.0
    %1085 = vmatpush1.msra.mxu0 %v59
    %1086 = vmatprep.subr.mxu0 0.0
    %1087 = vmatpush1.msra.mxu0 %v60
    %1088 = vmatprep.subr.mxu0 0.0
    %1089 = vmatpush1.msra.mxu0 %v61
    %1090 = vmatprep.subr.mxu0 0.0
    %1091 = vmatpush1.msra.mxu0 %v62
    %1092 = vmatprep.subr.mxu0 0.0
    %1093 = vmatpush1.msra.mxu0 %v63
    %1094 = vmatprep.subr.mxu0 0.0
    %1095 = vmatpush1.msra.mxu0 %v64
    %1096 = vmatprep.subr.mxu0 0.0
    %1097 = vmatpush1.msra.mxu0 %v65
    %1098 = vmatprep.subr.mxu0 0.0
    %1099 = vmatpush1.msra.mxu0 0.0
    %1100 = vmatprep.subr.mxu0 0.0
    %1101 = vmatpush1.msra.mxu0 0.0
    %1102 = vmatprep.subr.mxu0 0.0
    %1103 = vmatpush1.msra.mxu0 0.0
    %1104 = vmatprep.subr.mxu0 0.0
    %1105 = vmatpush1.msra.mxu0 0.0
    %1106 = vmatprep.subr.mxu0 0.0
    %1107 = vmatpush1.msra.mxu0 0.0
    %1108 = vmatprep.subr.mxu0 0.0
    %1109 = vmatpush1.msra.mxu0 0.0
    %1110 = vmatprep.subr.mxu0 0.0
    %1111 = vmatpush1.msra.mxu0 0.0
    %1112 = vmatprep.subr.mxu0 0.0
    %1113 = vmatpush1.msra.mxu0 0.0
    %1114 = vmatprep.subr.mxu0 0.0
    %1115 = vmatpush1.msra.mxu0 0.0
    %1116 = vmatprep.subr.mxu0 0.0
    %1117 = vmatpush1.msra.mxu0 0.0
    %1118 = vmatprep.subr.mxu0 0.0
    %1119 = vmatpush1.msra.mxu0 0.0
    %1120 = vmatprep.subr.mxu0 0.0
    %1121 = vmatpush1.msra.mxu0 0.0
    %1122 = vmatprep.subr.mxu0 0.0
    %1123 = vmatpush1.msra.mxu0 0.0
    %1124 = vmatprep.subr.mxu0 0.0
    %1125 = vmatpush1.msra.mxu0 0.0
    %1126 = vmatprep.subr.mxu0 0.0
    %1127 = vmatpush1.msra.mxu0 0.0
    %1128 = vmatprep.subr.mxu0 0.0
    %1129 = vmatpush1.msra.mxu0 0.0
    %1130 = vmatprep.mubr.f32.mxu0 0.0
    %1131 = vmatmul.mubr.f32.gmra.mrb[0].mxu0 %v993
    %v1132 = vpop.f32.mrb[0].mxu0
    %v1133 = vadd.f32 0.0, %v1132
    %v1134 = vpop.f32.mrb[0].mxu0
    %1135 = vdwg.mxu0
    %1136 = vrot.lane.b32.xlu0 %v664, 64
    %v1137 = vpop.permute.xlu0 %1136
    %v1138 = vsel %vm78, %v1137, 0
    %1140 = vmatprep.subr.mxu0 0.0
    %1141 = vmatpush1.msra.mxu0 %v482
    %1142 = vmatprep.subr.mxu0 0.0
    %1143 = vmatpush1.msra.mxu0 %v483
    %1144 = vmatprep.subr.mxu0 0.0
    %1145 = vmatpush1.msra.mxu0 %v484
    %1146 = vmatprep.subr.mxu0 0.0
    %1147 = vmatpush1.msra.mxu0 %v485
    %1148 = vmatprep.subr.mxu0 0.0
    %1149 = vmatpush1.msra.mxu0 0.0
    %1150 = vmatprep.subr.mxu0 0.0
    %1151 = vmatpush1.msra.mxu0 0.0
    %1152 = vmatprep.subr.mxu0 0.0
    %1153 = vmatpush1.msra.mxu0 0.0
    %1154 = vmatprep.subr.mxu0 0.0
    %1155 = vmatpush1.msra.mxu0 0.0
    %1156 = vmatprep.subr.mxu0 0.0
    %1157 = vmatpush1.msra.mxu0 0.0
    %1158 = vmatprep.subr.mxu0 0.0
    %1159 = vmatpush1.msra.mxu0 0.0
    %1160 = vmatprep.subr.mxu0 0.0
    %1161 = vmatpush1.msra.mxu0 0.0
    %1162 = vmatprep.subr.mxu0 0.0
    %1163 = vmatpush1.msra.mxu0 0.0
    %1164 = vmatprep.subr.mxu0 0.0
    %1165 = vmatpush1.msra.mxu0 0.0
    %1166 = vmatprep.subr.mxu0 0.0
    %1167 = vmatpush1.msra.mxu0 0.0
    %1168 = vmatprep.subr.mxu0 0.0
    %1169 = vmatpush1.msra.mxu0 0.0
    %1170 = vmatprep.subr.mxu0 0.0
    %1171 = vmatpush1.msra.mxu0 0.0
    %1172 = vmatprep.subr.mxu0 0.0
    %1173 = vmatpush1.msra.mxu0 0.0
    %1174 = vmatprep.subr.mxu0 0.0
    %1175 = vmatpush1.msra.mxu0 0.0
    %1176 = vmatprep.subr.mxu0 0.0
    %1177 = vmatpush1.msra.mxu0 0.0
    %1178 = vmatprep.subr.mxu0 0.0
    %1179 = vmatpush1.msra.mxu0 0.0
    %1180 = vmatprep.subr.mxu0 0.0
    %1181 = vmatpush1.msra.mxu0 0.0
    %1182 = vmatprep.subr.mxu0 0.0
    %1183 = vmatpush1.msra.mxu0 0.0
    %1184 = vmatprep.subr.mxu0 0.0
    %1185 = vmatpush1.msra.mxu0 0.0
    %1186 = vmatprep.subr.mxu0 0.0
    %1187 = vmatpush1.msra.mxu0 0.0
    %1188 = vmatprep.subr.mxu0 0.0
    %1189 = vmatpush1.msra.mxu0 0.0
    %1190 = vmatprep.subr.mxu0 0.0
    %1191 = vmatpush1.msra.mxu0 0.0
    %1192 = vmatprep.subr.mxu0 0.0
    %1193 = vmatpush1.msra.mxu0 0.0
    %1194 = vmatprep.subr.mxu0 0.0
    %1195 = vmatpush1.msra.mxu0 0.0
    %1196 = vmatprep.subr.mxu0 0.0
    %1197 = vmatpush1.msra.mxu0 0.0
    %1198 = vmatprep.subr.mxu0 0.0
    %1199 = vmatpush1.msra.mxu0 0.0
    %1200 = vmatprep.subr.mxu0 0.0
    %1201 = vmatpush1.msra.mxu0 0.0
    %1202 = vmatprep.subr.mxu0 0.0
    %1203 = vmatpush1.msra.mxu0 0.0
    %1204 = vmatprep.mubr.f32.mxu0 0.0
    %1205 = vmatmul.mubr.f32.gmra.mrb[0].mxu0 %v1138
    %v1206 = vpop.f32.mrb[0].mxu0
    %v1207 = vadd.f32 0.0, %v1206
    %v1208 = vpop.f32.mrb[0].mxu0
    %1209 = vdwg.mxu0
    %v1212 = vrot.slane %v1133, 7
    %v1213 = vsel %vm943, %v1212, %v1063
    %v1214 = vsel %vm566, %v1213, 0
    %1216 = vmatprep.subr.mxu0 0.0
    %1217 = vmatpush1.msra.mxu0 %v480
    %1218 = vmatprep.subr.mxu0 0.0
    %1219 = vmatpush1.msra.mxu0 %v481
    %1220 = vmatprep.subr.mxu0 0.0
    %1221 = vmatpush1.msra.mxu0 0.0
    %1222 = vmatprep.subr.mxu0 0.0
    %1223 = vmatpush1.msra.mxu0 0.0
    %1224 = vmatprep.subr.mxu0 0.0
    %1225 = vmatpush1.msra.mxu0 0.0
    %1226 = vmatprep.subr.mxu0 0.0
    %1227 = vmatpush1.msra.mxu0 0.0
    %1228 = vmatprep.subr.mxu0 0.0
    %1229 = vmatpush1.msra.mxu0 0.0
    %1230 = vmatprep.subr.mxu0 0.0
    %1231 = vmatpush1.msra.mxu0 0.0
    %1232 = vmatprep.subr.mxu0 0.0
    %1233 = vmatpush1.msra.mxu0 0.0
    %1234 = vmatprep.subr.mxu0 0.0
    %1235 = vmatpush1.msra.mxu0 0.0
    %1236 = vmatprep.subr.mxu0 0.0
    %1237 = vmatpush1.msra.mxu0 0.0
    %1238 = vmatprep.subr.mxu0 0.0
    %1239 = vmatpush1.msra.mxu0 0.0
    %1240 = vmatprep.subr.mxu0 0.0
    %1241 = vmatpush1.msra.mxu0 0.0
    %1242 = vmatprep.subr.mxu0 0.0
    %1243 = vmatpush1.msra.mxu0 0.0
    %1244 = vmatprep.subr.mxu0 0.0
    %1245 = vmatpush1.msra.mxu0 0.0
    %1246 = vmatprep.subr.mxu0 0.0
    %1247 = vmatpush1.msra.mxu0 0.0
    %1248 = vmatprep.subr.mxu0 0.0
    %1249 = vmatpush1.msra.mxu0 0.0
    %1250 = vmatprep.subr.mxu0 0.0
    %1251 = vmatpush1.msra.mxu0 0.0
    %1252 = vmatprep.subr.mxu0 0.0
    %1253 = vmatpush1.msra.mxu0 0.0
    %1254 = vmatprep.subr.mxu0 0.0
    %1255 = vmatpush1.msra.mxu0 0.0
    %1256 = vmatprep.subr.mxu0 0.0
    %1257 = vmatpush1.msra.mxu0 0.0
    %1258 = vmatprep.subr.mxu0 0.0
    %1259 = vmatpush1.msra.mxu0 0.0
    %1260 = vmatprep.subr.mxu0 0.0
    %1261 = vmatpush1.msra.mxu0 0.0
    %1262 = vmatprep.subr.mxu0 0.0
    %1263 = vmatpush1.msra.mxu0 0.0
    %1264 = vmatprep.subr.mxu0 0.0
    %1265 = vmatpush1.msra.mxu0 0.0
    %1266 = vmatprep.subr.mxu0 0.0
    %1267 = vmatpush1.msra.mxu0 0.0
    %1268 = vmatprep.subr.mxu0 0.0
    %1269 = vmatpush1.msra.mxu0 0.0
    %1270 = vmatprep.subr.mxu0 0.0
    %1271 = vmatpush1.msra.mxu0 0.0
    %1272 = vmatprep.subr.mxu0 0.0
    %1273 = vmatpush1.msra.mxu0 0.0
    %1274 = vmatprep.subr.mxu0 0.0
    %1275 = vmatpush1.msra.mxu0 0.0
    %1276 = vmatprep.subr.mxu0 0.0
    %1277 = vmatpush1.msra.mxu0 0.0
    %1278 = vmatprep.subr.mxu0 0.0
    %1279 = vmatpush1.msra.mxu0 0.0
    %1280 = vmatprep.mubr.f32.mxu0 0.0
    %1281 = vmatmul.mubr.f32.gmra.mrb[0].mxu0 %v1214
    %v1282 = vpop.f32.mrb[0].mxu0
    %v1283 = vadd.f32 %v1207, %v1282
    %v1284 = vpop.f32.mrb[0].mxu0
    %1285 = vdwg.mxu0
    %v1286 = vadd.f32 %v1283, %v149
    %v1287 = vxor.u32 %v1286, 2147483648
    %v1288 = vmul.f32 %v1287, 1.442695
    %v1289 = vpow.pop %v1288
    %v1290 = vadd.f32 %v1289, 1.0
    %v1291 = vrcp.pop %v1290
    %v1292 = vmul.f32 1.0, %v1291
    %v1293 = vtanh.pop %v1286
    %v1294 = vmul.f32 %v1292, %v658
    %1296 = vrot.lane.b32.xlu0 %v1293, 32
    %v1297 = vpop.permute.xlu0 %1296
    %v1299 = vmul.f32 %v1292, %v1297
    %1301 = vrot.lane.b32.xlu0 %v1299, 32
    %v1302 = vpop.permute.xlu0 %1301
    %v1304 = vadd.f32 %v1294, %v1302
    %v1305 = vtanh.pop %v1304
    %1307 = vrot.lane.b32.xlu0 %v1305, 32
    %v1308 = vpop.permute.xlu0 %1307
    %v1310 = vmul.f32 %v1292, %v1308
    %v1313 = vunpack.c.l.s4 1966171168
    %v1314 = vunpack.c.0.s8 %v1313
    %v1315 = vlaneseq
    %v1316 = vshrl.u32 %v1315, 7
    %v1317 = vsub.s32 %v1314, %v1316
    %v1318 = vrot.slane %v1310, %v1317
    %v1319 = vcombine.high %v1318, %v1318
    %v1321 = vunpack.c.l.s4 1966171168
    %v1322 = vunpack.c.0.s8 %v1321
    %v1323 = vlaneseq
    %v1324 = vshrl.u32 %v1323, 7
    %v1325 = vsub.s32 %v1322, %v1324
    %v1326 = vrot.slane %v1318, %v1325
    %v1328 = vunpack.c.l.s4 1966171168
    %v1329 = vunpack.c.0.s8 %v1328
    %v1330 = vlaneseq
    %v1331 = vshrl.u32 %v1330, 7
    %v1332 = vsub.s32 %v1329, %v1331
    %v1333 = vrot.slane %v1319, %v1332
    %v1334 = vlaneseq
    %v1335 = vshrl.u32 %v1334, 7
    %v1336 = vsub.s32 0, %v1335
    %v1337 = vrot.slane %v1326, %v1336
    %1338 = vrot.lane.b32.xlu0 %v1337, 64
    %v1339 = vpop.permute.xlu0 %1338
    %v1340 = vsel %vm78, %v1339, 0
    %1342 = vmatprep.subr.mxu0 0.0
    %1343 = vmatpush1.xpose.msra.mxu0 %v697
    %1344 = vmatprep.subr.mxu0 0.0
    %1345 = vmatpush1.xpose.msra.mxu0 %v700
    %1346 = vmatprep.subr.mxu0 0.0
    %1347 = vmatpush1.xpose.msra.mxu0 %v703
    %1348 = vmatprep.subr.mxu0 0.0
    %1349 = vmatpush1.xpose.msra.mxu0 %v706
    %1350 = vmatprep.subr.mxu0 0.0
    %1351 = vmatpush1.xpose.msra.mxu0 %v709
    %1352 = vmatprep.subr.mxu0 0.0
    %1353 = vmatpush1.xpose.msra.mxu0 %v712
    %1354 = vmatprep.subr.mxu0 0.0
    %1355 = vmatpush1.xpose.msra.mxu0 %v715
    %1356 = vmatprep.subr.mxu0 0.0
    %1357 = vmatpush1.xpose.msra.mxu0 %v718
    %1358 = vmatprep.subr.mxu0 0.0
    %1359 = vmatpush1.xpose.msra.mxu0 %v721
    %1360 = vmatprep.subr.mxu0 0.0
    %1361 = vmatpush1.xpose.msra.mxu0 %v724
    %1362 = vmatprep.subr.mxu0 0.0
    %1363 = vmatpush1.xpose.msra.mxu0 %v727
    %1364 = vmatprep.subr.mxu0 0.0
    %1365 = vmatpush1.xpose.msra.mxu0 %v730
    %1366 = vmatprep.subr.mxu0 0.0
    %1367 = vmatpush1.xpose.msra.mxu0 %v733
    %1368 = vmatprep.subr.mxu0 0.0
    %1369 = vmatpush1.xpose.msra.mxu0 %v736
    %1370 = vmatprep.subr.mxu0 0.0
    %1371 = vmatpush1.xpose.msra.mxu0 %v739
    %1372 = vmatprep.subr.mxu0 0.0
    %1373 = vmatpush1.xpose.msra.mxu0 %v742
    %1374 = vmatprep.subr.mxu0 0.0
    %1375 = vmatpush1.xpose.msra.mxu0 0.0
    %1376 = vmatprep.subr.mxu0 0.0
    %1377 = vmatpush1.xpose.msra.mxu0 0.0
    %1378 = vmatprep.subr.mxu0 0.0
    %1379 = vmatpush1.xpose.msra.mxu0 0.0
    %1380 = vmatprep.subr.mxu0 0.0
    %1381 = vmatpush1.xpose.msra.mxu0 0.0
    %1382 = vmatprep.subr.mxu0 0.0
    %1383 = vmatpush1.xpose.msra.mxu0 0.0
    %1384 = vmatprep.subr.mxu0 0.0
    %1385 = vmatpush1.xpose.msra.mxu0 0.0
    %1386 = vmatprep.subr.mxu0 0.0
    %1387 = vmatpush1.xpose.msra.mxu0 0.0
    %1388 = vmatprep.subr.mxu0 0.0
    %1389 = vmatpush1.xpose.msra.mxu0 0.0
    %1390 = vmatprep.subr.mxu0 0.0
    %1391 = vmatpush1.xpose.msra.mxu0 0.0
    %1392 = vmatprep.subr.mxu0 0.0
    %1393 = vmatpush1.xpose.msra.mxu0 0.0
    %1394 = vmatprep.subr.mxu0 0.0
    %1395 = vmatpush1.xpose.msra.mxu0 0.0
    %1396 = vmatprep.subr.mxu0 0.0
    %1397 = vmatpush1.xpose.msra.mxu0 0.0
    %1398 = vmatprep.subr.mxu0 0.0
    %1399 = vmatpush1.xpose.msra.mxu0 0.0
    %1400 = vmatprep.subr.mxu0 0.0
    %1401 = vmatpush1.xpose.msra.mxu0 0.0
    %1402 = vmatprep.subr.mxu0 0.0
    %1403 = vmatpush1.xpose.msra.mxu0 0.0
    %1404 = vmatprep.subr.mxu0 0.0
    %1405 = vmatpush1.xpose.msra.mxu0 0.0
    %1406 = vmatprep.mubr.f32.mxu0 0.0
    %1407 = vmatmul.mubr.f32.gmra.mrb[0].mxu0 %v1340
    %v1408 = vpop.f32.mrb[0].mxu0
    %v1409 = vadd.f32 0.0, %v1408
    %v1410 = vpop.f32.mrb[0].mxu0
    %1411 = vdwg.mxu0
    %v1412 = vlaneseq
    %v1413 = vshrl.u32 %v1412, 7
    %v1414 = vsub.s32 0, %v1413
    %v1415 = vrot.slane %v1333, %v1414
    %1416 = vrot.lane.b32.xlu0 %v1415, 64
    %v1417 = vpop.permute.xlu0 %1416
    %v1418 = vsel %vm78, %v1417, 0
    %1420 = vmatprep.subr.mxu0 0.0
    %1421 = vmatpush1.xpose.msra.mxu0 %v823
    %1422 = vmatprep.subr.mxu0 0.0
    %1423 = vmatpush1.xpose.msra.mxu0 %v826
    %1424 = vmatprep.subr.mxu0 0.0
    %1425 = vmatpush1.xpose.msra.mxu0 %v829
    %1426 = vmatprep.subr.mxu0 0.0
    %1427 = vmatpush1.xpose.msra.mxu0 %v832
    %1428 = vmatprep.subr.mxu0 0.0
    %1429 = vmatpush1.xpose.msra.mxu0 %v835
    %1430 = vmatprep.subr.mxu0 0.0
    %1431 = vmatpush1.xpose.msra.mxu0 %v838
    %1432 = vmatprep.subr.mxu0 0.0
    %1433 = vmatpush1.xpose.msra.mxu0 %v841
    %1434 = vmatprep.subr.mxu0 0.0
    %1435 = vmatpush1.xpose.msra.mxu0 %v844
    %1436 = vmatprep.subr.mxu0 0.0
    %1437 = vmatpush1.xpose.msra.mxu0 %v847
    %1438 = vmatprep.subr.mxu0 0.0
    %1439 = vmatpush1.xpose.msra.mxu0 %v850
    %1440 = vmatprep.subr.mxu0 0.0
    %1441 = vmatpush1.xpose.msra.mxu0 %v853
    %1442 = vmatprep.subr.mxu0 0.0
    %1443 = vmatpush1.xpose.msra.mxu0 %v856
    %1444 = vmatprep.subr.mxu0 0.0
    %1445 = vmatpush1.xpose.msra.mxu0 %v859
    %1446 = vmatprep.subr.mxu0 0.0
    %1447 = vmatpush1.xpose.msra.mxu0 %v862
    %1448 = vmatprep.subr.mxu0 0.0
    %1449 = vmatpush1.xpose.msra.mxu0 %v865
    %1450 = vmatprep.subr.mxu0 0.0
    %1451 = vmatpush1.xpose.msra.mxu0 %v868
    %1452 = vmatprep.subr.mxu0 0.0
    %1453 = vmatpush1.xpose.msra.mxu0 0.0
    %1454 = vmatprep.subr.mxu0 0.0
    %1455 = vmatpush1.xpose.msra.mxu0 0.0
    %1456 = vmatprep.subr.mxu0 0.0
    %1457 = vmatpush1.xpose.msra.mxu0 0.0
    %1458 = vmatprep.subr.mxu0 0.0
    %1459 = vmatpush1.xpose.msra.mxu0 0.0
    %1460 = vmatprep.subr.mxu0 0.0
    %1461 = vmatpush1.xpose.msra.mxu0 0.0
    %1462 = vmatprep.subr.mxu0 0.0
    %1463 = vmatpush1.xpose.msra.mxu0 0.0
    %1464 = vmatprep.subr.mxu0 0.0
    %1465 = vmatpush1.xpose.msra.mxu0 0.0
    %1466 = vmatprep.subr.mxu0 0.0
    %1467 = vmatpush1.xpose.msra.mxu0 0.0
    %1468 = vmatprep.subr.mxu0 0.0
    %1469 = vmatpush1.xpose.msra.mxu0 0.0
    %1470 = vmatprep.subr.mxu0 0.0
    %1471 = vmatpush1.xpose.msra.mxu0 0.0
    %1472 = vmatprep.subr.mxu0 0.0
    %1473 = vmatpush1.xpose.msra.mxu0 0.0
    %1474 = vmatprep.subr.mxu0 0.0
    %1475 = vmatpush1.xpose.msra.mxu0 0.0
    %1476 = vmatprep.subr.mxu0 0.0
    %1477 = vmatpush1.xpose.msra.mxu0 0.0
    %1478 = vmatprep.subr.mxu0 0.0
    %1479 = vmatpush1.xpose.msra.mxu0 0.0
    %1480 = vmatprep.subr.mxu0 0.0
    %1481 = vmatpush1.xpose.msra.mxu0 0.0
    %1482 = vmatprep.subr.mxu0 0.0
    %1483 = vmatpush1.xpose.msra.mxu0 0.0
    %1484 = vmatprep.mubr.f32.mxu0 0.0
    %1485 = vmatmul.mubr.f32.gmra.mrb[0].mxu0 %v1418
    %v1486 = vpop.f32.mrb[0].mxu0
    %v1487 = vadd.f32 0.0, %v1486
    %v1488 = vpop.f32.mrb[0].mxu0
    %1489 = vdwg.mxu0
    %v1492 = vrot.slane %v1487, 7
    %v1493 = vsel %vm943, %v1492, %v1409
    %v1495 = vsel %vm488, %v1493, -1e+30
    %v1496 = vsel %vm947, %v1495, -inf
    %1497 = vmax.xlane.f32.xlu0 %v1496
    %v1498 = vpop.xlane.xlu0 %1497
    %vm1499 = vcmp.ge.f32.partialorder %v1495, %v1498
    %v1500 = vsel %vm1499, %v487, 128
    %v1501 = vsel %vm947, %v1500, 2147483647
    %v1502 = vand.u32 %v1501, 65535
    %v1503 = vshra.s32 %v1501, 16
    %v1504 = vcvt.s32.f32 %v1502
    %v1505 = vcvt.s32.f32 %v1503
    %1506 = vmin.xlane.f32.xlu0 %v1505
    %v1507 = vpop.xlane.xlu0 %1506
    %vm1508 = vcmp.eq.f32.partialorder %v1505, %v1507
    %v1509 = vsel %vm1508, %v1504, inf
    %1510 = vmin.xlane.f32.xlu0 %v1509
    %v1511 = vpop.xlane.xlu0 %1510
    %v1512 = vcvt.f32.s32 %v1511
    %v1513 = vcvt.f32.s32 %v1507
    %v1514 = vshll.u32 %v1513, 16
    %v1515 = vadd.s32 %v1514, %v1512
    %vm1516 = vcmp.eq.s32.totalorder %v487, %v1515
    %v1517 = vsel %vm1516, 1, 0
    %v1518 = vcvt.s32.f32 %v1517
    %v1521 = vunpack.c.l.s4 1966171168
    %v1522 = vunpack.c.0.s8 %v1521
    %v1523 = vlaneseq
    %v1524 = vshrl.u32 %v1523, 7
    %v1525 = vsub.s32 %v1522, %v1524
    %v1526 = vrot.slane %v1518, %v1525
    %v1527 = vcombine.high %v1526, %v1526
    %v1529 = vunpack.c.l.s4 1966171168
    %v1530 = vunpack.c.0.s8 %v1529
    %v1531 = vlaneseq
    %v1532 = vshrl.u32 %v1531, 7
    %v1533 = vsub.s32 %v1530, %v1532
    %v1534 = vrot.slane %v1526, %v1533
    %v1536 = vunpack.c.l.s4 1966171168
    %v1537 = vunpack.c.0.s8 %v1536
    %v1538 = vlaneseq
    %v1539 = vshrl.u32 %v1538, 7
    %v1540 = vsub.s32 %v1537, %v1539
    %v1541 = vrot.slane %v1527, %v1540
    %1544 = vmatprep.subr.mxu0 0.0
    %1545 = vmatpush1.msra.mxu0 %v34
    %1546 = vmatprep.subr.mxu0 0.0
    %1547 = vmatpush1.msra.mxu0 %v35
    %1548 = vmatprep.subr.mxu0 0.0
    %1549 = vmatpush1.msra.mxu0 %v36
    %1550 = vmatprep.subr.mxu0 0.0
    %1551 = vmatpush1.msra.mxu0 %v37
    %1552 = vmatprep.subr.mxu0 0.0
    %1553 = vmatpush1.msra.mxu0 %v38
    %1554 = vmatprep.subr.mxu0 0.0
    %1555 = vmatpush1.msra.mxu0 %v39
    %1556 = vmatprep.subr.mxu0 0.0
    %1557 = vmatpush1.msra.mxu0 %v40
    %1558 = vmatprep.subr.mxu0 0.0
    %1559 = vmatpush1.msra.mxu0 %v41
    %1560 = vmatprep.subr.mxu0 0.0
    %1561 = vmatpush1.msra.mxu0 %v42
    %1562 = vmatprep.subr.mxu0 0.0
    %1563 = vmatpush1.msra.mxu0 %v43
    %1564 = vmatprep.subr.mxu0 0.0
    %1565 = vmatpush1.msra.mxu0 %v44
    %1566 = vmatprep.subr.mxu0 0.0
    %1567 = vmatpush1.msra.mxu0 %v45
    %1568 = vmatprep.subr.mxu0 0.0
    %1569 = vmatpush1.msra.mxu0 %v46
    %1570 = vmatprep.subr.mxu0 0.0
    %1571 = vmatpush1.msra.mxu0 %v47
    %1572 = vmatprep.subr.mxu0 0.0
    %1573 = vmatpush1.msra.mxu0 %v48
    %1574 = vmatprep.subr.mxu0 0.0
    %1575 = vmatpush1.msra.mxu0 %v49
    %1576 = vmatprep.subr.mxu0 0.0
    %1577 = vmatpush1.msra.mxu0 0.0
    %1578 = vmatprep.subr.mxu0 0.0
    %1579 = vmatpush1.msra.mxu0 0.0
    %1580 = vmatprep.subr.mxu0 0.0
    %1581 = vmatpush1.msra.mxu0 0.0
    %1582 = vmatprep.subr.mxu0 0.0
    %1583 = vmatpush1.msra.mxu0 0.0
    %1584 = vmatprep.subr.mxu0 0.0
    %1585 = vmatpush1.msra.mxu0 0.0
    %1586 = vmatprep.subr.mxu0 0.0
    %1587 = vmatpush1.msra.mxu0 0.0
    %1588 = vmatprep.subr.mxu0 0.0
    %1589 = vmatpush1.msra.mxu0 0.0
    %1590 = vmatprep.subr.mxu0 0.0
    %1591 = vmatpush1.msra.mxu0 0.0
    %1592 = vmatprep.subr.mxu0 0.0
    %1593 = vmatpush1.msra.mxu0 0.0
    %1594 = vmatprep.subr.mxu0 0.0
    %1595 = vmatpush1.msra.mxu0 0.0
    %1596 = vmatprep.subr.mxu0 0.0
    %1597 = vmatpush1.msra.mxu0 0.0
    %1598 = vmatprep.subr.mxu0 0.0
    %1599 = vmatpush1.msra.mxu0 0.0
    %1600 = vmatprep.subr.mxu0 0.0
    %1601 = vmatpush1.msra.mxu0 0.0
    %1602 = vmatprep.subr.mxu0 0.0
    %1603 = vmatpush1.msra.mxu0 0.0
    %1604 = vmatprep.subr.mxu0 0.0
    %1605 = vmatpush1.msra.mxu0 0.0
    %1606 = vmatprep.subr.mxu0 0.0
    %1607 = vmatpush1.msra.mxu0 0.0
    %1608 = vmatprep.mubr.f32.mxu0 0.0
    %1609 = vmatmul.mubr.f32.gmra.mrb[0].mxu0 %v1534
    %v1610 = vpop.f32.mrb[0].mxu0
    %v1611 = vadd.f32 0.0, %v1610
    %v1612 = vpop.f32.mrb[0].mxu0
    %1613 = vdwg.mxu0
    %1614 = vmatprep.subr.mxu0 0.0
    %1615 = vmatpush1.msra.mxu0 %v50
    %1616 = vmatprep.subr.mxu0 0.0
    %1617 = vmatpush1.msra.mxu0 %v51
    %1618 = vmatprep.subr.mxu0 0.0
    %1619 = vmatpush1.msra.mxu0 %v52
    %1620 = vmatprep.subr.mxu0 0.0
    %1621 = vmatpush1.msra.mxu0 %v53
    %1622 = vmatprep.subr.mxu0 0.0
    %1623 = vmatpush1.msra.mxu0 %v54
    %1624 = vmatprep.subr.mxu0 0.0
    %1625 = vmatpush1.msra.mxu0 %v55
    %1626 = vmatprep.subr.mxu0 0.0
    %1627 = vmatpush1.msra.mxu0 %v56
    %1628 = vmatprep.subr.mxu0 0.0
    %1629 = vmatpush1.msra.mxu0 %v57
    %1630 = vmatprep.subr.mxu0 0.0
    %1631 = vmatpush1.msra.mxu0 %v58
    %1632 = vmatprep.subr.mxu0 0.0
    %1633 = vmatpush1.msra.mxu0 %v59
    %1634 = vmatprep.subr.mxu0 0.0
    %1635 = vmatpush1.msra.mxu0 %v60
    %1636 = vmatprep.subr.mxu0 0.0
    %1637 = vmatpush1.msra.mxu0 %v61
    %1638 = vmatprep.subr.mxu0 0.0
    %1639 = vmatpush1.msra.mxu0 %v62
    %1640 = vmatprep.subr.mxu0 0.0
    %1641 = vmatpush1.msra.mxu0 %v63
    %1642 = vmatprep.subr.mxu0 0.0
    %1643 = vmatpush1.msra.mxu0 %v64
    %1644 = vmatprep.subr.mxu0 0.0
    %1645 = vmatpush1.msra.mxu0 %v65
    %1646 = vmatprep.subr.mxu0 0.0
    %1647 = vmatpush1.msra.mxu0 0.0
    %1648 = vmatprep.subr.mxu0 0.0
    %1649 = vmatpush1.msra.mxu0 0.0
    %1650 = vmatprep.subr.mxu0 0.0
    %1651 = vmatpush1.msra.mxu0 0.0
    %1652 = vmatprep.subr.mxu0 0.0
    %1653 = vmatpush1.msra.mxu0 0.0
    %1654 = vmatprep.subr.mxu0 0.0
    %1655 = vmatpush1.msra.mxu0 0.0
    %1656 = vmatprep.subr.mxu0 0.0
    %1657 = vmatpush1.msra.mxu0 0.0
    %1658 = vmatprep.subr.mxu0 0.0
    %1659 = vmatpush1.msra.mxu0 0.0
    %1660 = vmatprep.subr.mxu0 0.0
    %1661 = vmatpush1.msra.mxu0 0.0
    %1662 = vmatprep.subr.mxu0 0.0
    %1663 = vmatpush1.msra.mxu0 0.0
    %1664 = vmatprep.subr.mxu0 0.0
    %1665 = vmatpush1.msra.mxu0 0.0
    %1666 = vmatprep.subr.mxu0 0.0
    %1667 = vmatpush1.msra.mxu0 0.0
    %1668 = vmatprep.subr.mxu0 0.0
    %1669 = vmatpush1.msra.mxu0 0.0
    %1670 = vmatprep.subr.mxu0 0.0
    %1671 = vmatpush1.msra.mxu0 0.0
    %1672 = vmatprep.subr.mxu0 0.0
    %1673 = vmatpush1.msra.mxu0 0.0
    %1674 = vmatprep.subr.mxu0 0.0
    %1675 = vmatpush1.msra.mxu0 0.0
    %1676 = vmatprep.subr.mxu0 0.0
    %1677 = vmatpush1.msra.mxu0 0.0
    %1678 = vmatprep.mubr.f32.mxu0 0.0
    %1679 = vmatmul.mubr.f32.gmra.mrb[0].mxu0 %v1541
    %v1680 = vpop.f32.mrb[0].mxu0
    %v1681 = vadd.f32 0.0, %v1680
    %v1682 = vpop.f32.mrb[0].mxu0
    %1683 = vdwg.mxu0
    %1684 = vrot.lane.b32.xlu0 %v1310, 64
    %v1685 = vpop.permute.xlu0 %1684
    %v1686 = vsel %vm78, %v1685, 0
    %1688 = vmatprep.subr.mxu0 0.0
    %1689 = vmatpush1.msra.mxu0 %v482
    %1690 = vmatprep.subr.mxu0 0.0
    %1691 = vmatpush1.msra.mxu0 %v483
    %1692 = vmatprep.subr.mxu0 0.0
    %1693 = vmatpush1.msra.mxu0 %v484
    %1694 = vmatprep.subr.mxu0 0.0
    %1695 = vmatpush1.msra.mxu0 %v485
    %1696 = vmatprep.subr.mxu0 0.0
    %1697 = vmatpush1.msra.mxu0 0.0
    %1698 = vmatprep.subr.mxu0 0.0
    %1699 = vmatpush1.msra.mxu0 0.0
    %1700 = vmatprep.subr.mxu0 0.0
    %1701 = vmatpush1.msra.mxu0 0.0
    %1702 = vmatprep.subr.mxu0 0.0
    %1703 = vmatpush1.msra.mxu0 0.0
    %1704 = vmatprep.subr.mxu0 0.0
    %1705 = vmatpush1.msra.mxu0 0.0
    %1706 = vmatprep.subr.mxu0 0.0
    %1707 = vmatpush1.msra.mxu0 0.0
    %1708 = vmatprep.subr.mxu0 0.0
    %1709 = vmatpush1.msra.mxu0 0.0
    %1710 = vmatprep.subr.mxu0 0.0
    %1711 = vmatpush1.msra.mxu0 0.0
    %1712 = vmatprep.subr.mxu0 0.0
    %1713 = vmatpush1.msra.mxu0 0.0
    %1714 = vmatprep.subr.mxu0 0.0
    %1715 = vmatpush1.msra.mxu0 0.0
    %1716 = vmatprep.subr.mxu0 0.0
    %1717 = vmatpush1.msra.mxu0 0.0
    %1718 = vmatprep.subr.mxu0 0.0
    %1719 = vmatpush1.msra.mxu0 0.0
    %1720 = vmatprep.subr.mxu0 0.0
    %1721 = vmatpush1.msra.mxu0 0.0
    %1722 = vmatprep.subr.mxu0 0.0
    %1723 = vmatpush1.msra.mxu0 0.0
    %1724 = vmatprep.subr.mxu0 0.0
    %1725 = vmatpush1.msra.mxu0 0.0
    %1726 = vmatprep.subr.mxu0 0.0
    %1727 = vmatpush1.msra.mxu0 0.0
    %1728 = vmatprep.subr.mxu0 0.0
    %1729 = vmatpush1.msra.mxu0 0.0
    %1730 = vmatprep.subr.mxu0 0.0
    %1731 = vmatpush1.msra.mxu0 0.0
    %1732 = vmatprep.subr.mxu0 0.0
    %1733 = vmatpush1.msra.mxu0 0.0
    %1734 = vmatprep.subr.mxu0 0.0
    %1735 = vmatpush1.msra.mxu0 0.0
    %1736 = vmatprep.subr.mxu0 0.0
    %1737 = vmatpush1.msra.mxu0 0.0
    %1738 = vmatprep.subr.mxu0 0.0
    %1739 = vmatpush1.msra.mxu0 0.0
    %1740 = vmatprep.subr.mxu0 0.0
    %1741 = vmatpush1.msra.mxu0 0.0
    %1742 = vmatprep.subr.mxu0 0.0
    %1743 = vmatpush1.msra.mxu0 0.0
    %1744 = vmatprep.subr.mxu0 0.0
    %1745 = vmatpush1.msra.mxu0 0.0
    %1746 = vmatprep.subr.mxu0 0.0
    %1747 = vmatpush1.msra.mxu0 0.0
    %1748 = vmatprep.subr.mxu0 0.0
    %1749 = vmatpush1.msra.mxu0 0.0
    %1750 = vmatprep.subr.mxu0 0.0
    %1751 = vmatpush1.msra.mxu0 0.0
    %1752 = vmatprep.mubr.f32.mxu0 0.0
    %1753 = vmatmul.mubr.f32.gmra.mrb[0].mxu0 %v1686
    %v1754 = vpop.f32.mrb[0].mxu0
    %v1755 = vadd.f32 0.0, %v1754
    %v1756 = vpop.f32.mrb[0].mxu0
    %1757 = vdwg.mxu0
    %v1760 = vrot.slane %v1681, 7
    %v1761 = vsel %vm943, %v1760, %v1611
    %v1762 = vsel %vm566, %v1761, 0
    %1764 = vmatprep.subr.mxu0 0.0
    %1765 = vmatpush1.msra.mxu0 %v480
    %1766 = vmatprep.subr.mxu0 0.0
    %1767 = vmatpush1.msra.mxu0 %v481
    %1768 = vmatprep.subr.mxu0 0.0
    %1769 = vmatpush1.msra.mxu0 0.0
    %1770 = vmatprep.subr.mxu0 0.0
    %1771 = vmatpush1.msra.mxu0 0.0
    %1772 = vmatprep.subr.mxu0 0.0
    %1773 = vmatpush1.msra.mxu0 0.0
    %1774 = vmatprep.subr.mxu0 0.0
    %1775 = vmatpush1.msra.mxu0 0.0
    %1776 = vmatprep.subr.mxu0 0.0
    %1777 = vmatpush1.msra.mxu0 0.0
    %1778 = vmatprep.subr.mxu0 0.0
    %1779 = vmatpush1.msra.mxu0 0.0
    %1780 = vmatprep.subr.mxu0 0.0
    %1781 = vmatpush1.msra.mxu0 0.0
    %1782 = vmatprep.subr.mxu0 0.0
    %1783 = vmatpush1.msra.mxu0 0.0
    %1784 = vmatprep.subr.mxu0 0.0
    %1785 = vmatpush1.msra.mxu0 0.0
    %1786 = vmatprep.subr.mxu0 0.0
    %1787 = vmatpush1.msra.mxu0 0.0
    %1788 = vmatprep.subr.mxu0 0.0
    %1789 = vmatpush1.msra.mxu0 0.0
    %1790 = vmatprep.subr.mxu0 0.0
    %1791 = vmatpush1.msra.mxu0 0.0
    %1792 = vmatprep.subr.mxu0 0.0
    %1793 = vmatpush1.msra.mxu0 0.0
    %1794 = vmatprep.subr.mxu0 0.0
    %1795 = vmatpush1.msra.mxu0 0.0
    %1796 = vmatprep.subr.mxu0 0.0
    %1797 = vmatpush1.msra.mxu0 0.0
    %1798 = vmatprep.subr.mxu0 0.0
    %1799 = vmatpush1.msra.mxu0 0.0
    %1800 = vmatprep.subr.mxu0 0.0
    %1801 = vmatpush1.msra.mxu0 0.0
    %1802 = vmatprep.subr.mxu0 0.0
    %1803 = vmatpush1.msra.mxu0 0.0
    %1804 = vmatprep.subr.mxu0 0.0
    %1805 = vmatpush1.msra.mxu0 0.0
    %1806 = vmatprep.subr.mxu0 0.0
    %1807 = vmatpush1.msra.mxu0 0.0
    %1808 = vmatprep.subr.mxu0 0.0
    %1809 = vmatpush1.msra.mxu0 0.0
    %1810 = vmatprep.subr.mxu0 0.0
    %1811 = vmatpush1.msra.mxu0 0.0
    %1812 = vmatprep.subr.mxu0 0.0
    %1813 = vmatpush1.msra.mxu0 0.0
    %1814 = vmatprep.subr.mxu0 0.0
    %1815 = vmatpush1.msra.mxu0 0.0
    %1816 = vmatprep.subr.mxu0 0.0
    %1817 = vmatpush1.msra.mxu0 0.0
    %1818 = vmatprep.subr.mxu0 0.0
    %1819 = vmatpush1.msra.mxu0 0.0
    %1820 = vmatprep.subr.mxu0 0.0
    %1821 = vmatpush1.msra.mxu0 0.0
    %1822 = vmatprep.subr.mxu0 0.0
    %1823 = vmatpush1.msra.mxu0 0.0
    %1824 = vmatprep.subr.mxu0 0.0
    %1825 = vmatpush1.msra.mxu0 0.0
    %1826 = vmatprep.subr.mxu0 0.0
    %1827 = vmatpush1.msra.mxu0 0.0
    %1828 = vmatprep.mubr.f32.mxu0 0.0
    %1829 = vmatmul.mubr.f32.gmra.mrb[0].mxu0 %v1762
    %v1830 = vpop.f32.mrb[0].mxu0
    %v1831 = vadd.f32 %v1755, %v1830
    %v1832 = vpop.f32.mrb[0].mxu0
    %1833 = vdwg.mxu0
    %v1834 = vadd.f32 %v1831, %v149
    %v1835 = vxor.u32 %v1834, 2147483648
    %v1836 = vmul.f32 %v1835, 1.442695
    %v1837 = vpow.pop %v1836
    %v1838 = vadd.f32 %v1837, 1.0
    %v1839 = vrcp.pop %v1838
    %v1840 = vmul.f32 1.0, %v1839
    %v1841 = vtanh.pop %v1834
    %v1842 = vmul.f32 %v1840, %v1304
    %1844 = vrot.lane.b32.xlu0 %v1841, 32
    %v1845 = vpop.permute.xlu0 %1844
    %v1847 = vmul.f32 %v1840, %v1845
    %1849 = vrot.lane.b32.xlu0 %v1847, 32
    %v1850 = vpop.permute.xlu0 %1849
    %v1852 = vadd.f32 %v1842, %v1850
    %v1853 = vtanh.pop %v1852
    %1855 = vrot.lane.b32.xlu0 %v1853, 32
    %v1856 = vpop.permute.xlu0 %1855
    %v1858 = vmul.f32 %v1840, %v1856
    %v1861 = vunpack.c.l.s4 1966171168
    %v1862 = vunpack.c.0.s8 %v1861
    %v1863 = vlaneseq
    %v1864 = vshrl.u32 %v1863, 7
    %v1865 = vsub.s32 %v1862, %v1864
    %v1866 = vrot.slane %v1858, %v1865
    %v1867 = vcombine.high %v1866, %v1866
    %v1869 = vunpack.c.l.s4 1966171168
    %v1870 = vunpack.c.0.s8 %v1869
    %v1871 = vlaneseq
    %v1872 = vshrl.u32 %v1871, 7
    %v1873 = vsub.s32 %v1870, %v1872
    %v1874 = vrot.slane %v1866, %v1873
    %v1876 = vunpack.c.l.s4 1966171168
    %v1877 = vunpack.c.0.s8 %v1876
    %v1878 = vlaneseq
    %v1879 = vshrl.u32 %v1878, 7
    %v1880 = vsub.s32 %v1877, %v1879
    %v1881 = vrot.slane %v1867, %v1880
    %v1882 = vlaneseq
    %v1883 = vshrl.u32 %v1882, 7
    %v1884 = vsub.s32 0, %v1883
    %v1885 = vrot.slane %v1874, %v1884
    %1886 = vrot.lane.b32.xlu0 %v1885, 64
    %v1887 = vpop.permute.xlu0 %1886
    %v1888 = vsel %vm78, %v1887, 0
    %1890 = vmatprep.subr.mxu0 0.0
    %1891 = vmatpush1.xpose.msra.mxu0 %v697
    %1892 = vmatprep.subr.mxu0 0.0
    %1893 = vmatpush1.xpose.msra.mxu0 %v700
    %1894 = vmatprep.subr.mxu0 0.0
    %1895 = vmatpush1.xpose.msra.mxu0 %v703
    %1896 = vmatprep.subr.mxu0 0.0
    %1897 = vmatpush1.xpose.msra.mxu0 %v706
    %1898 = vmatprep.subr.mxu0 0.0
    %1899 = vmatpush1.xpose.msra.mxu0 %v709
    %1900 = vmatprep.subr.mxu0 0.0
    %1901 = vmatpush1.xpose.msra.mxu0 %v712
    %1902 = vmatprep.subr.mxu0 0.0
    %1903 = vmatpush1.xpose.msra.mxu0 %v715
    %1904 = vmatprep.subr.mxu0 0.0
    %1905 = vmatpush1.xpose.msra.mxu0 %v718
    %1906 = vmatprep.subr.mxu0 0.0
    %1907 = vmatpush1.xpose.msra.mxu0 %v721
    %1908 = vmatprep.subr.mxu0 0.0
    %1909 = vmatpush1.xpose.msra.mxu0 %v724
    %1910 = vmatprep.subr.mxu0 0.0
    %1911 = vmatpush1.xpose.msra.mxu0 %v727
    %1912 = vmatprep.subr.mxu0 0.0
    %1913 = vmatpush1.xpose.msra.mxu0 %v730
    %1914 = vmatprep.subr.mxu0 0.0
    %1915 = vmatpush1.xpose.msra.mxu0 %v733
    %1916 = vmatprep.subr.mxu0 0.0
    %1917 = vmatpush1.xpose.msra.mxu0 %v736
    %1918 = vmatprep.subr.mxu0 0.0
    %1919 = vmatpush1.xpose.msra.mxu0 %v739
    %1920 = vmatprep.subr.mxu0 0.0
    %1921 = vmatpush1.xpose.msra.mxu0 %v742
    %1922 = vmatprep.subr.mxu0 0.0
    %1923 = vmatpush1.xpose.msra.mxu0 0.0
    %1924 = vmatprep.subr.mxu0 0.0
    %1925 = vmatpush1.xpose.msra.mxu0 0.0
    %1926 = vmatprep.subr.mxu0 0.0
    %1927 = vmatpush1.xpose.msra.mxu0 0.0
    %1928 = vmatprep.subr.mxu0 0.0
    %1929 = vmatpush1.xpose.msra.mxu0 0.0
    %1930 = vmatprep.subr.mxu0 0.0
    %1931 = vmatpush1.xpose.msra.mxu0 0.0
    %1932 = vmatprep.subr.mxu0 0.0
    %1933 = vmatpush1.xpose.msra.mxu0 0.0
    %1934 = vmatprep.subr.mxu0 0.0
    %1935 = vmatpush1.xpose.msra.mxu0 0.0
    %1936 = vmatprep.subr.mxu0 0.0
    %1937 = vmatpush1.xpose.msra.mxu0 0.0
    %1938 = vmatprep.subr.mxu0 0.0
    %1939 = vmatpush1.xpose.msra.mxu0 0.0
    %1940 = vmatprep.subr.mxu0 0.0
    %1941 = vmatpush1.xpose.msra.mxu0 0.0
    %1942 = vmatprep.subr.mxu0 0.0
    %1943 = vmatpush1.xpose.msra.mxu0 0.0
    %1944 = vmatprep.subr.mxu0 0.0
    %1945 = vmatpush1.xpose.msra.mxu0 0.0
    %1946 = vmatprep.subr.mxu0 0.0
    %1947 = vmatpush1.xpose.msra.mxu0 0.0
    %1948 = vmatprep.subr.mxu0 0.0
    %1949 = vmatpush1.xpose.msra.mxu0 0.0
    %1950 = vmatprep.subr.mxu0 0.0
    %1951 = vmatpush1.xpose.msra.mxu0 0.0
    %1952 = vmatprep.subr.mxu0 0.0
    %1953 = vmatpush1.xpose.msra.mxu0 0.0
    %1954 = vmatprep.mubr.f32.mxu0 0.0
    %1955 = vmatmul.mubr.f32.gmra.mrb[0].mxu0 %v1888
    %v1956 = vpop.f32.mrb[0].mxu0
    %v1957 = vadd.f32 0.0, %v1956
    %v1958 = vpop.f32.mrb[0].mxu0
    %1959 = vdwg.mxu0
    %v1960 = vlaneseq
    %v1961 = vshrl.u32 %v1960, 7
    %v1962 = vsub.s32 0, %v1961
    %v1963 = vrot.slane %v1881, %v1962
    %1964 = vrot.lane.b32.xlu0 %v1963, 64
    %v1965 = vpop.permute.xlu0 %1964
    %v1966 = vsel %vm78, %v1965, 0
    %1968 = vmatprep.subr.mxu0 0.0
    %1969 = vmatpush1.xpose.msra.mxu0 %v823
    %1970 = vmatprep.subr.mxu0 0.0
    %1971 = vmatpush1.xpose.msra.mxu0 %v826
    %1972 = vmatprep.subr.mxu0 0.0
    %1973 = vmatpush1.xpose.msra.mxu0 %v829
    %1974 = vmatprep.subr.mxu0 0.0
    %1975 = vmatpush1.xpose.msra.mxu0 %v832
    %1976 = vmatprep.subr.mxu0 0.0
    %1977 = vmatpush1.xpose.msra.mxu0 %v835
    %1978 = vmatprep.subr.mxu0 0.0
    %1979 = vmatpush1.xpose.msra.mxu0 %v838
    %1980 = vmatprep.subr.mxu0 0.0
    %1981 = vmatpush1.xpose.msra.mxu0 %v841
    %1982 = vmatprep.subr.mxu0 0.0
    %1983 = vmatpush1.xpose.msra.mxu0 %v844
    %1984 = vmatprep.subr.mxu0 0.0
    %1985 = vmatpush1.xpose.msra.mxu0 %v847
    %1986 = vmatprep.subr.mxu0 0.0
    %1987 = vmatpush1.xpose.msra.mxu0 %v850
    %1988 = vmatprep.subr.mxu0 0.0
    %1989 = vmatpush1.xpose.msra.mxu0 %v853
    %1990 = vmatprep.subr.mxu0 0.0
    %1991 = vmatpush1.xpose.msra.mxu0 %v856
    %1992 = vmatprep.subr.mxu0 0.0
    %1993 = vmatpush1.xpose.msra.mxu0 %v859
    %1994 = vmatprep.subr.mxu0 0.0
    %1995 = vmatpush1.xpose.msra.mxu0 %v862
    %1996 = vmatprep.subr.mxu0 0.0
    %1997 = vmatpush1.xpose.msra.mxu0 %v865
    %1998 = vmatprep.subr.mxu0 0.0
    %1999 = vmatpush1.xpose.msra.mxu0 %v868
    %2000 = vmatprep.subr.mxu0 0.0
    %2001 = vmatpush1.xpose.msra.mxu0 0.0
    %2002 = vmatprep.subr.mxu0 0.0
    %2003 = vmatpush1.xpose.msra.mxu0 0.0
    %2004 = vmatprep.subr.mxu0 0.0
    %2005 = vmatpush1.xpose.msra.mxu0 0.0
    %2006 = vmatprep.subr.mxu0 0.0
    %2007 = vmatpush1.xpose.msra.mxu0 0.0
    %2008 = vmatprep.subr.mxu0 0.0
    %2009 = vmatpush1.xpose.msra.mxu0 0.0
    %2010 = vmatprep.subr.mxu0 0.0
    %2011 = vmatpush1.xpose.msra.mxu0 0.0
    %2012 = vmatprep.subr.mxu0 0.0
    %2013 = vmatpush1.xpose.msra.mxu0 0.0
    %2014 = vmatprep.subr.mxu0 0.0
    %2015 = vmatpush1.xpose.msra.mxu0 0.0
    %2016 = vmatprep.subr.mxu0 0.0
    %2017 = vmatpush1.xpose.msra.mxu0 0.0
    %2018 = vmatprep.subr.mxu0 0.0
    %2019 = vmatpush1.xpose.msra.mxu0 0.0
    %2020 = vmatprep.subr.mxu0 0.0
    %2021 = vmatpush1.xpose.msra.mxu0 0.0
    %2022 = vmatprep.subr.mxu0 0.0
    %2023 = vmatpush1.xpose.msra.mxu0 0.0
    %2024 = vmatprep.subr.mxu0 0.0
    %2025 = vmatpush1.xpose.msra.mxu0 0.0
    %2026 = vmatprep.subr.mxu0 0.0
    %2027 = vmatpush1.xpose.msra.mxu0 0.0
    %2028 = vmatprep.subr.mxu0 0.0
    %2029 = vmatpush1.xpose.msra.mxu0 0.0
    %2030 = vmatprep.subr.mxu0 0.0
    %2031 = vmatpush1.xpose.msra.mxu0 0.0
    %2032 = vmatprep.mubr.f32.mxu0 0.0
    %2033 = vmatmul.mubr.f32.gmra.mrb[0].mxu0 %v1966
    %v2034 = vpop.f32.mrb[0].mxu0
    %v2035 = vadd.f32 0.0, %v2034
    %v2036 = vpop.f32.mrb[0].mxu0
    %2037 = vdwg.mxu0
    %v2040 = vrot.slane %v2035, 7
    %v2041 = vsel %vm943, %v2040, %v1957
    %v2043 = vsel %vm488, %v2041, -1e+30
    %v2044 = vsel %vm947, %v2043, -inf
    %2045 = vmax.xlane.f32.xlu0 %v2044
    %v2046 = vpop.xlane.xlu0 %2045
    %vm2047 = vcmp.ge.f32.partialorder %v2043, %v2046
    %v2048 = vsel %vm2047, %v487, 128
    %v2049 = vsel %vm947, %v2048, 2147483647
    %v2050 = vand.u32 %v2049, 65535
    %v2051 = vshra.s32 %v2049, 16
    %v2052 = vcvt.s32.f32 %v2050
    %v2053 = vcvt.s32.f32 %v2051
    %2054 = vmin.xlane.f32.xlu0 %v2053
    %v2055 = vpop.xlane.xlu0 %2054
    %vm2056 = vcmp.eq.f32.partialorder %v2053, %v2055
    %v2057 = vsel %vm2056, %v2052, inf
    %2058 = vmin.xlane.f32.xlu0 %v2057
    %v2059 = vpop.xlane.xlu0 %2058
    %v2060 = vcvt.f32.s32 %v2059
    %v2061 = vcvt.f32.s32 %v2055
    %v2062 = vshll.u32 %v2061, 16
    %v2063 = vadd.s32 %v2062, %v2060
    %vm2064 = vcmp.eq.s32.totalorder %v487, %v2063
    %v2065 = vsel %vm2064, 1, 0
    %v2066 = vcvt.s32.f32 %v2065
    %v2069 = vunpack.c.l.s4 1966171168
    %v2070 = vunpack.c.0.s8 %v2069
    %v2071 = vlaneseq
    %v2072 = vshrl.u32 %v2071, 7
    %v2073 = vsub.s32 %v2070, %v2072
    %v2074 = vrot.slane %v2066, %v2073
    %v2075 = vcombine.high %v2074, %v2074
    %v2077 = vunpack.c.l.s4 1966171168
    %v2078 = vunpack.c.0.s8 %v2077
    %v2079 = vlaneseq
    %v2080 = vshrl.u32 %v2079, 7
    %v2081 = vsub.s32 %v2078, %v2080
    %v2082 = vrot.slane %v2074, %v2081
    %v2084 = vunpack.c.l.s4 1966171168
    %v2085 = vunpack.c.0.s8 %v2084
    %v2086 = vlaneseq
    %v2087 = vshrl.u32 %v2086, 7
    %v2088 = vsub.s32 %v2085, %v2087
    %v2089 = vrot.slane %v2075, %v2088
    %2092 = vmatprep.subr.mxu0 0.0
    %2093 = vmatpush1.msra.mxu0 %v34
    %2094 = vmatprep.subr.mxu0 0.0
    %2095 = vmatpush1.msra.mxu0 %v35
    %2096 = vmatprep.subr.mxu0 0.0
    %2097 = vmatpush1.msra.mxu0 %v36
    %2098 = vmatprep.subr.mxu0 0.0
    %2099 = vmatpush1.msra.mxu0 %v37
    %2100 = vmatprep.subr.mxu0 0.0
    %2101 = vmatpush1.msra.mxu0 %v38
    %2102 = vmatprep.subr.mxu0 0.0
    %2103 = vmatpush1.msra.mxu0 %v39
    %2104 = vmatprep.subr.mxu0 0.0
    %2105 = vmatpush1.msra.mxu0 %v40
    %2106 = vmatprep.subr.mxu0 0.0
    %2107 = vmatpush1.msra.mxu0 %v41
    %2108 = vmatprep.subr.mxu0 0.0
    %2109 = vmatpush1.msra.mxu0 %v42
    %2110 = vmatprep.subr.mxu0 0.0
    %2111 = vmatpush1.msra.mxu0 %v43
    %2112 = vmatprep.subr.mxu0 0.0
    %2113 = vmatpush1.msra.mxu0 %v44
    %2114 = vmatprep.subr.mxu0 0.0
    %2115 = vmatpush1.msra.mxu0 %v45
    %2116 = vmatprep.subr.mxu0 0.0
    %2117 = vmatpush1.msra.mxu0 %v46
    %2118 = vmatprep.subr.mxu0 0.0
    %2119 = vmatpush1.msra.mxu0 %v47
    %2120 = vmatprep.subr.mxu0 0.0
    %2121 = vmatpush1.msra.mxu0 %v48
    %2122 = vmatprep.subr.mxu0 0.0
    %2123 = vmatpush1.msra.mxu0 %v49
    %2124 = vmatprep.subr.mxu0 0.0
    %2125 = vmatpush1.msra.mxu0 0.0
    %2126 = vmatprep.subr.mxu0 0.0
    %2127 = vmatpush1.msra.mxu0 0.0
    %2128 = vmatprep.subr.mxu0 0.0
    %2129 = vmatpush1.msra.mxu0 0.0
    %2130 = vmatprep.subr.mxu0 0.0
    %2131 = vmatpush1.msra.mxu0 0.0
    %2132 = vmatprep.subr.mxu0 0.0
    %2133 = vmatpush1.msra.mxu0 0.0
    %2134 = vmatprep.subr.mxu0 0.0
    %2135 = vmatpush1.msra.mxu0 0.0
    %2136 = vmatprep.subr.mxu0 0.0
    %2137 = vmatpush1.msra.mxu0 0.0
    %2138 = vmatprep.subr.mxu0 0.0
    %2139 = vmatpush1.msra.mxu0 0.0
    %2140 = vmatprep.subr.mxu0 0.0
    %2141 = vmatpush1.msra.mxu0 0.0
    %2142 = vmatprep.subr.mxu0 0.0
    %2143 = vmatpush1.msra.mxu0 0.0
    %2144 = vmatprep.subr.mxu0 0.0
    %2145 = vmatpush1.msra.mxu0 0.0
    %2146 = vmatprep.subr.mxu0 0.0
    %2147 = vmatpush1.msra.mxu0 0.0
    %2148 = vmatprep.subr.mxu0 0.0
    %2149 = vmatpush1.msra.mxu0 0.0
    %2150 = vmatprep.subr.mxu0 0.0
    %2151 = vmatpush1.msra.mxu0 0.0
    %2152 = vmatprep.subr.mxu0 0.0
    %2153 = vmatpush1.msra.mxu0 0.0
    %2154 = vmatprep.subr.mxu0 0.0
    %2155 = vmatpush1.msra.mxu0 0.0
    %2156 = vmatprep.mubr.f32.mxu0 0.0
    %2157 = vmatmul.mubr.f32.gmra.mrb[0].mxu0 %v2082
    %v2158 = vpop.f32.mrb[0].mxu0
    %v2159 = vadd.f32 0.0, %v2158
    %v2160 = vpop.f32.mrb[0].mxu0
    %2161 = vdwg.mxu0
    %2162 = vmatprep.subr.mxu0 0.0
    %2163 = vmatpush1.msra.mxu0 %v50
    %2164 = vmatprep.subr.mxu0 0.0
    %2165 = vmatpush1.msra.mxu0 %v51
    %2166 = vmatprep.subr.mxu0 0.0
    %2167 = vmatpush1.msra.mxu0 %v52
    %2168 = vmatprep.subr.mxu0 0.0
    %2169 = vmatpush1.msra.mxu0 %v53
    %2170 = vmatprep.subr.mxu0 0.0
    %2171 = vmatpush1.msra.mxu0 %v54
    %2172 = vmatprep.subr.mxu0 0.0
    %2173 = vmatpush1.msra.mxu0 %v55
    %2174 = vmatprep.subr.mxu0 0.0
    %2175 = vmatpush1.msra.mxu0 %v56
    %2176 = vmatprep.subr.mxu0 0.0
    %2177 = vmatpush1.msra.mxu0 %v57
    %2178 = vmatprep.subr.mxu0 0.0
    %2179 = vmatpush1.msra.mxu0 %v58
    %2180 = vmatprep.subr.mxu0 0.0
    %2181 = vmatpush1.msra.mxu0 %v59
    %2182 = vmatprep.subr.mxu0 0.0
    %2183 = vmatpush1.msra.mxu0 %v60
    %2184 = vmatprep.subr.mxu0 0.0
    %2185 = vmatpush1.msra.mxu0 %v61
    %2186 = vmatprep.subr.mxu0 0.0
    %2187 = vmatpush1.msra.mxu0 %v62
    %2188 = vmatprep.subr.mxu0 0.0
    %2189 = vmatpush1.msra.mxu0 %v63
    %2190 = vmatprep.subr.mxu0 0.0
    %2191 = vmatpush1.msra.mxu0 %v64
    %2192 = vmatprep.subr.mxu0 0.0
    %2193 = vmatpush1.msra.mxu0 %v65
    %2194 = vmatprep.subr.mxu0 0.0
    %2195 = vmatpush1.msra.mxu0 0.0
    %2196 = vmatprep.subr.mxu0 0.0
    %2197 = vmatpush1.msra.mxu0 0.0
    %2198 = vmatprep.subr.mxu0 0.0
    %2199 = vmatpush1.msra.mxu0 0.0
    %2200 = vmatprep.subr.mxu0 0.0
    %2201 = vmatpush1.msra.mxu0 0.0
    %2202 = vmatprep.subr.mxu0 0.0
    %2203 = vmatpush1.msra.mxu0 0.0
    %2204 = vmatprep.subr.mxu0 0.0
    %2205 = vmatpush1.msra.mxu0 0.0
    %2206 = vmatprep.subr.mxu0 0.0
    %2207 = vmatpush1.msra.mxu0 0.0
    %2208 = vmatprep.subr.mxu0 0.0
    %2209 = vmatpush1.msra.mxu0 0.0
    %2210 = vmatprep.subr.mxu0 0.0
    %2211 = vmatpush1.msra.mxu0 0.0
    %2212 = vmatprep.subr.mxu0 0.0
    %2213 = vmatpush1.msra.mxu0 0.0
    %2214 = vmatprep.subr.mxu0 0.0
    %2215 = vmatpush1.msra.mxu0 0.0
    %2216 = vmatprep.subr.mxu0 0.0
    %2217 = vmatpush1.msra.mxu0 0.0
    %2218 = vmatprep.subr.mxu0 0.0
    %2219 = vmatpush1.msra.mxu0 0.0
    %2220 = vmatprep.subr.mxu0 0.0
    %2221 = vmatpush1.msra.mxu0 0.0
    %2222 = vmatprep.subr.mxu0 0.0
    %2223 = vmatpush1.msra.mxu0 0.0
    %2224 = vmatprep.subr.mxu0 0.0
    %2225 = vmatpush1.msra.mxu0 0.0
    %2226 = vmatprep.mubr.f32.mxu0 0.0
    %2227 = vmatmul.mubr.f32.gmra.mrb[0].mxu0 %v2089
    %v2228 = vpop.f32.mrb[0].mxu0
    %v2229 = vadd.f32 0.0, %v2228
    %v2230 = vpop.f32.mrb[0].mxu0
    %2231 = vdwg.mxu0
    %2232 = vrot.lane.b32.xlu0 %v1858, 64
    %v2233 = vpop.permute.xlu0 %2232
    %v2234 = vsel %vm78, %v2233, 0
    %2236 = vmatprep.subr.mxu0 0.0
    %2237 = vmatpush1.msra.mxu0 %v482
    %2238 = vmatprep.subr.mxu0 0.0
    %2239 = vmatpush1.msra.mxu0 %v483
    %2240 = vmatprep.subr.mxu0 0.0
    %2241 = vmatpush1.msra.mxu0 %v484
    %2242 = vmatprep.subr.mxu0 0.0
    %2243 = vmatpush1.msra.mxu0 %v485
    %2244 = vmatprep.subr.mxu0 0.0
    %2245 = vmatpush1.msra.mxu0 0.0
    %2246 = vmatprep.subr.mxu0 0.0
    %2247 = vmatpush1.msra.mxu0 0.0
    %2248 = vmatprep.subr.mxu0 0.0
    %2249 = vmatpush1.msra.mxu0 0.0
    %2250 = vmatprep.subr.mxu0 0.0
    %2251 = vmatpush1.msra.mxu0 0.0
    %2252 = vmatprep.subr.mxu0 0.0
    %2253 = vmatpush1.msra.mxu0 0.0
    %2254 = vmatprep.subr.mxu0 0.0
    %2255 = vmatpush1.msra.mxu0 0.0
    %2256 = vmatprep.subr.mxu0 0.0
    %2257 = vmatpush1.msra.mxu0 0.0
    %2258 = vmatprep.subr.mxu0 0.0
    %2259 = vmatpush1.msra.mxu0 0.0
    %2260 = vmatprep.subr.mxu0 0.0
    %2261 = vmatpush1.msra.mxu0 0.0
    %2262 = vmatprep.subr.mxu0 0.0
    %2263 = vmatpush1.msra.mxu0 0.0
    %2264 = vmatprep.subr.mxu0 0.0
    %2265 = vmatpush1.msra.mxu0 0.0
    %2266 = vmatprep.subr.mxu0 0.0
    %2267 = vmatpush1.msra.mxu0 0.0
    %2268 = vmatprep.subr.mxu0 0.0
    %2269 = vmatpush1.msra.mxu0 0.0
    %2270 = vmatprep.subr.mxu0 0.0
    %2271 = vmatpush1.msra.mxu0 0.0
    %2272 = vmatprep.subr.mxu0 0.0
    %2273 = vmatpush1.msra.mxu0 0.0
    %2274 = vmatprep.subr.mxu0 0.0
    %2275 = vmatpush1.msra.mxu0 0.0
    %2276 = vmatprep.subr.mxu0 0.0
    %2277 = vmatpush1.msra.mxu0 0.0
    %2278 = vmatprep.subr.mxu0 0.0
    %2279 = vmatpush1.msra.mxu0 0.0
    %2280 = vmatprep.subr.mxu0 0.0
    %2281 = vmatpush1.msra.mxu0 0.0
    %2282 = vmatprep.subr.mxu0 0.0
    %2283 = vmatpush1.msra.mxu0 0.0
    %2284 = vmatprep.subr.mxu0 0.0
    %2285 = vmatpush1.msra.mxu0 0.0
    %2286 = vmatprep.subr.mxu0 0.0
    %2287 = vmatpush1.msra.mxu0 0.0
    %2288 = vmatprep.subr.mxu0 0.0
    %2289 = vmatpush1.msra.mxu0 0.0
    %2290 = vmatprep.subr.mxu0 0.0
    %2291 = vmatpush1.msra.mxu0 0.0
    %2292 = vmatprep.subr.mxu0 0.0
    %2293 = vmatpush1.msra.mxu0 0.0
    %2294 = vmatprep.subr.mxu0 0.0
    %2295 = vmatpush1.msra.mxu0 0.0
    %2296 = vmatprep.subr.mxu0 0.0
    %2297 = vmatpush1.msra.mxu0 0.0
    %2298 = vmatprep.subr.mxu0 0.0
    %2299 = vmatpush1.msra.mxu0 0.0
    %2300 = vmatprep.mubr.f32.mxu0 0.0
    %2301 = vmatmul.mubr.f32.gmra.mrb[0].mxu0 %v2234
    %v2302 = vpop.f32.mrb[0].mxu0
    %v2303 = vadd.f32 0.0, %v2302
    %v2304 = vpop.f32.mrb[0].mxu0
    %2305 = vdwg.mxu0
    %v2308 = vrot.slane %v2229, 7
    %v2309 = vsel %vm943, %v2308, %v2159
    %v2310 = vsel %vm566, %v2309, 0
    %2312 = vmatprep.subr.mxu0 0.0
    %2313 = vmatpush1.msra.mxu0 %v480
    %2314 = vmatprep.subr.mxu0 0.0
    %2315 = vmatpush1.msra.mxu0 %v481
    %2316 = vmatprep.subr.mxu0 0.0
    %2317 = vmatpush1.msra.mxu0 0.0
    %2318 = vmatprep.subr.mxu0 0.0
    %2319 = vmatpush1.msra.mxu0 0.0
    %2320 = vmatprep.subr.mxu0 0.0
    %2321 = vmatpush1.msra.mxu0 0.0
    %2322 = vmatprep.subr.mxu0 0.0
    %2323 = vmatpush1.msra.mxu0 0.0
    %2324 = vmatprep.subr.mxu0 0.0
    %2325 = vmatpush1.msra.mxu0 0.0
    %2326 = vmatprep.subr.mxu0 0.0
    %2327 = vmatpush1.msra.mxu0 0.0
    %2328 = vmatprep.subr.mxu0 0.0
    %2329 = vmatpush1.msra.mxu0 0.0
    %2330 = vmatprep.subr.mxu0 0.0
    %2331 = vmatpush1.msra.mxu0 0.0
    %2332 = vmatprep.subr.mxu0 0.0
    %2333 = vmatpush1.msra.mxu0 0.0
    %2334 = vmatprep.subr.mxu0 0.0
    %2335 = vmatpush1.msra.mxu0 0.0
    %2336 = vmatprep.subr.mxu0 0.0
    %2337 = vmatpush1.msra.mxu0 0.0
    %2338 = vmatprep.subr.mxu0 0.0
    %2339 = vmatpush1.msra.mxu0 0.0
    %2340 = vmatprep.subr.mxu0 0.0
    %2341 = vmatpush1.msra.mxu0 0.0
    %2342 = vmatprep.subr.mxu0 0.0
    %2343 = vmatpush1.msra.mxu0 0.0
    %2344 = vmatprep.subr.mxu0 0.0
    %2345 = vmatpush1.msra.mxu0 0.0
    %2346 = vmatprep.subr.mxu0 0.0
    %2347 = vmatpush1.msra.mxu0 0.0
    %2348 = vmatprep.subr.mxu0 0.0
    %2349 = vmatpush1.msra.mxu0 0.0
    %2350 = vmatprep.subr.mxu0 0.0
    %2351 = vmatpush1.msra.mxu0 0.0
    %2352 = vmatprep.subr.mxu0 0.0
    %2353 = vmatpush1.msra.mxu0 0.0
    %2354 = vmatprep.subr.mxu0 0.0
    %2355 = vmatpush1.msra.mxu0 0.0
    %2356 = vmatprep.subr.mxu0 0.0
    %2357 = vmatpush1.msra.mxu0 0.0
    %2358 = vmatprep.subr.mxu0 0.0
    %2359 = vmatpush1.msra.mxu0 0.0
    %2360 = vmatprep.subr.mxu0 0.0
    %2361 = vmatpush1.msra.mxu0 0.0
    %2362 = vmatprep.subr.mxu0 0.0
    %2363 = vmatpush1.msra.mxu0 0.0
    %2364 = vmatprep.subr.mxu0 0.0
    %2365 = vmatpush1.msra.mxu0 0.0
    %2366 = vmatprep.subr.mxu0 0.0
    %2367 = vmatpush1.msra.mxu0 0.0
    %2368 = vmatprep.subr.mxu0 0.0
    %2369 = vmatpush1.msra.mxu0 0.0
    %2370 = vmatprep.subr.mxu0 0.0
    %2371 = vmatpush1.msra.mxu0 0.0
    %2372 = vmatprep.subr.mxu0 0.0
    %2373 = vmatpush1.msra.mxu0 0.0
    %2374 = vmatprep.subr.mxu0 0.0
    %2375 = vmatpush1.msra.mxu0 0.0
    %2376 = vmatprep.mubr.f32.mxu0 0.0
    %2377 = vmatmul.mubr.f32.gmra.mrb[0].mxu0 %v2310
    %v2378 = vpop.f32.mrb[0].mxu0
    %v2379 = vadd.f32 %v2303, %v2378
    %v2380 = vpop.f32.mrb[0].mxu0
    %2381 = vdwg.mxu0
    %v2382 = vadd.f32 %v2379, %v149
    %v2383 = vxor.u32 %v2382, 2147483648
    %v2384 = vmul.f32 %v2383, 1.442695
    %v2385 = vpow.pop %v2384
    %v2386 = vadd.f32 %v2385, 1.0
    %v2387 = vrcp.pop %v2386
    %v2388 = vmul.f32 1.0, %v2387
    %v2389 = vtanh.pop %v2382
    %v2390 = vmul.f32 %v2388, %v1852
    %2392 = vrot.lane.b32.xlu0 %v2389, 32
    %v2393 = vpop.permute.xlu0 %2392
    %v2395 = vmul.f32 %v2388, %v2393
    %2397 = vrot.lane.b32.xlu0 %v2395, 32
    %v2398 = vpop.permute.xlu0 %2397
    %v2400 = vadd.f32 %v2390, %v2398
    %v2401 = vtanh.pop %v2400
    %2403 = vrot.lane.b32.xlu0 %v2401, 32
    %v2404 = vpop.permute.xlu0 %2403
    %v2406 = vmul.f32 %v2388, %v2404
    %v2409 = vunpack.c.l.s4 1966171168
    %v2410 = vunpack.c.0.s8 %v2409
    %v2411 = vlaneseq
    %v2412 = vshrl.u32 %v2411, 7
    %v2413 = vsub.s32 %v2410, %v2412
    %v2414 = vrot.slane %v2406, %v2413
    %v2415 = vcombine.high %v2414, %v2414
    %v2417 = vunpack.c.l.s4 1966171168
    %v2418 = vunpack.c.0.s8 %v2417
    %v2419 = vlaneseq
    %v2420 = vshrl.u32 %v2419, 7
    %v2421 = vsub.s32 %v2418, %v2420
    %v2422 = vrot.slane %v2414, %v2421
    %v2424 = vunpack.c.l.s4 1966171168
    %v2425 = vunpack.c.0.s8 %v2424
    %v2426 = vlaneseq
    %v2427 = vshrl.u32 %v2426, 7
    %v2428 = vsub.s32 %v2425, %v2427
    %v2429 = vrot.slane %v2415, %v2428
    %v2430 = vlaneseq
    %v2431 = vshrl.u32 %v2430, 7
    %v2432 = vsub.s32 0, %v2431
    %v2433 = vrot.slane %v2422, %v2432
    %2434 = vrot.lane.b32.xlu0 %v2433, 64
    %v2435 = vpop.permute.xlu0 %2434
    %v2436 = vsel %vm78, %v2435, 0
    %2438 = vmatprep.subr.mxu0 0.0
    %2439 = vmatpush1.xpose.msra.mxu0 %v697
    %2440 = vmatprep.subr.mxu0 0.0
    %2441 = vmatpush1.xpose.msra.mxu0 %v700
    %2442 = vmatprep.subr.mxu0 0.0
    %2443 = vmatpush1.xpose.msra.mxu0 %v703
    %2444 = vmatprep.subr.mxu0 0.0
    %2445 = vmatpush1.xpose.msra.mxu0 %v706
    %2446 = vmatprep.subr.mxu0 0.0
    %2447 = vmatpush1.xpose.msra.mxu0 %v709
    %2448 = vmatprep.subr.mxu0 0.0
    %2449 = vmatpush1.xpose.msra.mxu0 %v712
    %2450 = vmatprep.subr.mxu0 0.0
    %2451 = vmatpush1.xpose.msra.mxu0 %v715
    %2452 = vmatprep.subr.mxu0 0.0
    %2453 = vmatpush1.xpose.msra.mxu0 %v718
    %2454 = vmatprep.subr.mxu0 0.0
    %2455 = vmatpush1.xpose.msra.mxu0 %v721
    %2456 = vmatprep.subr.mxu0 0.0
    %2457 = vmatpush1.xpose.msra.mxu0 %v724
    %2458 = vmatprep.subr.mxu0 0.0
    %2459 = vmatpush1.xpose.msra.mxu0 %v727
    %2460 = vmatprep.subr.mxu0 0.0
    %2461 = vmatpush1.xpose.msra.mxu0 %v730
    %2462 = vmatprep.subr.mxu0 0.0
    %2463 = vmatpush1.xpose.msra.mxu0 %v733
    %2464 = vmatprep.subr.mxu0 0.0
    %2465 = vmatpush1.xpose.msra.mxu0 %v736
    %2466 = vmatprep.subr.mxu0 0.0
    %2467 = vmatpush1.xpose.msra.mxu0 %v739
    %2468 = vmatprep.subr.mxu0 0.0
    %2469 = vmatpush1.xpose.msra.mxu0 %v742
    %2470 = vmatprep.subr.mxu0 0.0
    %2471 = vmatpush1.xpose.msra.mxu0 0.0
    %2472 = vmatprep.subr.mxu0 0.0
    %2473 = vmatpush1.xpose.msra.mxu0 0.0
    %2474 = vmatprep.subr.mxu0 0.0
    %2475 = vmatpush1.xpose.msra.mxu0 0.0
    %2476 = vmatprep.subr.mxu0 0.0
    %2477 = vmatpush1.xpose.msra.mxu0 0.0
    %2478 = vmatprep.subr.mxu0 0.0
    %2479 = vmatpush1.xpose.msra.mxu0 0.0
    %2480 = vmatprep.subr.mxu0 0.0
    %2481 = vmatpush1.xpose.msra.mxu0 0.0
    %2482 = vmatprep.subr.mxu0 0.0
    %2483 = vmatpush1.xpose.msra.mxu0 0.0
    %2484 = vmatprep.subr.mxu0 0.0
    %2485 = vmatpush1.xpose.msra.mxu0 0.0
    %2486 = vmatprep.subr.mxu0 0.0
    %2487 = vmatpush1.xpose.msra.mxu0 0.0
    %2488 = vmatprep.subr.mxu0 0.0
    %2489 = vmatpush1.xpose.msra.mxu0 0.0
    %2490 = vmatprep.subr.mxu0 0.0
    %2491 = vmatpush1.xpose.msra.mxu0 0.0
    %2492 = vmatprep.subr.mxu0 0.0
    %2493 = vmatpush1.xpose.msra.mxu0 0.0
    %2494 = vmatprep.subr.mxu0 0.0
    %2495 = vmatpush1.xpose.msra.mxu0 0.0
    %2496 = vmatprep.subr.mxu0 0.0
    %2497 = vmatpush1.xpose.msra.mxu0 0.0
    %2498 = vmatprep.subr.mxu0 0.0
    %2499 = vmatpush1.xpose.msra.mxu0 0.0
    %2500 = vmatprep.subr.mxu0 0.0
    %2501 = vmatpush1.xpose.msra.mxu0 0.0
    %2502 = vmatprep.mubr.f32.mxu0 0.0
    %2503 = vmatmul.mubr.f32.gmra.mrb[0].mxu0 %v2436
    %v2504 = vpop.f32.mrb[0].mxu0
    %v2505 = vadd.f32 0.0, %v2504
    %v2506 = vpop.f32.mrb[0].mxu0
    %2507 = vdwg.mxu0
    %v2508 = vlaneseq
    %v2509 = vshrl.u32 %v2508, 7
    %v2510 = vsub.s32 0, %v2509
    %v2511 = vrot.slane %v2429, %v2510
    %2512 = vrot.lane.b32.xlu0 %v2511, 64
    %v2513 = vpop.permute.xlu0 %2512
    %v2514 = vsel %vm78, %v2513, 0
    %2516 = vmatprep.subr.mxu0 0.0
    %2517 = vmatpush1.xpose.msra.mxu0 %v823
    %2518 = vmatprep.subr.mxu0 0.0
    %2519 = vmatpush1.xpose.msra.mxu0 %v826
    %2520 = vmatprep.subr.mxu0 0.0
    %2521 = vmatpush1.xpose.msra.mxu0 %v829
    %2522 = vmatprep.subr.mxu0 0.0
    %2523 = vmatpush1.xpose.msra.mxu0 %v832
    %2524 = vmatprep.subr.mxu0 0.0
    %2525 = vmatpush1.xpose.msra.mxu0 %v835
    %2526 = vmatprep.subr.mxu0 0.0
    %2527 = vmatpush1.xpose.msra.mxu0 %v838
    %2528 = vmatprep.subr.mxu0 0.0
    %2529 = vmatpush1.xpose.msra.mxu0 %v841
    %2530 = vmatprep.subr.mxu0 0.0
    %2531 = vmatpush1.xpose.msra.mxu0 %v844
    %2532 = vmatprep.subr.mxu0 0.0
    %2533 = vmatpush1.xpose.msra.mxu0 %v847
    %2534 = vmatprep.subr.mxu0 0.0
    %2535 = vmatpush1.xpose.msra.mxu0 %v850
    %2536 = vmatprep.subr.mxu0 0.0
    %2537 = vmatpush1.xpose.msra.mxu0 %v853
    %2538 = vmatprep.subr.mxu0 0.0
    %2539 = vmatpush1.xpose.msra.mxu0 %v856
    %2540 = vmatprep.subr.mxu0 0.0
    %2541 = vmatpush1.xpose.msra.mxu0 %v859
    %2542 = vmatprep.subr.mxu0 0.0
    %2543 = vmatpush1.xpose.msra.mxu0 %v862
    %2544 = vmatprep.subr.mxu0 0.0
    %2545 = vmatpush1.xpose.msra.mxu0 %v865
    %2546 = vmatprep.subr.mxu0 0.0
    %2547 = vmatpush1.xpose.msra.mxu0 %v868
    %2548 = vmatprep.subr.mxu0 0.0
    %2549 = vmatpush1.xpose.msra.mxu0 0.0
    %2550 = vmatprep.subr.mxu0 0.0
    %2551 = vmatpush1.xpose.msra.mxu0 0.0
    %2552 = vmatprep.subr.mxu0 0.0
    %2553 = vmatpush1.xpose.msra.mxu0 0.0
    %2554 = vmatprep.subr.mxu0 0.0
    %2555 = vmatpush1.xpose.msra.mxu0 0.0
    %2556 = vmatprep.subr.mxu0 0.0
    %2557 = vmatpush1.xpose.msra.mxu0 0.0
    %2558 = vmatprep.subr.mxu0 0.0
    %2559 = vmatpush1.xpose.msra.mxu0 0.0
    %2560 = vmatprep.subr.mxu0 0.0
    %2561 = vmatpush1.xpose.msra.mxu0 0.0
    %2562 = vmatprep.subr.mxu0 0.0
    %2563 = vmatpush1.xpose.msra.mxu0 0.0
    %2564 = vmatprep.subr.mxu0 0.0
    %2565 = vmatpush1.xpose.msra.mxu0 0.0
    %2566 = vmatprep.subr.mxu0 0.0
    %2567 = vmatpush1.xpose.msra.mxu0 0.0
    %2568 = vmatprep.subr.mxu0 0.0
    %2569 = vmatpush1.xpose.msra.mxu0 0.0
    %2570 = vmatprep.subr.mxu0 0.0
    %2571 = vmatpush1.xpose.msra.mxu0 0.0
    %2572 = vmatprep.subr.mxu0 0.0
    %2573 = vmatpush1.xpose.msra.mxu0 0.0
    %2574 = vmatprep.subr.mxu0 0.0
    %2575 = vmatpush1.xpose.msra.mxu0 0.0
    %2576 = vmatprep.subr.mxu0 0.0
    %2577 = vmatpush1.xpose.msra.mxu0 0.0
    %2578 = vmatprep.subr.mxu0 0.0
    %2579 = vmatpush1.xpose.msra.mxu0 0.0
    %2580 = vmatprep.mubr.f32.mxu0 0.0
    %2581 = vmatmul.mubr.f32.gmra.mrb[0].mxu0 %v2514
    %v2582 = vpop.f32.mrb[0].mxu0
    %v2583 = vadd.f32 0.0, %v2582
    %v2584 = vpop.f32.mrb[0].mxu0
    %2585 = vdwg.mxu0
    %v2588 = vrot.slane %v2583, 7
    %v2589 = vsel %vm943, %v2588, %v2505
    %v2591 = vsel %vm488, %v2589, -1e+30
    %v2592 = vsel %vm947, %v2591, -inf
    %2593 = vmax.xlane.f32.xlu0 %v2592
    %v2594 = vpop.xlane.xlu0 %2593
    %vm2595 = vcmp.ge.f32.partialorder %v2591, %v2594
    %v2596 = vsel %vm2595, %v487, 128
    %v2597 = vsel %vm947, %v2596, 2147483647
    %v2598 = vand.u32 %v2597, 65535
    %v2599 = vshra.s32 %v2597, 16
    %v2600 = vcvt.s32.f32 %v2598
    %v2601 = vcvt.s32.f32 %v2599
    %2602 = vmin.xlane.f32.xlu0 %v2601
    %v2603 = vpop.xlane.xlu0 %2602
    %vm2604 = vcmp.eq.f32.partialorder %v2601, %v2603
    %v2605 = vsel %vm2604, %v2600, inf
    %2606 = vmin.xlane.f32.xlu0 %v2605
    %v2607 = vpop.xlane.xlu0 %2606
    %v2608 = vcvt.f32.s32 %v2607
    %v2609 = vcvt.f32.s32 %v2603
    %v2610 = vshll.u32 %v2609, 16
    %v2611 = vadd.s32 %v2610, %v2608
    %vm2612 = vcmp.eq.s32.totalorder %v487, %v2611
    %v2613 = vsel %vm2612, 1, 0
    %v2614 = vcvt.s32.f32 %v2613
    %v2617 = vunpack.c.l.s4 1966171168
    %v2618 = vunpack.c.0.s8 %v2617
    %v2619 = vlaneseq
    %v2620 = vshrl.u32 %v2619, 7
    %v2621 = vsub.s32 %v2618, %v2620
    %v2622 = vrot.slane %v2614, %v2621
    %v2623 = vcombine.high %v2622, %v2622
    %v2625 = vunpack.c.l.s4 1966171168
    %v2626 = vunpack.c.0.s8 %v2625
    %v2627 = vlaneseq
    %v2628 = vshrl.u32 %v2627, 7
    %v2629 = vsub.s32 %v2626, %v2628
    %v2630 = vrot.slane %v2622, %v2629
    %v2632 = vunpack.c.l.s4 1966171168
    %v2633 = vunpack.c.0.s8 %v2632
    %v2634 = vlaneseq
    %v2635 = vshrl.u32 %v2634, 7
    %v2636 = vsub.s32 %v2633, %v2635
    %v2637 = vrot.slane %v2623, %v2636
    %2640 = vmatprep.subr.mxu0 0.0
    %2641 = vmatpush1.msra.mxu0 %v34
    %2642 = vmatprep.subr.mxu0 0.0
    %2643 = vmatpush1.msra.mxu0 %v35
    %2644 = vmatprep.subr.mxu0 0.0
    %2645 = vmatpush1.msra.mxu0 %v36
    %2646 = vmatprep.subr.mxu0 0.0
    %2647 = vmatpush1.msra.mxu0 %v37
    %2648 = vmatprep.subr.mxu0 0.0
    %2649 = vmatpush1.msra.mxu0 %v38
    %2650 = vmatprep.subr.mxu0 0.0
    %2651 = vmatpush1.msra.mxu0 %v39
    %2652 = vmatprep.subr.mxu0 0.0
    %2653 = vmatpush1.msra.mxu0 %v40
    %2654 = vmatprep.subr.mxu0 0.0
    %2655 = vmatpush1.msra.mxu0 %v41
    %2656 = vmatprep.subr.mxu0 0.0
    %2657 = vmatpush1.msra.mxu0 %v42
    %2658 = vmatprep.subr.mxu0 0.0
    %2659 = vmatpush1.msra.mxu0 %v43
    %2660 = vmatprep.subr.mxu0 0.0
    %2661 = vmatpush1.msra.mxu0 %v44
    %2662 = vmatprep.subr.mxu0 0.0
    %2663 = vmatpush1.msra.mxu0 %v45
    %2664 = vmatprep.subr.mxu0 0.0
    %2665 = vmatpush1.msra.mxu0 %v46
    %2666 = vmatprep.subr.mxu0 0.0
    %2667 = vmatpush1.msra.mxu0 %v47
    %2668 = vmatprep.subr.mxu0 0.0
    %2669 = vmatpush1.msra.mxu0 %v48
    %2670 = vmatprep.subr.mxu0 0.0
    %2671 = vmatpush1.msra.mxu0 %v49
    %2672 = vmatprep.subr.mxu0 0.0
    %2673 = vmatpush1.msra.mxu0 0.0
    %2674 = vmatprep.subr.mxu0 0.0
    %2675 = vmatpush1.msra.mxu0 0.0
    %2676 = vmatprep.subr.mxu0 0.0
    %2677 = vmatpush1.msra.mxu0 0.0
    %2678 = vmatprep.subr.mxu0 0.0
    %2679 = vmatpush1.msra.mxu0 0.0
    %2680 = vmatprep.subr.mxu0 0.0
    %2681 = vmatpush1.msra.mxu0 0.0
    %2682 = vmatprep.subr.mxu0 0.0
    %2683 = vmatpush1.msra.mxu0 0.0
    %2684 = vmatprep.subr.mxu0 0.0
    %2685 = vmatpush1.msra.mxu0 0.0
    %2686 = vmatprep.subr.mxu0 0.0
    %2687 = vmatpush1.msra.mxu0 0.0
    %2688 = vmatprep.subr.mxu0 0.0
    %2689 = vmatpush1.msra.mxu0 0.0
    %2690 = vmatprep.subr.mxu0 0.0
    %2691 = vmatpush1.msra.mxu0 0.0
    %2692 = vmatprep.subr.mxu0 0.0
    %2693 = vmatpush1.msra.mxu0 0.0
    %2694 = vmatprep.subr.mxu0 0.0
    %2695 = vmatpush1.msra.mxu0 0.0
    %2696 = vmatprep.subr.mxu0 0.0
    %2697 = vmatpush1.msra.mxu0 0.0
    %2698 = vmatprep.subr.mxu0 0.0
    %2699 = vmatpush1.msra.mxu0 0.0
    %2700 = vmatprep.subr.mxu0 0.0
    %2701 = vmatpush1.msra.mxu0 0.0
    %2702 = vmatprep.subr.mxu0 0.0
    %2703 = vmatpush1.msra.mxu0 0.0
    %2704 = vmatprep.mubr.f32.mxu0 0.0
    %2705 = vmatmul.mubr.f32.gmra.mrb[0].mxu0 %v2630
    %v2706 = vpop.f32.mrb[0].mxu0
    %v2707 = vadd.f32 0.0, %v2706
    %v2708 = vpop.f32.mrb[0].mxu0
    %2709 = vdwg.mxu0
    %2710 = vmatprep.subr.mxu0 0.0
    %2711 = vmatpush1.msra.mxu0 %v50
    %2712 = vmatprep.subr.mxu0 0.0
    %2713 = vmatpush1.msra.mxu0 %v51
    %2714 = vmatprep.subr.mxu0 0.0
    %2715 = vmatpush1.msra.mxu0 %v52
    %2716 = vmatprep.subr.mxu0 0.0
    %2717 = vmatpush1.msra.mxu0 %v53
    %2718 = vmatprep.subr.mxu0 0.0
    %2719 = vmatpush1.msra.mxu0 %v54
    %2720 = vmatprep.subr.mxu0 0.0
    %2721 = vmatpush1.msra.mxu0 %v55
    %2722 = vmatprep.subr.mxu0 0.0
    %2723 = vmatpush1.msra.mxu0 %v56
    %2724 = vmatprep.subr.mxu0 0.0
    %2725 = vmatpush1.msra.mxu0 %v57
    %2726 = vmatprep.subr.mxu0 0.0
    %2727 = vmatpush1.msra.mxu0 %v58
    %2728 = vmatprep.subr.mxu0 0.0
    %2729 = vmatpush1.msra.mxu0 %v59
    %2730 = vmatprep.subr.mxu0 0.0
    %2731 = vmatpush1.msra.mxu0 %v60
    %2732 = vmatprep.subr.mxu0 0.0
    %2733 = vmatpush1.msra.mxu0 %v61
    %2734 = vmatprep.subr.mxu0 0.0
    %2735 = vmatpush1.msra.mxu0 %v62
    %2736 = vmatprep.subr.mxu0 0.0
    %2737 = vmatpush1.msra.mxu0 %v63
    %2738 = vmatprep.subr.mxu0 0.0
    %2739 = vmatpush1.msra.mxu0 %v64
    %2740 = vmatprep.subr.mxu0 0.0
    %2741 = vmatpush1.msra.mxu0 %v65
    %2742 = vmatprep.subr.mxu0 0.0
    %2743 = vmatpush1.msra.mxu0 0.0
    %2744 = vmatprep.subr.mxu0 0.0
    %2745 = vmatpush1.msra.mxu0 0.0
    %2746 = vmatprep.subr.mxu0 0.0
    %2747 = vmatpush1.msra.mxu0 0.0
    %2748 = vmatprep.subr.mxu0 0.0
    %2749 = vmatpush1.msra.mxu0 0.0
    %2750 = vmatprep.subr.mxu0 0.0
    %2751 = vmatpush1.msra.mxu0 0.0
    %2752 = vmatprep.subr.mxu0 0.0
    %2753 = vmatpush1.msra.mxu0 0.0
    %2754 = vmatprep.subr.mxu0 0.0
    %2755 = vmatpush1.msra.mxu0 0.0
    %2756 = vmatprep.subr.mxu0 0.0
    %2757 = vmatpush1.msra.mxu0 0.0
    %2758 = vmatprep.subr.mxu0 0.0
    %2759 = vmatpush1.msra.mxu0 0.0
    %2760 = vmatprep.subr.mxu0 0.0
    %2761 = vmatpush1.msra.mxu0 0.0
    %2762 = vmatprep.subr.mxu0 0.0
    %2763 = vmatpush1.msra.mxu0 0.0
    %2764 = vmatprep.subr.mxu0 0.0
    %2765 = vmatpush1.msra.mxu0 0.0
    %2766 = vmatprep.subr.mxu0 0.0
    %2767 = vmatpush1.msra.mxu0 0.0
    %2768 = vmatprep.subr.mxu0 0.0
    %2769 = vmatpush1.msra.mxu0 0.0
    %2770 = vmatprep.subr.mxu0 0.0
    %2771 = vmatpush1.msra.mxu0 0.0
    %2772 = vmatprep.subr.mxu0 0.0
    %2773 = vmatpush1.msra.mxu0 0.0
    %2774 = vmatprep.mubr.f32.mxu0 0.0
    %2775 = vmatmul.mubr.f32.gmra.mrb[0].mxu0 %v2637
    %v2776 = vpop.f32.mrb[0].mxu0
    %v2777 = vadd.f32 0.0, %v2776
    %v2778 = vpop.f32.mrb[0].mxu0
    %2779 = vdwg.mxu0
    %2780 = vrot.lane.b32.xlu0 %v2406, 64
    %v2781 = vpop.permute.xlu0 %2780
    %v2782 = vsel %vm78, %v2781, 0
    %2784 = vmatprep.subr.mxu0 0.0
    %2785 = vmatpush1.msra.mxu0 %v482
    %2786 = vmatprep.subr.mxu0 0.0
    %2787 = vmatpush1.msra.mxu0 %v483
    %2788 = vmatprep.subr.mxu0 0.0
    %2789 = vmatpush1.msra.mxu0 %v484
    %2790 = vmatprep.subr.mxu0 0.0
    %2791 = vmatpush1.msra.mxu0 %v485
    %2792 = vmatprep.subr.mxu0 0.0
    %2793 = vmatpush1.msra.mxu0 0.0
    %2794 = vmatprep.subr.mxu0 0.0
    %2795 = vmatpush1.msra.mxu0 0.0
    %2796 = vmatprep.subr.mxu0 0.0
    %2797 = vmatpush1.msra.mxu0 0.0
    %2798 = vmatprep.subr.mxu0 0.0
    %2799 = vmatpush1.msra.mxu0 0.0
    %2800 = vmatprep.subr.mxu0 0.0
    %2801 = vmatpush1.msra.mxu0 0.0
    %2802 = vmatprep.subr.mxu0 0.0
    %2803 = vmatpush1.msra.mxu0 0.0
    %2804 = vmatprep.subr.mxu0 0.0
    %2805 = vmatpush1.msra.mxu0 0.0
    %2806 = vmatprep.subr.mxu0 0.0
    %2807 = vmatpush1.msra.mxu0 0.0
    %2808 = vmatprep.subr.mxu0 0.0
    %2809 = vmatpush1.msra.mxu0 0.0
    %2810 = vmatprep.subr.mxu0 0.0
    %2811 = vmatpush1.msra.mxu0 0.0
    %2812 = vmatprep.subr.mxu0 0.0
    %2813 = vmatpush1.msra.mxu0 0.0
    %2814 = vmatprep.subr.mxu0 0.0
    %2815 = vmatpush1.msra.mxu0 0.0
    %2816 = vmatprep.subr.mxu0 0.0
    %2817 = vmatpush1.msra.mxu0 0.0
    %2818 = vmatprep.subr.mxu0 0.0
    %2819 = vmatpush1.msra.mxu0 0.0
    %2820 = vmatprep.subr.mxu0 0.0
    %2821 = vmatpush1.msra.mxu0 0.0
    %2822 = vmatprep.subr.mxu0 0.0
    %2823 = vmatpush1.msra.mxu0 0.0
    %2824 = vmatprep.subr.mxu0 0.0
    %2825 = vmatpush1.msra.mxu0 0.0
    %2826 = vmatprep.subr.mxu0 0.0
    %2827 = vmatpush1.msra.mxu0 0.0
    %2828 = vmatprep.subr.mxu0 0.0
    %2829 = vmatpush1.msra.mxu0 0.0
    %2830 = vmatprep.subr.mxu0 0.0
    %2831 = vmatpush1.msra.mxu0 0.0
    %2832 = vmatprep.subr.mxu0 0.0
    %2833 = vmatpush1.msra.mxu0 0.0
    %2834 = vmatprep.subr.mxu0 0.0
    %2835 = vmatpush1.msra.mxu0 0.0
    %2836 = vmatprep.subr.mxu0 0.0
    %2837 = vmatpush1.msra.mxu0 0.0
    %2838 = vmatprep.subr.mxu0 0.0
    %2839 = vmatpush1.msra.mxu0 0.0
    %2840 = vmatprep.subr.mxu0 0.0
    %2841 = vmatpush1.msra.mxu0 0.0
    %2842 = vmatprep.subr.mxu0 0.0
    %2843 = vmatpush1.msra.mxu0 0.0
    %2844 = vmatprep.subr.mxu0 0.0
    %2845 = vmatpush1.msra.mxu0 0.0
    %2846 = vmatprep.subr.mxu0 0.0
    %2847 = vmatpush1.msra.mxu0 0.0
    %2848 = vmatprep.mubr.f32.mxu0 0.0
    %2849 = vmatmul.mubr.f32.gmra.mrb[0].mxu0 %v2782
    %v2850 = vpop.f32.mrb[0].mxu0
    %v2851 = vadd.f32 0.0, %v2850
    %v2852 = vpop.f32.mrb[0].mxu0
    %2853 = vdwg.mxu0
    %v2856 = vrot.slane %v2777, 7
    %v2857 = vsel %vm943, %v2856, %v2707
    %v2858 = vsel %vm566, %v2857, 0
    %2860 = vmatprep.subr.mxu0 0.0
    %2861 = vmatpush1.msra.mxu0 %v480
    %2862 = vmatprep.subr.mxu0 0.0
    %2863 = vmatpush1.msra.mxu0 %v481
    %2864 = vmatprep.subr.mxu0 0.0
    %2865 = vmatpush1.msra.mxu0 0.0
    %2866 = vmatprep.subr.mxu0 0.0
    %2867 = vmatpush1.msra.mxu0 0.0
    %2868 = vmatprep.subr.mxu0 0.0
    %2869 = vmatpush1.msra.mxu0 0.0
    %2870 = vmatprep.subr.mxu0 0.0
    %2871 = vmatpush1.msra.mxu0 0.0
    %2872 = vmatprep.subr.mxu0 0.0
    %2873 = vmatpush1.msra.mxu0 0.0
    %2874 = vmatprep.subr.mxu0 0.0
    %2875 = vmatpush1.msra.mxu0 0.0
    %2876 = vmatprep.subr.mxu0 0.0
    %2877 = vmatpush1.msra.mxu0 0.0
    %2878 = vmatprep.subr.mxu0 0.0
    %2879 = vmatpush1.msra.mxu0 0.0
    %2880 = vmatprep.subr.mxu0 0.0
    %2881 = vmatpush1.msra.mxu0 0.0
    %2882 = vmatprep.subr.mxu0 0.0
    %2883 = vmatpush1.msra.mxu0 0.0
    %2884 = vmatprep.subr.mxu0 0.0
    %2885 = vmatpush1.msra.mxu0 0.0
    %2886 = vmatprep.subr.mxu0 0.0
    %2887 = vmatpush1.msra.mxu0 0.0
    %2888 = vmatprep.subr.mxu0 0.0
    %2889 = vmatpush1.msra.mxu0 0.0
    %2890 = vmatprep.subr.mxu0 0.0
    %2891 = vmatpush1.msra.mxu0 0.0
    %2892 = vmatprep.subr.mxu0 0.0
    %2893 = vmatpush1.msra.mxu0 0.0
    %2894 = vmatprep.subr.mxu0 0.0
    %2895 = vmatpush1.msra.mxu0 0.0
    %2896 = vmatprep.subr.mxu0 0.0
    %2897 = vmatpush1.msra.mxu0 0.0
    %2898 = vmatprep.subr.mxu0 0.0
    %2899 = vmatpush1.msra.mxu0 0.0
    %2900 = vmatprep.subr.mxu0 0.0
    %2901 = vmatpush1.msra.mxu0 0.0
    %2902 = vmatprep.subr.mxu0 0.0
    %2903 = vmatpush1.msra.mxu0 0.0
    %2904 = vmatprep.subr.mxu0 0.0
    %2905 = vmatpush1.msra.mxu0 0.0
    %2906 = vmatprep.subr.mxu0 0.0
    %2907 = vmatpush1.msra.mxu0 0.0
    %2908 = vmatprep.subr.mxu0 0.0
    %2909 = vmatpush1.msra.mxu0 0.0
    %2910 = vmatprep.subr.mxu0 0.0
    %2911 = vmatpush1.msra.mxu0 0.0
    %2912 = vmatprep.subr.mxu0 0.0
    %2913 = vmatpush1.msra.mxu0 0.0
    %2914 = vmatprep.subr.mxu0 0.0
    %2915 = vmatpush1.msra.mxu0 0.0
    %2916 = vmatprep.subr.mxu0 0.0
    %2917 = vmatpush1.msra.mxu0 0.0
    %2918 = vmatprep.subr.mxu0 0.0
    %2919 = vmatpush1.msra.mxu0 0.0
    %2920 = vmatprep.subr.mxu0 0.0
    %2921 = vmatpush1.msra.mxu0 0.0
    %2922 = vmatprep.subr.mxu0 0.0
    %2923 = vmatpush1.msra.mxu0 0.0
    %2924 = vmatprep.mubr.f32.mxu0 0.0
    %2925 = vmatmul.mubr.f32.gmra.mrb[0].mxu0 %v2858
    %v2926 = vpop.f32.mrb[0].mxu0
    %v2927 = vadd.f32 %v2851, %v2926
    %v2928 = vpop.f32.mrb[0].mxu0
    %2929 = vdwg.mxu0
    %v2930 = vadd.f32 %v2927, %v149
    %v2931 = vxor.u32 %v2930, 2147483648
    %v2932 = vmul.f32 %v2931, 1.442695
    %v2933 = vpow.pop %v2932
    %v2934 = vadd.f32 %v2933, 1.0
    %v2935 = vrcp.pop %v2934
    %v2936 = vmul.f32 1.0, %v2935
    %v2937 = vtanh.pop %v2930
    %v2938 = vmul.f32 %v2936, %v2400
    %2940 = vrot.lane.b32.xlu0 %v2937, 32
    %v2941 = vpop.permute.xlu0 %2940
    %v2943 = vmul.f32 %v2936, %v2941
    %2945 = vrot.lane.b32.xlu0 %v2943, 32
    %v2946 = vpop.permute.xlu0 %2945
    %v2948 = vadd.f32 %v2938, %v2946
    %v2949 = vtanh.pop %v2948
    %2951 = vrot.lane.b32.xlu0 %v2949, 32
    %v2952 = vpop.permute.xlu0 %2951
    %v2954 = vmul.f32 %v2936, %v2952
    %v2957 = vunpack.c.l.s4 1966171168
    %v2958 = vunpack.c.0.s8 %v2957
    %v2959 = vlaneseq
    %v2960 = vshrl.u32 %v2959, 7
    %v2961 = vsub.s32 %v2958, %v2960
    %v2962 = vrot.slane %v2954, %v2961
    %v2963 = vcombine.high %v2962, %v2962
    %v2965 = vunpack.c.l.s4 1966171168
    %v2966 = vunpack.c.0.s8 %v2965
    %v2967 = vlaneseq
    %v2968 = vshrl.u32 %v2967, 7
    %v2969 = vsub.s32 %v2966, %v2968
    %v2970 = vrot.slane %v2962, %v2969
    %v2972 = vunpack.c.l.s4 1966171168
    %v2973 = vunpack.c.0.s8 %v2972
    %v2974 = vlaneseq
    %v2975 = vshrl.u32 %v2974, 7
    %v2976 = vsub.s32 %v2973, %v2975
    %v2977 = vrot.slane %v2963, %v2976
    %v2978 = vlaneseq
    %v2979 = vshrl.u32 %v2978, 7
    %v2980 = vsub.s32 0, %v2979
    %v2981 = vrot.slane %v2970, %v2980
    %2982 = vrot.lane.b32.xlu0 %v2981, 64
    %v2983 = vpop.permute.xlu0 %2982
    %v2984 = vsel %vm78, %v2983, 0
    %2986 = vmatprep.subr.mxu0 0.0
    %2987 = vmatpush1.xpose.msra.mxu0 %v697
    %2988 = vmatprep.subr.mxu0 0.0
    %2989 = vmatpush1.xpose.msra.mxu0 %v700
    %2990 = vmatprep.subr.mxu0 0.0
    %2991 = vmatpush1.xpose.msra.mxu0 %v703
    %2992 = vmatprep.subr.mxu0 0.0
    %2993 = vmatpush1.xpose.msra.mxu0 %v706
    %2994 = vmatprep.subr.mxu0 0.0
    %2995 = vmatpush1.xpose.msra.mxu0 %v709
    %2996 = vmatprep.subr.mxu0 0.0
    %2997 = vmatpush1.xpose.msra.mxu0 %v712
    %2998 = vmatprep.subr.mxu0 0.0
    %2999 = vmatpush1.xpose.msra.mxu0 %v715
    %3000 = vmatprep.subr.mxu0 0.0
    %3001 = vmatpush1.xpose.msra.mxu0 %v718
    %3002 = vmatprep.subr.mxu0 0.0
    %3003 = vmatpush1.xpose.msra.mxu0 %v721
    %3004 = vmatprep.subr.mxu0 0.0
    %3005 = vmatpush1.xpose.msra.mxu0 %v724
    %3006 = vmatprep.subr.mxu0 0.0
    %3007 = vmatpush1.xpose.msra.mxu0 %v727
    %3008 = vmatprep.subr.mxu0 0.0
    %3009 = vmatpush1.xpose.msra.mxu0 %v730
    %3010 = vmatprep.subr.mxu0 0.0
    %3011 = vmatpush1.xpose.msra.mxu0 %v733
    %3012 = vmatprep.subr.mxu0 0.0
    %3013 = vmatpush1.xpose.msra.mxu0 %v736
    %3014 = vmatprep.subr.mxu0 0.0
    %3015 = vmatpush1.xpose.msra.mxu0 %v739
    %3016 = vmatprep.subr.mxu0 0.0
    %3017 = vmatpush1.xpose.msra.mxu0 %v742
    %3018 = vmatprep.subr.mxu0 0.0
    %3019 = vmatpush1.xpose.msra.mxu0 0.0
    %3020 = vmatprep.subr.mxu0 0.0
    %3021 = vmatpush1.xpose.msra.mxu0 0.0
    %3022 = vmatprep.subr.mxu0 0.0
    %3023 = vmatpush1.xpose.msra.mxu0 0.0
    %3024 = vmatprep.subr.mxu0 0.0
    %3025 = vmatpush1.xpose.msra.mxu0 0.0
    %3026 = vmatprep.subr.mxu0 0.0
    %3027 = vmatpush1.xpose.msra.mxu0 0.0
    %3028 = vmatprep.subr.mxu0 0.0
    %3029 = vmatpush1.xpose.msra.mxu0 0.0
    %3030 = vmatprep.subr.mxu0 0.0
    %3031 = vmatpush1.xpose.msra.mxu0 0.0
    %3032 = vmatprep.subr.mxu0 0.0
    %3033 = vmatpush1.xpose.msra.mxu0 0.0
    %3034 = vmatprep.subr.mxu0 0.0
    %3035 = vmatpush1.xpose.msra.mxu0 0.0
    %3036 = vmatprep.subr.mxu0 0.0
    %3037 = vmatpush1.xpose.msra.mxu0 0.0
    %3038 = vmatprep.subr.mxu0 0.0
    %3039 = vmatpush1.xpose.msra.mxu0 0.0
    %3040 = vmatprep.subr.mxu0 0.0
    %3041 = vmatpush1.xpose.msra.mxu0 0.0
    %3042 = vmatprep.subr.mxu0 0.0
    %3043 = vmatpush1.xpose.msra.mxu0 0.0
    %3044 = vmatprep.subr.mxu0 0.0
    %3045 = vmatpush1.xpose.msra.mxu0 0.0
    %3046 = vmatprep.subr.mxu0 0.0
    %3047 = vmatpush1.xpose.msra.mxu0 0.0
    %3048 = vmatprep.subr.mxu0 0.0
    %3049 = vmatpush1.xpose.msra.mxu0 0.0
    %3050 = vmatprep.mubr.f32.mxu0 0.0
    %3051 = vmatmul.mubr.f32.gmra.mrb[0].mxu0 %v2984
    %v3052 = vpop.f32.mrb[0].mxu0
    %v3053 = vadd.f32 0.0, %v3052
    %v3054 = vpop.f32.mrb[0].mxu0
    %3055 = vdwg.mxu0
    %v3056 = vlaneseq
    %v3057 = vshrl.u32 %v3056, 7
    %v3058 = vsub.s32 0, %v3057
    %v3059 = vrot.slane %v2977, %v3058
    %3060 = vrot.lane.b32.xlu0 %v3059, 64
    %v3061 = vpop.permute.xlu0 %3060
    %v3062 = vsel %vm78, %v3061, 0
    %3064 = vmatprep.subr.mxu0 0.0
    %3065 = vmatpush1.xpose.msra.mxu0 %v823
    %3066 = vmatprep.subr.mxu0 0.0
    %3067 = vmatpush1.xpose.msra.mxu0 %v826
    %3068 = vmatprep.subr.mxu0 0.0
    %3069 = vmatpush1.xpose.msra.mxu0 %v829
    %3070 = vmatprep.subr.mxu0 0.0
    %3071 = vmatpush1.xpose.msra.mxu0 %v832
    %3072 = vmatprep.subr.mxu0 0.0
    %3073 = vmatpush1.xpose.msra.mxu0 %v835
    %3074 = vmatprep.subr.mxu0 0.0
    %3075 = vmatpush1.xpose.msra.mxu0 %v838
    %3076 = vmatprep.subr.mxu0 0.0
    %3077 = vmatpush1.xpose.msra.mxu0 %v841
    %3078 = vmatprep.subr.mxu0 0.0
    %3079 = vmatpush1.xpose.msra.mxu0 %v844
    %3080 = vmatprep.subr.mxu0 0.0
    %3081 = vmatpush1.xpose.msra.mxu0 %v847
    %3082 = vmatprep.subr.mxu0 0.0
    %3083 = vmatpush1.xpose.msra.mxu0 %v850
    %3084 = vmatprep.subr.mxu0 0.0
    %3085 = vmatpush1.xpose.msra.mxu0 %v853
    %3086 = vmatprep.subr.mxu0 0.0
    %3087 = vmatpush1.xpose.msra.mxu0 %v856
    %3088 = vmatprep.subr.mxu0 0.0
    %3089 = vmatpush1.xpose.msra.mxu0 %v859
    %3090 = vmatprep.subr.mxu0 0.0
    %3091 = vmatpush1.xpose.msra.mxu0 %v862
    %3092 = vmatprep.subr.mxu0 0.0
    %3093 = vmatpush1.xpose.msra.mxu0 %v865
    %3094 = vmatprep.subr.mxu0 0.0
    %3095 = vmatpush1.xpose.msra.mxu0 %v868
    %3096 = vmatprep.subr.mxu0 0.0
    %3097 = vmatpush1.xpose.msra.mxu0 0.0
    %3098 = vmatprep.subr.mxu0 0.0
    %3099 = vmatpush1.xpose.msra.mxu0 0.0
    %3100 = vmatprep.subr.mxu0 0.0
    %3101 = vmatpush1.xpose.msra.mxu0 0.0
    %3102 = vmatprep.subr.mxu0 0.0
    %3103 = vmatpush1.xpose.msra.mxu0 0.0
    %3104 = vmatprep.subr.mxu0 0.0
    %3105 = vmatpush1.xpose.msra.mxu0 0.0
    %3106 = vmatprep.subr.mxu0 0.0
    %3107 = vmatpush1.xpose.msra.mxu0 0.0
    %3108 = vmatprep.subr.mxu0 0.0
    %3109 = vmatpush1.xpose.msra.mxu0 0.0
    %3110 = vmatprep.subr.mxu0 0.0
    %3111 = vmatpush1.xpose.msra.mxu0 0.0
    %3112 = vmatprep.subr.mxu0 0.0
    %3113 = vmatpush1.xpose.msra.mxu0 0.0
    %3114 = vmatprep.subr.mxu0 0.0
    %3115 = vmatpush1.xpose.msra.mxu0 0.0
    %3116 = vmatprep.subr.mxu0 0.0
    %3117 = vmatpush1.xpose.msra.mxu0 0.0
    %3118 = vmatprep.subr.mxu0 0.0
    %3119 = vmatpush1.xpose.msra.mxu0 0.0
    %3120 = vmatprep.subr.mxu0 0.0
    %3121 = vmatpush1.xpose.msra.mxu0 0.0
    %3122 = vmatprep.subr.mxu0 0.0
    %3123 = vmatpush1.xpose.msra.mxu0 0.0
    %3124 = vmatprep.subr.mxu0 0.0
    %3125 = vmatpush1.xpose.msra.mxu0 0.0
    %3126 = vmatprep.subr.mxu0 0.0
    %3127 = vmatpush1.xpose.msra.mxu0 0.0
    %3128 = vmatprep.mubr.f32.mxu0 0.0
    %3129 = vmatmul.mubr.f32.gmra.mrb[0].mxu0 %v3062
    %v3130 = vpop.f32.mrb[0].mxu0
    %v3131 = vadd.f32 0.0, %v3130
    %v3132 = vpop.f32.mrb[0].mxu0
    %3133 = vdwg.mxu0
    %s3134 = sld [smem:[#allocation2]]
    %v3135 = vrot.slane %v1409, 6
    %v3136 = vrot.slane %v1487, 5
    %vm3137 = vcmask 1043459
    %v3138 = vsel %vm3137, %v3136, %v3135
    %v3140 = vrot.slane %v1957, 4
    %v3141 = vrot.slane %v2035, 3
    %vm3142 = vcmask 1045509
    %v3143 = vsel %vm3142, %v3141, %v3140
    %v3145 = vrot.slane %v2505, 2
    %v3146 = vrot.slane %v2583, 1
    %vm3147 = vcmask 1047559
    %v3148 = vsel %vm3147, %v3146, %v3145
    %v3152 = vrot.slane %v3131, 7
    %v3153 = vsel %vm943, %v3152, %v3053
    %v3155 = vsel %vm947, %v944, %v3138
    %vm3156 = vcmask 1043456
    %v3157 = vsel %vm3156, %v3155, %v3143
    %vm3158 = vcmask 1045504
    %v3159 = vsel %vm3158, %v3157, %v3148
    %v3160 = vstv %s3134
    %v3161 = vadd.f32 %v3159, %v3160
    %v3162 = vadd.f32 %v3153, %v3160
    %v3165 = vrot.slane %v3161, 6
    %v3166 = vrot.slane %v3162, 6
    %v3167 = vsel %vm947, %v3165, %v3166
    %v3170 = vsel %vm947, %v491, %v3165
    %3171 = vst [vmem:[#allocation3] sm:$0xff] %v3170
    %3172 = vst [vmem:[#allocation3 + $0x8] sm:$0xf] %v3167
    // Predicated region
    $region38: #{tpu_custom_call.1} parent=1 // pred_check
      _
    $region39: #{tpu_custom_call.1} parent=1 // pred_check_branch
      %3174 = sbr.rel (0) target = $region41
    $region40: #{tpu_custom_call.1} parent=1 // pred_region
      %s3176 = ssub.s32 256, 256
      %3177 = vsyncadd [#allocation4], %s3176
      %s3178 = sshll.u32 [#allocation3], 4
      %s3179 = int_to_ptr.vmem [resolvable:$true] %s3178
      %3184 = dma.vmem_to_hbm [thread:$0]  %s3179, 256, %s9, [#allocation4], 128, 128, 8
    $region41: #{tpu_custom_call.1} parent=1 // pred_fallthru
      _
    // Predicated region
    $region42: #{tpu_custom_call.1} parent=1 // pred_check
      _
    $region43: #{tpu_custom_call.1} parent=1 // pred_check_branch
      %3186 = sbr.rel (0) target = $region45
    $region44: #{tpu_custom_call.1} parent=1 // pred_region
      %3187 = dma.done [#allocation4], 256
    $region45: #{tpu_custom_call.1} parent=1 // pred_fallthru
      _
    %3188 = vsyncpa [#allocation4], 1

</llo_original>
